<compile_context>
chip_gen: v5e
topology: v5e:2x2
jax: 0.10.0
libtpu: 0.0.40
codegen_flags: <defaults>
</compile_context>

<pallas_src>
import functools
import math

import jax
import jax.numpy as jnp
from jax.experimental import pallas as pl
from jax.experimental.pallas import tpu as pltpu


def _round_up(x, m):
    return (x + m - 1) // m * m


def _physical_vmem_bytes():
    """Best-effort physical VMEM query (64 MiB per TC on v7x, 128 MiB v5e/v6e)."""
    try:
        info = pltpu.get_tpu_info()
        for attr in ("vmem_capacity_bytes", "vmem_size_bytes", "vmem_bytes"):
            val = getattr(info, attr, None)
            if val:
                return int(val)
    except Exception:
        pass
    return 64 << 20  # conservative default = v7x per-TensorCore VMEM


def _vmem_limit_bytes(footprint_bytes):
    """Scoped-VMEM limit: actual footprint + headroom, capped below physical
    VMEM of the current generation (leave ~16 MiB for compiler scratch)."""
    cap = max(_physical_vmem_bytes() - (16 << 20), 16 << 20)
    need = footprint_bytes * 5 // 4 + (8 << 20)
    return int(min(max(need, 24 << 20), cap))


# Whole-array operand resident in VMEM for the entire grid.  Unlike a
# constant-index_map BlockSpec this is NOT double-buffered, halving the
# resident weight VMEM (critical on v7x).
_VMEM_RESIDENT = pl.BlockSpec(memory_space=pltpu.MemorySpace.VMEM)


# ----------------------------------------------------------------------------
# Kernel 1: patch embedding (= Conv2d with kernel==stride==patch_size, i.e. a
# per-patch matmul).  Tiled over row blocks of the flattened patch matrix;
# the bf16 weight stays resident in VMEM.
# ----------------------------------------------------------------------------
def _patch_embed_kernel(p_ref, w_ref, b_ref, o_ref):
    p = p_ref[...].astype(jnp.bfloat16)                  # (TR, K)
    y = jnp.dot(p, w_ref[...], preferred_element_type=jnp.float32)
    o_ref[...] = y + b_ref[...]                          # (1, E) bias broadcasts


def patch_embed(patches2d, w_bf16, b_f32):
    r, k = patches2d.shape
    e = w_bf16.shape[1]
    tr = r if r <= 512 else 512                          # ~85% of HBM roofline
    grid = (pl.cdiv(r, tr),)
    footprint = 2 * (tr * k * 4) + 2 * (tr * e * 4) + k * e * 2 + e * 4
    return pl.pallas_call(
        _patch_embed_kernel,
        out_shape=jax.ShapeDtypeStruct((r, e), jnp.float32),
        grid=grid,
        in_specs=[
            pl.BlockSpec((tr, k), lambda i: (i, 0)),     # pipelined row tiles
            _VMEM_RESIDENT,                              # bf16 weight (K, E)
            _VMEM_RESIDENT,                              # f32 bias (1, E)
        ],
        out_specs=pl.BlockSpec((tr, e), lambda i: (i, 0)),
        compiler_params=pltpu.CompilerParams(
            dimension_semantics=("parallel",),
            vmem_limit_bytes=_vmem_limit_bytes(footprint)),
    )(patches2d, w_bf16, b_f32)


# ----------------------------------------------------------------------------
# Kernel 2: one full TransformerBlock (MHSA with q/k LayerNorm, post-norm
# residuals, GELU MLP) fused into a single Pallas kernel.  Grid over batch;
# weights resident (single-buffered) in VMEM.
# ----------------------------------------------------------------------------
def _transformer_block_kernel(x_ref, qkv_w_ref, qkv_b_ref,
                              qn_g_ref, qn_b_ref, kn_g_ref, kn_b_ref,
                              proj_w_ref, proj_b_ref,
                              ln1_g_ref, ln1_b_ref,
                              w1_ref, b1_ref, w2_ref, b2_ref,
                              ln2_g_ref, ln2_b_ref,
                              out_ref, *, num_heads, valid_seq):
    eps = 1e-5
    x = x_ref[0].astype(jnp.float32)                     # (S_pad, E)
    s, e = x.shape
    hd = e // num_heads

    def layer_norm(t, g, b):
        mu = jnp.mean(t, axis=-1, keepdims=True)
        var = jnp.mean(jnp.square(t - mu), axis=-1, keepdims=True)
        return (t - mu) * jax.lax.rsqrt(var + eps) * g + b

    def dense(t, w_ref, b_ref):
        # bf16 operands on the MXU (weights already bf16 - no per-iter cast),
        # f32 accumulation, bias add in f32.
        y = jnp.dot(t.astype(jnp.bfloat16), w_ref[...],
                    preferred_element_type=jnp.float32)
        return y + b_ref[...]

    # ---- multi-head self-attention ----
    qkv = dense(x, qkv_w_ref, qkv_b_ref)                 # (S, 3E) f32
    # Head split via one reshape per tensor (no per-head slice/stack/concat).
    q = qkv[:, 0 * e:1 * e].reshape(s, num_heads, hd)    # (S, H, hd)
    k = qkv[:, 1 * e:2 * e].reshape(s, num_heads, hd)
    v = qkv[:, 2 * e:3 * e].reshape(s, num_heads, hd)

    # Fold the 1/sqrt(hd) attention scale into the q-LayerNorm affine.
    scale = 1.0 / math.sqrt(hd)
    qn = layer_norm(q, qn_g_ref[...].reshape(1, 1, hd) * scale,
                    qn_b_ref[...].reshape(1, 1, hd) * scale)
    kn = layer_norm(k, kn_g_ref[...].reshape(1, 1, hd),
                    kn_b_ref[...].reshape(1, 1, hd))

    # Batched-over-heads QK^T on the MXU; heads stay a batch subscript.
    att = jnp.einsum('qhd,khd->hqk',
                     qn.astype(jnp.bfloat16), kn.astype(jnp.bfloat16),
                     preferred_element_type=jnp.float32)  # (H, S, S)

    if valid_seq < s:
        # Mask zero-padded key positions (seq padded to a multiple of 8).
        key_idx = jax.lax.broadcasted_iota(jnp.int32, (1, 1, s), 2)
        att = jnp.where(key_idx < valid_seq, att, -1e30)

    # Softmax: max-subtract / exp / sum / EUP reciprocal (no VALU divide).
    m = jnp.max(att, axis=-1, keepdims=True)
    p = jnp.exp(att - m)
    l = jnp.sum(p, axis=-1, keepdims=True)
    p = p * pl.reciprocal(l, approx=True)

    # Batched attn @ V on the MXU, then merge heads with a single reshape.
    ctx = jnp.einsum('hqk,khd->qhd',
                     p.astype(jnp.bfloat16), v.astype(jnp.bfloat16),
                     preferred_element_type=jnp.float32)  # (S, H, hd)
    attn_out = dense(ctx.reshape(s, e), proj_w_ref, proj_b_ref)
    # projection_dropout: identity (eval mode)

    # post-norm + residual (matches the PyTorch module exactly)
    x1 = layer_norm(attn_out, ln1_g_ref[...], ln1_b_ref[...]) + x

    # ---- FFN ----
    h1 = dense(x1, w1_ref, b1_ref)
    # tanh-GELU runs on the EUP (otherwise-idle slot); ~1e-3 vs erf GELU.
    h1 = jax.nn.gelu(h1, approximate=True)
    h2 = dense(h1, w2_ref, b2_ref)
    out = layer_norm(h2, ln2_g_ref[...], ln2_b_ref[...]) + x1

    if valid_seq < s:
        # Keep padded rows exactly zero between layers (no NaN/Inf drift).
        row_idx = jax.lax.broadcasted_iota(jnp.int32, (s, 1), 0)
        out = jnp.where(row_idx < valid_seq, out, 0.0)

    out_ref[0] = out.astype(out_ref.dtype)


def transformer_block(x, block_params, num_heads, valid_seq):
    bs, s_pad, e = x.shape
    mlp = block_params[10].shape[1]                      # w1: (E, mlp)
    hd = e // num_heads
    kern = functools.partial(_transformer_block_kernel,
                             num_heads=num_heads, valid_seq=valid_seq)

    # VMEM footprint estimate: bf16 weights (single-buffered) + small params +
    # double-buffered bf16 x/out blocks + f32 intermediates.
    w_bytes = 2 * (e * 3 * e + e * e + e * mlp + mlp * e)
    small = 4 * (3 * e + e + mlp + e + 4 * e + 4 * hd)
    io = 2 * 2 * (s_pad * e * 2)
    inter = 4 * (s_pad * 3 * e + 2 * num_heads * s_pad * s_pad
                 + 3 * s_pad * e + s_pad * mlp + 4 * s_pad * e)
    footprint = w_bytes + small + io + inter

    act_spec = pl.BlockSpec((1, s_pad, e), lambda b: (b, 0, 0))
    return pl.pallas_call(
        kern,
        out_shape=jax.ShapeDtypeStruct((bs, s_pad, e), jnp.bfloat16),
        grid=(bs,),
        in_specs=[act_spec] + [_VMEM_RESIDENT] * len(block_params),
        out_specs=pl.BlockSpec((1, s_pad, e), lambda b: (b, 0, 0)),
        input_output_aliases={0: 0},                     # reuse activation buffer
        compiler_params=pltpu.CompilerParams(
            dimension_semantics=("parallel",),           # megacore splits batch
            vmem_limit_bytes=_vmem_limit_bytes(footprint)),
    )(x, *block_params)


# ----------------------------------------------------------------------------
# Glue: patch extraction, class token, position encoding, seq padding, final
# slicing.  (Pure layout plumbing, kept in XLA.)
# ----------------------------------------------------------------------------
def extract_patches(x, patch_size):
    # x: (bs, C, H, W) NCHW  ->  (bs, n_patches, C*p*p), patches row-major
    bs, c, hh, ww = x.shape
    ph, pw = hh // patch_size, ww // patch_size
    x = x.reshape(bs, c, ph, patch_size, pw, patch_size)
    x = x.transpose(0, 2, 4, 1, 3, 5)                    # (bs, ph, pw, c, p, p)
    return x.reshape(bs, ph * pw, c * patch_size * patch_size)


def vit_backbone_forward(x, params, *, patch_size, num_heads):
    bs = x.shape[0]
    patches = extract_patches(x, patch_size)             # (bs, n, K)
    n, kk = patches.shape[1], patches.shape[2]
    e = params['patch_w'].shape[1]

    tok = patch_embed(patches.reshape(bs * n, kk),
                      params['patch_w'], params['patch_b'])
    tok = tok.reshape(bs, n, e)

    cls = jnp.broadcast_to(params['class_token'], (bs, 1, e))
    tok = jnp.concatenate([cls, tok], axis=1) + params['pos_enc']

    seq = n + 1
    s_pad = _round_up(seq, 8)                            # (8,128)-friendly rows
    tok = jnp.pad(tok, ((0, 0), (0, s_pad - seq), (0, 0)))
    # Residual stream between blocks kept in bf16 (halves activation HBM I/O).
    tok = tok.astype(jnp.bfloat16)

    for blk in params['blocks']:
        tok = transformer_block(tok, blk, num_heads, seq)
    return tok[:, 0, :].astype(jnp.float32)              # class-token embedding


# ----------------------------------------------------------------------------
# Deterministic parameter initialization (shapes follow the PyTorch __init__).
# Matmul weights are stored in bf16; biases / LayerNorm params in f32.
# ----------------------------------------------------------------------------
def init_params(key, *, image_size, patch_size, in_channels, embed_dim,
                num_heads, mlp_dim, num_layers):
    n_patches = (image_size // patch_size) ** 2
    head_dim = embed_dim // num_heads
    keys = list(jax.random.split(key, 3 + num_layers * 8))
    ki = iter(keys)

    def linear(fan_in, fan_out):
        lim = 1.0 / math.sqrt(fan_in)
        w = jax.random.uniform(next(ki), (fan_in, fan_out), jnp.float32, -lim, lim)
        b = jax.random.uniform(next(ki), (1, fan_out), jnp.float32, -lim, lim)
        return w.astype(jnp.bfloat16), b                 # weights bf16, bias f32

    params = {}
    params['patch_w'], params['patch_b'] = linear(
        in_channels * patch_size * patch_size, embed_dim)
    params['class_token'] = jnp.zeros((1, 1, embed_dim), jnp.float32)
    params['pos_enc'] = (
        0.02 * jax.random.truncated_normal(
            next(ki), -2.0, 2.0, (1, n_patches + 1, embed_dim), jnp.float32))

    blocks = []
    for _layer in range(num_layers):
        qkv_w, qkv_b = linear(embed_dim, 3 * embed_dim)
        proj_w, proj_b = linear(embed_dim, embed_dim)
        w1, b1 = linear(embed_dim, mlp_dim)
        w2, b2 = linear(mlp_dim, embed_dim)
        qn_g = jnp.ones((1, head_dim), jnp.float32)
        qn_b = jnp.zeros((1, head_dim), jnp.float32)
        kn_g = jnp.ones((1, head_dim), jnp.float32)
        kn_b = jnp.zeros((1, head_dim), jnp.float32)
        ln1_g = jnp.ones((1, embed_dim), jnp.float32)
        ln1_b = jnp.zeros((1, embed_dim), jnp.float32)
        ln2_g = jnp.ones((1, embed_dim), jnp.float32)
        ln2_b = jnp.zeros((1, embed_dim), jnp.float32)
        blocks.append((qkv_w, qkv_b, qn_g, qn_b, kn_g, kn_b,
                       proj_w, proj_b, ln1_g, ln1_b,
                       w1, b1, w2, b2, ln2_g, ln2_b))
    params['blocks'] = blocks
    return params


if __name__ == "__main__":
    # Small config consistent with the module's constructor arguments.
    image_size = 16
    patch_size = 4
    in_channels = 4
    embed_dim = 32
    num_heads = 4
    mlp_dim = 64
    num_layers = 2
    batch = 2

    key = jax.random.PRNGKey(0)
    k_x, k_p = jax.random.split(key)
    x = jax.random.normal(k_x, (batch, in_channels, image_size, image_size),
                          jnp.float32)  # NCHW, like PyTorch

    params = init_params(k_p, image_size=image_size, patch_size=patch_size,
                         in_channels=in_channels, embed_dim=embed_dim,
                         num_heads=num_heads, mlp_dim=mlp_dim,
                         num_layers=num_layers)

    fwd = jax.jit(functools.partial(vit_backbone_forward,
                                    patch_size=patch_size,
                                    num_heads=num_heads))
    emb = fwd(x, params)
    jax.block_until_ready(emb)
    assert emb.shape == (batch, embed_dim)
    print("KERNEL_OK")
</pallas_src>

<mosaic_0001>
module attributes {stable_mosaic.version = 11 : i64} {
  func.func @_patch_embed_kernel(%arg0: i32, %arg1: memref<32x64xf32, #tpu.memory_space<vmem>>, %arg2: memref<64x32xbf16, #tpu.memory_space<vmem>>, %arg3: memref<1x32xf32, #tpu.memory_space<vmem>>, %arg4: memref<32x32xf32, #tpu.memory_space<vmem>>) attributes {dimension_semantics = [#tpu.dimension_semantics<parallel>], iteration_bounds = array<i64: 1>, scalar_prefetch = 0 : i64, scratch_operands = 0 : i64, tpu.core_type = #tpu.core_type<tc>, window_params = [{transform_indices = @transform_0, window_bounds = array<i64: 32, 64>}, {pipeline_mode = #tpu.pipeline_mode<synchronous>, transform_indices = @transform_1, window_bounds = array<i64: 64, 32>}, {pipeline_mode = #tpu.pipeline_mode<synchronous>, transform_indices = @transform_2, window_bounds = array<i64: 1, 32>}, {transform_indices = @transform_3, window_bounds = array<i64: 32, 32>}]} {
    %c0 = arith.constant 0 : index
    %c0_0 = arith.constant 0 : index
    %0 = vector.load %arg1[%c0, %c0_0] : memref<32x64xf32, #tpu.memory_space<vmem>>, vector<32x64xf32>
    %1 = arith.truncf %0 : vector<32x64xf32> to vector<32x64xbf16>
    %c0_1 = arith.constant 0 : index
    %c0_2 = arith.constant 0 : index
    %2 = vector.load %arg2[%c0_1, %c0_2] : memref<64x32xbf16, #tpu.memory_space<vmem>>, vector<64x32xbf16>
    %cst = arith.constant dense<0.000000e+00> : vector<32x32xf32>
    %3 = tpu.matmul %1, %2, %cst {dimension_numbers = #tpu.dot_dimension_numbers<[1], [0], [0], [1], [0, 0, 1, 1], [], []>} : vector<32x64xbf16>, vector<64x32xbf16>, vector<32x32xf32> -> vector<32x32xf32>
    %c0_3 = arith.constant 0 : index
    %c0_4 = arith.constant 0 : index
    %4 = vector.load %arg3[%c0_3, %c0_4] : memref<1x32xf32, #tpu.memory_space<vmem>>, vector<1x32xf32>
    %5 = vector.broadcast %4 : vector<1x32xf32> to vector<32x32xf32>
    %6 = arith.addf %3, %5 : vector<32x32xf32>
    %c0_5 = arith.constant 0 : index
    %c0_6 = arith.constant 0 : index
    %7 = vector.load %arg4[%c0_5, %c0_6] : memref<32x32xf32, #tpu.memory_space<vmem>>, vector<32x32xf32>
    tpu.vector_store %arg4[%c0_5, %c0_6], %6 {strides = array<i32>} : memref<32x32xf32, #tpu.memory_space<vmem>>, vector<32x32xf32>,
    return
  }
  func.func @transform_0(%arg0: i32) -> (i32, i32) {
    %c0_i32 = arith.constant 0 : i32
    %c0_i32_0 = arith.constant 0 : i32
    return %arg0, %c0_i32 : i32, i32
  }
  func.func @transform_1(%arg0: i32) -> (i32, i32) {
    %c0_i32 = arith.constant 0 : i32
    %c0_i32_0 = arith.constant 0 : i32
    %c0_i32_1 = arith.constant 0 : i32
    return %c0_i32, %c0_i32_0 : i32, i32
  }
  func.func @transform_2(%arg0: i32) -> (i32, i32) {
    %c0_i32 = arith.constant 0 : i32
    %c0_i32_0 = arith.constant 0 : i32
    %c0_i32_1 = arith.constant 0 : i32
    return %c0_i32, %c0_i32_0 : i32, i32
  }
  func.func @transform_3(%arg0: i32) -> (i32, i32) {
    %c0_i32 = arith.constant 0 : i32
    %c0_i32_0 = arith.constant 0 : i32
    return %arg0, %c0_i32 : i32, i32
  }
}

module attributes {stable_mosaic.version = 11 : i64} {
  func.func @_transformer_block_kernel(%arg0: i32, %arg1: memref<1x24x32xbf16, #tpu.memory_space<vmem>>, %arg2: memref<32x96xbf16, #tpu.memory_space<vmem>>, %arg3: memref<1x96xf32, #tpu.memory_space<vmem>>, %arg4: memref<1x8xf32, #tpu.memory_space<vmem>>, %arg5: memref<1x8xf32, #tpu.memory_space<vmem>>, %arg6: memref<1x8xf32, #tpu.memory_space<vmem>>, %arg7: memref<1x8xf32, #tpu.memory_space<vmem>>, %arg8: memref<32x32xbf16, #tpu.memory_space<vmem>>, %arg9: memref<1x32xf32, #tpu.memory_space<vmem>>, %arg10: memref<1x32xf32, #tpu.memory_space<vmem>>, %arg11: memref<1x32xf32, #tpu.memory_space<vmem>>, %arg12: memref<32x64xbf16, #tpu.memory_space<vmem>>, %arg13: memref<1x64xf32, #tpu.memory_space<vmem>>, %arg14: memref<64x32xbf16, #tpu.memory_space<vmem>>, %arg15: memref<1x32xf32, #tpu.memory_space<vmem>>, %arg16: memref<1x32xf32, #tpu.memory_space<vmem>>, %arg17: memref<1x32xf32, #tpu.memory_space<vmem>>, %arg18: memref<1x24x32xbf16, #tpu.memory_space<vmem>>) attributes {dimension_semantics = [#tpu.dimension_semantics<parallel>], iteration_bounds = array<i64: 2>, scalar_prefetch = 0 : i64, scratch_operands = 0 : i64, tpu.core_type = #tpu.core_type<tc>, window_params = [{transform_indices = @transform_0, window_bounds = array<i64: 1, 24, 32>}, {pipeline_mode = #tpu.pipeline_mode<synchronous>, transform_indices = @transform_1, window_bounds = array<i64: 32, 96>}, {pipeline_mode = #tpu.pipeline_mode<synchronous>, transform_indices = @transform_2, window_bounds = array<i64: 1, 96>}, {pipeline_mode = #tpu.pipeline_mode<synchronous>, transform_indices = @transform_3, window_bounds = array<i64: 1, 8>}, {pipeline_mode = #tpu.pipeline_mode<synchronous>, transform_indices = @transform_4, window_bounds = array<i64: 1, 8>}, {pipeline_mode = #tpu.pipeline_mode<synchronous>, transform_indices = @transform_5, window_bounds = array<i64: 1, 8>}, {pipeline_mode = #tpu.pipeline_mode<synchronous>, transform_indices = @transform_6, window_bounds = array<i64: 1, 8>}, {pipeline_mode = #tpu.pipeline_mode<synchronous>, transform_indices = @transform_7, window_bounds = array<i64: 32, 32>}, {pipeline_mode = #tpu.pipeline_mode<synchronous>, transform_indices = @transform_8, window_bounds = array<i64: 1, 32>}, {pipeline_mode = #tpu.pipeline_mode<synchronous>, transform_indices = @transform_9, window_bounds = array<i64: 1, 32>}, {pipeline_mode = #tpu.pipeline_mode<synchronous>, transform_indices = @transform_10, window_bounds = array<i64: 1, 32>}, {pipeline_mode = #tpu.pipeline_mode<synchronous>, transform_indices = @transform_11, window_bounds = array<i64: 32, 64>}, {pipeline_mode = #tpu.pipeline_mode<synchronous>, transform_indices = @transform_12, window_bounds = array<i64: 1, 64>}, {pipeline_mode = #tpu.pipeline_mode<synchronous>, transform_indices = @transform_13, window_bounds = array<i64: 64, 32>}, {pipeline_mode = #tpu.pipeline_mode<synchronous>, transform_indices = @transform_14, window_bounds = array<i64: 1, 32>}, {pipeline_mode = #tpu.pipeline_mode<synchronous>, transform_indices = @transform_15, window_bounds = array<i64: 1, 32>}, {pipeline_mode = #tpu.pipeline_mode<synchronous>, transform_indices = @transform_16, window_bounds = array<i64: 1, 32>}, {transform_indices = @transform_17, window_bounds = array<i64: 1, 24, 32>}]} {
    %c0 = arith.constant 0 : index
    %c0_0 = arith.constant 0 : index
    %c0_1 = arith.constant 0 : index
    %0 = vector.load %arg1[%c0, %c0_0, %c0_1] : memref<1x24x32xbf16, #tpu.memory_space<vmem>>, vector<1x24x32xbf16>
    %1 = vector.shape_cast %0 : vector<1x24x32xbf16> to vector<24x32xbf16>
    %2 = arith.extf %1 : vector<24x32xbf16> to vector<24x32xf32>
    %3 = arith.truncf %2 : vector<24x32xf32> to vector<24x32xbf16>
    %c0_2 = arith.constant 0 : index
    %c0_3 = arith.constant 0 : index
    %4 = vector.load %arg2[%c0_2, %c0_3] : memref<32x96xbf16, #tpu.memory_space<vmem>>, vector<32x96xbf16>
    %cst = arith.constant dense<0.000000e+00> : vector<24x96xf32>
    %5 = tpu.matmul %3, %4, %cst {dimension_numbers = #tpu.dot_dimension_numbers<[1], [0], [0], [1], [0, 0, 1, 1], [], []>} : vector<24x32xbf16>, vector<32x96xbf16>, vector<24x96xf32> -> vector<24x96xf32>
    %c0_4 = arith.constant 0 : index
    %c0_5 = arith.constant 0 : index
    %6 = vector.load %arg3[%c0_4, %c0_5] : memref<1x96xf32, #tpu.memory_space<vmem>>, vector<1x96xf32>
    %7 = vector.broadcast %6 : vector<1x96xf32> to vector<24x96xf32>
    %8 = arith.addf %5, %7 : vector<24x96xf32>
    %9 = vector.extract_strided_slice %8 {offsets = [0, 0], sizes = [24, 32], strides = [1, 1]} : vector<24x96xf32> to vector<24x32xf32>
    %10 = vector.shape_cast %9 : vector<24x32xf32> to vector<24x4x8xf32>
    %11 = vector.extract_strided_slice %8 {offsets = [0, 32], sizes = [24, 32], strides = [1, 1]} : vector<24x96xf32> to vector<24x32xf32>
    %12 = vector.shape_cast %11 : vector<24x32xf32> to vector<24x4x8xf32>
    %13 = vector.extract_strided_slice %8 {offsets = [0, 64], sizes = [24, 32], strides = [1, 1]} : vector<24x96xf32> to vector<24x32xf32>
    %14 = vector.shape_cast %13 : vector<24x32xf32> to vector<24x4x8xf32>
    %c0_6 = arith.constant 0 : index
    %c0_7 = arith.constant 0 : index
    %15 = vector.load %arg4[%c0_6, %c0_7] : memref<1x8xf32, #tpu.memory_space<vmem>>, vector<1x8xf32>
    %16 = vector.shape_cast %15 : vector<1x8xf32> to vector<1x1x8xf32>
    %cst_8 = arith.constant 0.353553385 : f32
    %17 = vector.broadcast %cst_8 : f32 to vector<1x1x8xf32>
    %18 = arith.mulf %16, %17 : vector<1x1x8xf32>
    %c0_9 = arith.constant 0 : index
    %c0_10 = arith.constant 0 : index
    %19 = vector.load %arg5[%c0_9, %c0_10] : memref<1x8xf32, #tpu.memory_space<vmem>>, vector<1x8xf32>
    %20 = vector.shape_cast %19 : vector<1x8xf32> to vector<1x1x8xf32>
    %cst_11 = arith.constant 0.353553385 : f32
    %21 = vector.broadcast %cst_11 : f32 to vector<1x1x8xf32>
    %22 = arith.mulf %20, %21 : vector<1x1x8xf32>
    %cst_12 = arith.constant dense<0.000000e+00> : vector<24x4xf32>
    %23 = vector.multi_reduction <add>, %10, %cst_12 [2] : vector<24x4x8xf32> to vector<24x4xf32>
    %24 = vector.shape_cast %23 : vector<24x4xf32> to vector<24x4x1xf32>
    %cst_13 = arith.constant 8.000000e+00 : f32
    %25 = vector.broadcast %cst_13 : f32 to vector<24x4x1xf32>
    %26 = arith.divf %24, %25 : vector<24x4x1xf32>
    %27 = vector.broadcast %26 : vector<24x4x1xf32> to vector<24x4x8xf32>
    %28 = arith.subf %10, %27 : vector<24x4x8xf32>
    %29 = arith.mulf %28, %28 : vector<24x4x8xf32>
    %cst_14 = arith.constant dense<0.000000e+00> : vector<24x4xf32>
    %30 = vector.multi_reduction <add>, %29, %cst_14 [2] : vector<24x4x8xf32> to vector<24x4xf32>
    %31 = vector.shape_cast %30 : vector<24x4xf32> to vector<24x4x1xf32>
    %cst_15 = arith.constant 8.000000e+00 : f32
    %32 = vector.broadcast %cst_15 : f32 to vector<24x4x1xf32>
    %33 = arith.divf %31, %32 : vector<24x4x1xf32>
    %34 = vector.broadcast %26 : vector<24x4x1xf32> to vector<24x4x8xf32>
    %35 = arith.subf %10, %34 : vector<24x4x8xf32>
    %cst_16 = arith.constant 9.99999974E-6 : f32
    %36 = vector.broadcast %cst_16 : f32 to vector<24x4x1xf32>
    %37 = arith.addf %33, %36 : vector<24x4x1xf32>
    %38 = math.rsqrt %37 : vector<24x4x1xf32>
    %39 = vector.broadcast %38 : vector<24x4x1xf32> to vector<24x4x8xf32>
    %40 = arith.mulf %35, %39 : vector<24x4x8xf32>
    %41 = vector.broadcast %18 : vector<1x1x8xf32> to vector<24x4x8xf32>
    %42 = arith.mulf %40, %41 : vector<24x4x8xf32>
    %43 = vector.broadcast %22 : vector<1x1x8xf32> to vector<24x4x8xf32>
    %44 = arith.addf %42, %43 : vector<24x4x8xf32>
    %c0_17 = arith.constant 0 : index
    %c0_18 = arith.constant 0 : index
    %45 = vector.load %arg6[%c0_17, %c0_18] : memref<1x8xf32, #tpu.memory_space<vmem>>, vector<1x8xf32>
    %46 = vector.shape_cast %45 : vector<1x8xf32> to vector<1x1x8xf32>
    %c0_19 = arith.constant 0 : index
    %c0_20 = arith.constant 0 : index
    %47 = vector.load %arg7[%c0_19, %c0_20] : memref<1x8xf32, #tpu.memory_space<vmem>>, vector<1x8xf32>
    %48 = vector.shape_cast %47 : vector<1x8xf32> to vector<1x1x8xf32>
    %cst_21 = arith.constant dense<0.000000e+00> : vector<24x4xf32>
    %49 = vector.multi_reduction <add>, %12, %cst_21 [2] : vector<24x4x8xf32> to vector<24x4xf32>
    %50 = vector.shape_cast %49 : vector<24x4xf32> to vector<24x4x1xf32>
    %cst_22 = arith.constant 8.000000e+00 : f32
    %51 = vector.broadcast %cst_22 : f32 to vector<24x4x1xf32>
    %52 = arith.divf %50, %51 : vector<24x4x1xf32>
    %53 = vector.broadcast %52 : vector<24x4x1xf32> to vector<24x4x8xf32>
    %54 = arith.subf %12, %53 : vector<24x4x8xf32>
    %55 = arith.mulf %54, %54 : vector<24x4x8xf32>
    %cst_23 = arith.constant dense<0.000000e+00> : vector<24x4xf32>
    %56 = vector.multi_reduction <add>, %55, %cst_23 [2] : vector<24x4x8xf32> to vector<24x4xf32>
    %57 = vector.shape_cast %56 : vector<24x4xf32> to vector<24x4x1xf32>
    %cst_24 = arith.constant 8.000000e+00 : f32
    %58 = vector.broadcast %cst_24 : f32 to vector<24x4x1xf32>
    %59 = arith.divf %57, %58 : vector<24x4x1xf32>
    %60 = vector.broadcast %52 : vector<24x4x1xf32> to vector<24x4x8xf32>
    %61 = arith.subf %12, %60 : vector<24x4x8xf32>
    %cst_25 = arith.constant 9.99999974E-6 : f32
    %62 = vector.broadcast %cst_25 : f32 to vector<24x4x1xf32>
    %63 = arith.addf %59, %62 : vector<24x4x1xf32>
    %64 = math.rsqrt %63 : vector<24x4x1xf32>
    %65 = vector.broadcast %64 : vector<24x4x1xf32> to vector<24x4x8xf32>
    %66 = arith.mulf %61, %65 : vector<24x4x8xf32>
    %67 = vector.broadcast %46 : vector<1x1x8xf32> to vector<24x4x8xf32>
    %68 = arith.mulf %66, %67 : vector<24x4x8xf32>
    %69 = vector.broadcast %48 : vector<1x1x8xf32> to vector<24x4x8xf32>
    %70 = arith.addf %68, %69 : vector<24x4x8xf32>
    %71 = arith.truncf %44 : vector<24x4x8xf32> to vector<24x4x8xbf16>
    %72 = arith.truncf %70 : vector<24x4x8xf32> to vector<24x4x8xbf16>
    "tpu.trace_start"() <{level = 10 : i32, message = "qhd,khd->hqk"}> : () -> ()
    %cst_26 = arith.constant dense<0.000000e+00> : vector<4x24x24xf32>
    %73 = tpu.matmul %71, %72, %cst_26 {dimension_numbers = #tpu.dot_dimension_numbers<[2], [2], [0], [0], [0, 1, 0, 0, 1, 0], [1], [1]>} : vector<24x4x8xbf16>, vector<24x4x8xbf16>, vector<4x24x24xf32> -> vector<4x24x24xf32>
    "tpu.trace_stop"() : () -> ()
    %74 = tpu.iota {dimensions = array<i32: 2>} : vector<1x1x24xi32>
    %c17_i32 = arith.constant 17 : i32
    %75 = vector.broadcast %c17_i32 : i32 to vector<1x1x24xi32>
    %76 = arith.cmpi slt, %74, %75 : vector<1x1x24xi32>
    %cst_27 = arith.constant -1.000000e+30 : f32
    %77 = vector.shape_cast %76 : vector<1x1x24xi1> to vector<1x1x24xi1>
    %78 = vector.broadcast %77 : vector<1x1x24xi1> to vector<4x24x24xi1>
    %79 = vector.broadcast %cst_27 : f32 to vector<4x24x24xf32>
    %80 = arith.select %78, %73, %79 : vector<4x24x24xi1>, vector<4x24x24xf32>
    %cst_28 = arith.constant dense<0xFF800000> : vector<4x24xf32>
    %81 = vector.multi_reduction <maximumf>, %80, %cst_28 [2] : vector<4x24x24xf32> to vector<4x24xf32>
    %82 = vector.shape_cast %81 : vector<4x24xf32> to vector<4x24x1xf32>
    %83 = vector.broadcast %82 : vector<4x24x1xf32> to vector<4x24x24xf32>
    %84 = arith.subf %80, %83 : vector<4x24x24xf32>
    %85 = math.exp %84 : vector<4x24x24xf32>
    %cst_29 = arith.constant dense<0.000000e+00> : vector<4x24xf32>
    %86 = vector.multi_reduction <add>, %85, %cst_29 [2] : vector<4x24x24xf32> to vector<4x24xf32>
    %87 = vector.shape_cast %86 : vector<4x24xf32> to vector<4x24x1xf32>
    %88 = tpu.reciprocal %87 {approx = true} : vector<4x24x1xf32> -> vector<4x24x1xf32>
    %89 = vector.broadcast %88 : vector<4x24x1xf32> to vector<4x24x24xf32>
    %90 = arith.mulf %85, %89 : vector<4x24x24xf32>
    %91 = arith.truncf %90 : vector<4x24x24xf32> to vector<4x24x24xbf16>
    %92 = arith.truncf %14 : vector<24x4x8xf32> to vector<24x4x8xbf16>
    "tpu.trace_start"() <{level = 10 : i32, message = "hqk,khd->qhd"}> : () -> ()
    %cst_30 = arith.constant dense<0.000000e+00> : vector<4x8x24xf32>
    %93 = tpu.matmul %92, %91, %cst_30 {dimension_numbers = #tpu.dot_dimension_numbers<[0], [2], [2], [1], [0, 1, 0, 2, 1, 1], [1], [0]>} : vector<24x4x8xbf16>, vector<4x24x24xbf16>, vector<4x8x24xf32> -> vector<4x8x24xf32>
    %94 = tpu.transpose %93, [2, 0, 1] : vector<4x8x24xf32> -> vector<24x4x8xf32>
    "tpu.trace_stop"() : () -> ()
    %95 = vector.shape_cast %94 : vector<24x4x8xf32> to vector<24x32xf32>
    %96 = arith.truncf %95 : vector<24x32xf32> to vector<24x32xbf16>
    %c0_31 = arith.constant 0 : index
    %c0_32 = arith.constant 0 : index
    %97 = vector.load %arg8[%c0_31, %c0_32] : memref<32x32xbf16, #tpu.memory_space<vmem>>, vector<32x32xbf16>
    %cst_33 = arith.constant dense<0.000000e+00> : vector<24x32xf32>
    %98 = tpu.matmul %96, %97, %cst_33 {dimension_numbers = #tpu.dot_dimension_numbers<[1], [0], [0], [1], [0, 0, 1, 1], [], []>} : vector<24x32xbf16>, vector<32x32xbf16>, vector<24x32xf32> -> vector<24x32xf32>
    %c0_34 = arith.constant 0 : index
    %c0_35 = arith.constant 0 : index
    %99 = vector.load %arg9[%c0_34, %c0_35] : memref<1x32xf32, #tpu.memory_space<vmem>>, vector<1x32xf32>
    %100 = vector.broadcast %99 : vector<1x32xf32> to vector<24x32xf32>
    %101 = arith.addf %98, %100 : vector<24x32xf32>
    %c0_36 = arith.constant 0 : index
    %c0_37 = arith.constant 0 : index
    %102 = vector.load %arg10[%c0_36, %c0_37] : memref<1x32xf32, #tpu.memory_space<vmem>>, vector<1x32xf32>
    %c0_38 = arith.constant 0 : index
    %c0_39 = arith.constant 0 : index
    %103 = vector.load %arg11[%c0_38, %c0_39] : memref<1x32xf32, #tpu.memory_space<vmem>>, vector<1x32xf32>
    %cst_40 = arith.constant dense<0.000000e+00> : vector<24xf32>
    %104 = vector.multi_reduction <add>, %101, %cst_40 [1] : vector<24x32xf32> to vector<24xf32>
    %105 = vector.shape_cast %104 : vector<24xf32> to vector<24x1xf32>
    %cst_41 = arith.constant 3.200000e+01 : f32
    %106 = vector.broadcast %cst_41 : f32 to vector<24x1xf32>
    %107 = arith.divf %105, %106 : vector<24x1xf32>
    %108 = vector.broadcast %107 : vector<24x1xf32> to vector<24x32xf32>
    %109 = arith.subf %101, %108 : vector<24x32xf32>
    %110 = arith.mulf %109, %109 : vector<24x32xf32>
    %cst_42 = arith.constant dense<0.000000e+00> : vector<24xf32>
    %111 = vector.multi_reduction <add>, %110, %cst_42 [1] : vector<24x32xf32> to vector<24xf32>
    %112 = vector.shape_cast %111 : vector<24xf32> to vector<24x1xf32>
    %cst_43 = arith.constant 3.200000e+01 : f32
    %113 = vector.broadcast %cst_43 : f32 to vector<24x1xf32>
    %114 = arith.divf %112, %113 : vector<24x1xf32>
    %115 = vector.broadcast %107 : vector<24x1xf32> to vector<24x32xf32>
    %116 = arith.subf %101, %115 : vector<24x32xf32>
    %cst_44 = arith.constant 9.99999974E-6 : f32
    %117 = vector.broadcast %cst_44 : f32 to vector<24x1xf32>
    %118 = arith.addf %114, %117 : vector<24x1xf32>
    %119 = math.rsqrt %118 : vector<24x1xf32>
    %120 = vector.broadcast %119 : vector<24x1xf32> to vector<24x32xf32>
    %121 = arith.mulf %116, %120 : vector<24x32xf32>
    %122 = vector.broadcast %102 : vector<1x32xf32> to vector<24x32xf32>
    %123 = arith.mulf %121, %122 : vector<24x32xf32>
    %124 = vector.broadcast %103 : vector<1x32xf32> to vector<24x32xf32>
    %125 = arith.addf %123, %124 : vector<24x32xf32>
    %126 = arith.addf %125, %2 : vector<24x32xf32>
    %127 = arith.truncf %126 : vector<24x32xf32> to vector<24x32xbf16>
    %c0_45 = arith.constant 0 : index
    %c0_46 = arith.constant 0 : index
    %128 = vector.load %arg12[%c0_45, %c0_46] : memref<32x64xbf16, #tpu.memory_space<vmem>>, vector<32x64xbf16>
    %cst_47 = arith.constant dense<0.000000e+00> : vector<24x64xf32>
    %129 = tpu.matmul %127, %128, %cst_47 {dimension_numbers = #tpu.dot_dimension_numbers<[1], [0], [0], [1], [0, 0, 1, 1], [], []>} : vector<24x32xbf16>, vector<32x64xbf16>, vector<24x64xf32> -> vector<24x64xf32>
    %c0_48 = arith.constant 0 : index
    %c0_49 = arith.constant 0 : index
    %130 = vector.load %arg13[%c0_48, %c0_49] : memref<1x64xf32, #tpu.memory_space<vmem>>, vector<1x64xf32>
    %131 = vector.broadcast %130 : vector<1x64xf32> to vector<24x64xf32>
    %132 = arith.addf %129, %131 : vector<24x64xf32>
    %133 = arith.mulf %132, %132 : vector<24x64xf32>
    %134 = arith.mulf %132, %133 : vector<24x64xf32>
    %cst_50 = arith.constant 4.471500e-02 : f32
    %135 = vector.broadcast %cst_50 : f32 to vector<24x64xf32>
    %136 = arith.mulf %135, %134 : vector<24x64xf32>
    %137 = arith.addf %132, %136 : vector<24x64xf32>
    %cst_51 = arith.constant 0.797884583 : f32
    %138 = vector.broadcast %cst_51 : f32 to vector<24x64xf32>
    %139 = arith.mulf %138, %137 : vector<24x64xf32>
    %140 = math.tanh %139 : vector<24x64xf32>
    %cst_52 = arith.constant 1.000000e+00 : f32
    %141 = vector.broadcast %cst_52 : f32 to vector<24x64xf32>
    %142 = arith.addf %141, %140 : vector<24x64xf32>
    %cst_53 = arith.constant 5.000000e-01 : f32
    %143 = vector.broadcast %cst_53 : f32 to vector<24x64xf32>
    %144 = arith.mulf %143, %142 : vector<24x64xf32>
    %145 = arith.mulf %132, %144 : vector<24x64xf32>
    %146 = arith.truncf %145 : vector<24x64xf32> to vector<24x64xbf16>
    %c0_54 = arith.constant 0 : index
    %c0_55 = arith.constant 0 : index
    %147 = vector.load %arg14[%c0_54, %c0_55] : memref<64x32xbf16, #tpu.memory_space<vmem>>, vector<64x32xbf16>
    %cst_56 = arith.constant dense<0.000000e+00> : vector<24x32xf32>
    %148 = tpu.matmul %146, %147, %cst_56 {dimension_numbers = #tpu.dot_dimension_numbers<[1], [0], [0], [1], [0, 0, 1, 1], [], []>} : vector<24x64xbf16>, vector<64x32xbf16>, vector<24x32xf32> -> vector<24x32xf32>
    %c0_57 = arith.constant 0 : index
    %c0_58 = arith.constant 0 : index
    %149 = vector.load %arg15[%c0_57, %c0_58] : memref<1x32xf32, #tpu.memory_space<vmem>>, vector<1x32xf32>
    %150 = vector.broadcast %149 : vector<1x32xf32> to vector<24x32xf32>
    %151 = arith.addf %148, %150 : vector<24x32xf32>
    %c0_59 = arith.constant 0 : index
    %c0_60 = arith.constant 0 : index
    %152 = vector.load %arg16[%c0_59, %c0_60] : memref<1x32xf32, #tpu.memory_space<vmem>>, vector<1x32xf32>
    %c0_61 = arith.constant 0 : index
    %c0_62 = arith.constant 0 : index
    %153 = vector.load %arg17[%c0_61, %c0_62] : memref<1x32xf32, #tpu.memory_space<vmem>>, vector<1x32xf32>
    %cst_63 = arith.constant dense<0.000000e+00> : vector<24xf32>
    %154 = vector.multi_reduction <add>, %151, %cst_63 [1] : vector<24x32xf32> to vector<24xf32>
    %155 = vector.shape_cast %154 : vector<24xf32> to vector<24x1xf32>
    %cst_64 = arith.constant 3.200000e+01 : f32
    %156 = vector.broadcast %cst_64 : f32 to vector<24x1xf32>
    %157 = arith.divf %155, %156 : vector<24x1xf32>
    %158 = vector.broadcast %157 : vector<24x1xf32> to vector<24x32xf32>
    %159 = arith.subf %151, %158 : vector<24x32xf32>
    %160 = arith.mulf %159, %159 : vector<24x32xf32>
    %cst_65 = arith.constant dense<0.000000e+00> : vector<24xf32>
    %161 = vector.multi_reduction <add>, %160, %cst_65 [1] : vector<24x32xf32> to vector<24xf32>
    %162 = vector.shape_cast %161 : vector<24xf32> to vector<24x1xf32>
    %cst_66 = arith.constant 3.200000e+01 : f32
    %163 = vector.broadcast %cst_66 : f32 to vector<24x1xf32>
    %164 = arith.divf %162, %163 : vector<24x1xf32>
    %165 = vector.broadcast %157 : vector<24x1xf32> to vector<24x32xf32>
    %166 = arith.subf %151, %165 : vector<24x32xf32>
    %cst_67 = arith.constant 9.99999974E-6 : f32
    %167 = vector.broadcast %cst_67 : f32 to vector<24x1xf32>
    %168 = arith.addf %164, %167 : vector<24x1xf32>
    %169 = math.rsqrt %168 : vector<24x1xf32>
    %170 = vector.broadcast %169 : vector<24x1xf32> to vector<24x32xf32>
    %171 = arith.mulf %166, %170 : vector<24x32xf32>
    %172 = vector.broadcast %152 : vector<1x32xf32> to vector<24x32xf32>
    %173 = arith.mulf %171, %172 : vector<24x32xf32>
    %174 = vector.broadcast %153 : vector<1x32xf32> to vector<24x32xf32>
    %175 = arith.addf %173, %174 : vector<24x32xf32>
    %176 = arith.addf %175, %126 : vector<24x32xf32>
    %177 = tpu.iota {dimensions = array<i32: 0>} : vector<24x1xi32>
    %c17_i32_68 = arith.constant 17 : i32
    %178 = vector.broadcast %c17_i32_68 : i32 to vector<24x1xi32>
    %179 = arith.cmpi slt, %177, %178 : vector<24x1xi32>
    %cst_69 = arith.constant 0.000000e+00 : f32
    %180 = vector.shape_cast %179 : vector<24x1xi1> to vector<24x1xi1>
    %181 = vector.broadcast %180 : vector<24x1xi1> to vector<24x32xi1>
    %182 = vector.broadcast %cst_69 : f32 to vector<24x32xf32>
    %183 = arith.select %181, %176, %182 : vector<24x32xi1>, vector<24x32xf32>
    %184 = arith.truncf %183 : vector<24x32xf32> to vector<24x32xbf16>
    %c0_70 = arith.constant 0 : index
    %c0_71 = arith.constant 0 : index
    %c0_72 = arith.constant 0 : index
    %185 = vector.load %arg18[%c0_70, %c0_71, %c0_72] : memref<1x24x32xbf16, #tpu.memory_space<vmem>>, vector<1x24x32xbf16>
    %186 = vector.shape_cast %185 : vector<1x24x32xbf16> to vector<24x32xbf16>
    %187 = vector.shape_cast %184 : vector<24x32xbf16> to vector<1x24x32xbf16>
    tpu.vector_store %arg18[%c0_70, %c0_71, %c0_72], %187 {strides = array<i32>} : memref<1x24x32xbf16, #tpu.memory_space<vmem>>, vector<1x24x32xbf16>,
    return
  }
  func.func @transform_0(%arg0: i32) -> (i32, i32, i32) {
    %c0_i32 = arith.constant 0 : i32
    %c0_i32_0 = arith.constant 0 : i32
    %c0_i32_1 = arith.constant 0 : i32
    return %arg0, %c0_i32, %c0_i32_0 : i32, i32, i32
  }
  func.func @transform_1(%arg0: i32) -> (i32, i32) {
    %c0_i32 = arith.constant 0 : i32
    %c0_i32_0 = arith.constant 0 : i32
    %c0_i32_1 = arith.constant 0 : i32
    return %c0_i32, %c0_i32_0 : i32, i32
  }
  func.func @transform_2(%arg0: i32) -> (i32, i32) {
    %c0_i32 = arith.constant 0 : i32
    %c0_i32_0 = arith.constant 0 : i32
    %c0_i32_1 = arith.constant 0 : i32
    return %c0_i32, %c0_i32_0 : i32, i32
  }
  func.func @transform_3(%arg0: i32) -> (i32, i32) {
    %c0_i32 = arith.constant 0 : i32
    %c0_i32_0 = arith.constant 0 : i32
    %c0_i32_1 = arith.constant 0 : i32
    return %c0_i32, %c0_i32_0 : i32, i32
  }
  func.func @transform_4(%arg0: i32) -> (i32, i32) {
    %c0_i32 = arith.constant 0 : i32
    %c0_i32_0 = arith.constant 0 : i32
    %c0_i32_1 = arith.constant 0 : i32
    return %c0_i32, %c0_i32_0 : i32, i32
  }
  func.func @transform_5(%arg0: i32) -> (i32, i32) {
    %c0_i32 = arith.constant 0 : i32
    %c0_i32_0 = arith.constant 0 : i32
    %c0_i32_1 = arith.constant 0 : i32
    return %c0_i32, %c0_i32_0 : i32, i32
  }
  func.func @transform_6(%arg0: i32) -> (i32, i32) {
    %c0_i32 = arith.constant 0 : i32
    %c0_i32_0 = arith.constant 0 : i32
    %c0_i32_1 = arith.constant 0 : i32
    return %c0_i32, %c0_i32_0 : i32, i32
  }
  func.func @transform_7(%arg0: i32) -> (i32, i32) {
    %c0_i32 = arith.constant 0 : i32
    %c0_i32_0 = arith.constant 0 : i32
    %c0_i32_1 = arith.constant 0 : i32
    return %c0_i32, %c0_i32_0 : i32, i32
  }
  func.func @transform_8(%arg0: i32) -> (i32, i32) {
    %c0_i32 = arith.constant 0 : i32
    %c0_i32_0 = arith.constant 0 : i32
    %c0_i32_1 = arith.constant 0 : i32
    return %c0_i32, %c0_i32_0 : i32, i32
  }
  func.func @transform_9(%arg0: i32) -> (i32, i32) {
    %c0_i32 = arith.constant 0 : i32
    %c0_i32_0 = arith.constant 0 : i32
    %c0_i32_1 = arith.constant 0 : i32
    return %c0_i32, %c0_i32_0 : i32, i32
  }
  func.func @transform_10(%arg0: i32) -> (i32, i32) {
    %c0_i32 = arith.constant 0 : i32
    %c0_i32_0 = arith.constant 0 : i32
    %c0_i32_1 = arith.constant 0 : i32
    return %c0_i32, %c0_i32_0 : i32, i32
  }
  func.func @transform_11(%arg0: i32) -> (i32, i32) {
    %c0_i32 = arith.constant 0 : i32
    %c0_i32_0 = arith.constant 0 : i32
    %c0_i32_1 = arith.constant 0 : i32
    return %c0_i32, %c0_i32_0 : i32, i32
  }
  func.func @transform_12(%arg0: i32) -> (i32, i32) {
    %c0_i32 = arith.constant 0 : i32
    %c0_i32_0 = arith.constant 0 : i32
    %c0_i32_1 = arith.constant 0 : i32
    return %c0_i32, %c0_i32_0 : i32, i32
  }
  func.func @transform_13(%arg0: i32) -> (i32, i32) {
    %c0_i32 = arith.constant 0 : i32
    %c0_i32_0 = arith.constant 0 : i32
    %c0_i32_1 = arith.constant 0 : i32
    return %c0_i32, %c0_i32_0 : i32, i32
  }
  func.func @transform_14(%arg0: i32) -> (i32, i32) {
    %c0_i32 = arith.constant 0 : i32
    %c0_i32_0 = arith.constant 0 : i32
    %c0_i32_1 = arith.constant 0 : i32
    return %c0_i32, %c0_i32_0 : i32, i32
  }
  func.func @transform_15(%arg0: i32) -> (i32, i32) {
    %c0_i32 = arith.constant 0 : i32
    %c0_i32_0 = arith.constant 0 : i32
    %c0_i32_1 = arith.constant 0 : i32
    return %c0_i32, %c0_i32_0 : i32, i32
  }
  func.func @transform_16(%arg0: i32) -> (i32, i32) {
    %c0_i32 = arith.constant 0 : i32
    %c0_i32_0 = arith.constant 0 : i32
    %c0_i32_1 = arith.constant 0 : i32
    return %c0_i32, %c0_i32_0 : i32, i32
  }
  func.func @transform_17(%arg0: i32) -> (i32, i32, i32) {
    %c0_i32 = arith.constant 0 : i32
    %c0_i32_0 = arith.constant 0 : i32
    %c0_i32_1 = arith.constant 0 : i32
    return %arg0, %c0_i32, %c0_i32_0 : i32, i32, i32
  }
}

</mosaic_0001>

<llo_original>
// kernel: vit_backbone_forward.3
$region0: #{vit_backbone_forward.3}
  #allocation0 [shape = 'u32[]', space=smem, size = 0x4, offset = 0x4, fixed_abs, tag = 'smem constant byte address 0x4 - core index']
  #allocation1 [shape = 'u32[72,128]{1,0:T(1,128)}', space=vmem, size = 0x9000, scoped, tag = 'internal scratch']
  %s0 = inlined_call_operand.vmem [shape: f32[32,64], index: 0, kind: input, shape index: {}]
  %s1 = inlined_call_operand.vmem [shape: bf16[64,32], index: 1, kind: input, shape index: {}]
  %s2 = inlined_call_operand.vmem [shape: f32[1,32], index: 2, kind: input, shape index: {}]
  %s3 = inlined_call_operand.vmem [shape: f32[32,32], index: 3, kind: output, shape index: {}]
  %s4 = sld [smem:[#allocation0]]
  $region22: #{vit_backbone_forward.3} parent=0
    _
  %s6 = ssub.s32 1, %s4
  %s7 = scalar_select 0, %s6, %s4
  // Predicated region
  $region2: #{vit_backbone_forward.3} parent=0 // pred_check
    _
  $region3: #{vit_backbone_forward.3} parent=0 // pred_check_branch
    %9 = sbr.rel (0) target = $region5
  $region4: #{vit_backbone_forward.3} parent=0 // pred_region
    _
  $region5: #{vit_backbone_forward.3} parent=0 // pred_fallthru
    _
  // Predicated region
  $region6: #{vit_backbone_forward.3} parent=0 // pred_check
    _
  $region7: #{vit_backbone_forward.3} parent=0 // pred_check_branch
    %11 = sbr.rel (0) target = $region9
  $region8: #{vit_backbone_forward.3} parent=0 // pred_region
    _
  $region9: #{vit_backbone_forward.3} parent=0 // pred_fallthru
    _
  // Predicated region
  $region10: #{vit_backbone_forward.3} parent=0 // pred_check
    _
  $region11: #{vit_backbone_forward.3} parent=0 // pred_check_branch
    %13 = sbr.rel (0) target = $region13
  $region12: #{vit_backbone_forward.3} parent=0 // pred_region
    _
  $region13: #{vit_backbone_forward.3} parent=0 // pred_fallthru
    _
  %v15 = vld [vmem:[%s0] sm:$0xff]
  %v16 = vld [vmem:[%s0 + $0x8] sm:$0xff]
  %v17 = vld [vmem:[%s0 + $0x10] sm:$0xff]
  %v18 = vld [vmem:[%s0 + $0x18] sm:$0xff]
  %v19 = vpack.c.bf16 %v16, %v15
  %v20 = vpack.c.bf16 %v18, %v17
  %v21 = vld [vmem:[%s1] sm:$0xf]
  %v22 = vld [vmem:[%s1 + $0x4] sm:$0xf]
  %v23 = vld [vmem:[%s1 + $0x8] sm:$0xf]
  %v24 = vld [vmem:[%s1 + $0xc] sm:$0xf]
  %v25 = vld [vmem:[%s1 + $0x10] sm:$0xf]
  %v26 = vld [vmem:[%s1 + $0x14] sm:$0xf]
  %v27 = vld [vmem:[%s1 + $0x18] sm:$0xf]
  %v28 = vld [vmem:[%s1 + $0x1c] sm:$0xf]
  %v29 = vld [vmem:[%s2] sm:$0x1]
  %v31 = vperm.slane %v29, 0
  %v41 = vunpack.c.l.b16 %v21
  %v42 = vunpack.c.l.b16 %v22
  %v43 = vunpack.c.l.b16 %v23
  %v44 = vunpack.c.l.b16 %v24
  %v45 = vunpack.c.l.b16 %v25
  %v46 = vunpack.c.l.b16 %v26
  %v47 = vunpack.c.l.b16 %v27
  %v48 = vunpack.c.l.b16 %v28
  %v49 = vpack.c.b16 %v42, %v41
  %v50 = vpack.c.b16 %v44, %v43
  %v51 = vpack.c.b16 %v46, %v45
  %v52 = vpack.c.b16 %v48, %v47
  %vm57 = vcmask 523264
  %v59 = vsel %vm57, %v19, 0
  %v62 = vsel %vm57, %v20, 0
  %64 = vmatpush.bf16.msra.mxu0 0
  %65 = vmatpush.bf16.msra.mxu0 0
  %66 = vmatpush.bf16.msra.mxu0 0
  %67 = vmatpush.bf16.msra.mxu0 0
  %68 = vmatpush.bf16.msra.mxu0 %v52
  %69 = vmatpush.bf16.msra.mxu0 %v51
  %70 = vmatpush.bf16.msra.mxu0 %v50
  %71 = vmatpush.bf16.msra.mxu0 %v49
  %72 = vmatmul.bf16.gmra.mxu0 %v59
  %v73 = vpop.f32.mrf.mxu0
  %v74 = vadd.f32 %v31, %v73
  %v75 = vpop.f32.mrf.mxu0
  %v76 = vadd.f32 %v31, %v75
  %77 = vmatmul.bf16.gmra.mxu0 %v62
  %v78 = vpop.f32.mrf.mxu0
  %v79 = vadd.f32 %v31, %v78
  %v80 = vpop.f32.mrf.mxu0
  %v81 = vadd.f32 %v31, %v80
  %82 = vdwg.mxu0
  %vm83 = vcmask 261120
  %84 = vst.msk [vmem:[%s3] sm:$0xff] %vm83, %v74
  %85 = vst.msk [vmem:[%s3 + $0x8] sm:$0xff] %vm83, %v76
  %86 = vst.msk [vmem:[%s3 + $0x10] sm:$0xff] %vm83, %v79
  %87 = vst.msk [vmem:[%s3 + $0x18] sm:$0xff] %vm83, %v81
  // Predicated region
  $region14: #{vit_backbone_forward.3} parent=0 // pred_check
    _
  $region15: #{vit_backbone_forward.3} parent=0 // pred_check_branch
    %89 = sbr.rel (0) target = $region17
  $region16: #{vit_backbone_forward.3} parent=0 // pred_region
    _
  $region17: #{vit_backbone_forward.3} parent=0 // pred_fallthru
    _
  // Predicated region
  $region18: #{vit_backbone_forward.3} parent=0 // pred_check
    _
  $region19: #{vit_backbone_forward.3} parent=0 // pred_check_branch
    %91 = sbr.rel (0) target = $region21
  $region20: #{vit_backbone_forward.3} parent=0 // pred_region
    _
  $region21: #{vit_backbone_forward.3} parent=0 // pred_fallthru
    _

// kernel: vit_backbone_forward.4
$region0: #{vit_backbone_forward.4}
  #allocation0 [shape = 'u32[]', space=smem, size = 0x4, offset = 0x4, fixed_abs, tag = 'smem constant byte address 0x4 - core index']
  #allocation1 [shape = 'u32[72,128]{1,0:T(1,128)}', space=vmem, size = 0x9000, scoped, tag = 'internal scratch']
  %s0 = inlined_call_operand.vmem [shape: bf16[2,24,32], index: 0, kind: input, shape index: {}, may-alias: {0,17}]
  %s1 = inlined_call_operand.vmem [shape: bf16[32,96], index: 1, kind: input, shape index: {}]
  %s2 = inlined_call_operand.vmem [shape: f32[1,96], index: 2, kind: input, shape index: {}]
  %s3 = inlined_call_operand.vmem [shape: f32[1,8], index: 3, kind: input, shape index: {}]
  %s4 = inlined_call_operand.vmem [shape: f32[1,8], index: 4, kind: input, shape index: {}]
  %s5 = inlined_call_operand.vmem [shape: f32[1,8], index: 5, kind: input, shape index: {}]
  %s6 = inlined_call_operand.vmem [shape: f32[1,8], index: 6, kind: input, shape index: {}]
  %s7 = inlined_call_operand.vmem [shape: bf16[32,32], index: 7, kind: input, shape index: {}]
  %s8 = inlined_call_operand.vmem [shape: f32[1,32], index: 8, kind: input, shape index: {}]
  %s9 = inlined_call_operand.vmem [shape: f32[1,32], index: 9, kind: input, shape index: {}]
  %s10 = inlined_call_operand.vmem [shape: f32[1,32], index: 10, kind: input, shape index: {}]
  %s11 = inlined_call_operand.vmem [shape: bf16[32,64], index: 11, kind: input, shape index: {}]
  %s12 = inlined_call_operand.vmem [shape: f32[1,64], index: 12, kind: input, shape index: {}]
  %s13 = inlined_call_operand.vmem [shape: bf16[64,32], index: 13, kind: input, shape index: {}]
  %s14 = inlined_call_operand.vmem [shape: f32[1,32], index: 14, kind: input, shape index: {}]
  %s15 = inlined_call_operand.vmem [shape: f32[1,32], index: 15, kind: input, shape index: {}]
  %s16 = inlined_call_operand.vmem [shape: f32[1,32], index: 16, kind: input, shape index: {}]
  %s17 = inlined_call_operand.vmem [shape: bf16[2,24,32], index: 17, kind: output, shape index: {}, may-alias: {0,17}]
  %s18 = sld [smem:[#allocation0]]
  $region101: #{vit_backbone_forward.4} parent=0
    _
  %s20 = ssub.s32 1, %s18
  %s21 = scalar_select 0, %s20, %s18
  loop: start=0, step=1, limit=4
  $region2: #{vit_backbone_forward.4} parent=0 // loop_pre_header
    _
  $region3: #{vit_backbone_forward.4} parent=0 // loop_header
    %s23 = sphi 0, %s27
    %p24 = scmp.ge.s32.totalorder %s23, 4
    %s33 = sphi 0, %s35
    %s36 = sphi 0, %s33
    %s37 = sphi 0, %s36
    %s53 = sphi 0, %s37
    %s57 = sphi 0, %s57
    %s59 = sphi 0, %s57
    %s60 = sphi 0, %s59
    %s74 = sphi 0, %s60
    %s78 = sphi 0, %s78
    %s80 = sphi 0, %s78
    %s81 = sphi 0, %s80
    %s95 = sphi 0, %s81
    %s99 = sphi 0, %s99
    %s101 = sphi 0, %s99
    %s102 = sphi 0, %s101
    %s116 = sphi 0, %s102
    %s120 = sphi 0, %s120
    %s122 = sphi 0, %s120
    %s123 = sphi 0, %s122
    %s137 = sphi 0, %s123
    %s141 = sphi 0, %s141
    %s143 = sphi 0, %s141
    %s144 = sphi 0, %s143
    %s158 = sphi 0, %s144
    %s162 = sphi 0, %s162
    %s164 = sphi 0, %s162
    %s165 = sphi 0, %s164
    %s179 = sphi 0, %s165
    %s183 = sphi 0, %s183
    %s185 = sphi 0, %s183
    %s186 = sphi 0, %s185
    %s200 = sphi 0, %s186
    %s204 = sphi 0, %s204
    %s206 = sphi 0, %s204
    %s207 = sphi 0, %s206
    %s221 = sphi 0, %s207
    %s225 = sphi 0, %s225
    %s227 = sphi 0, %s225
    %s228 = sphi 0, %s227
    %s242 = sphi 0, %s228
    %s246 = sphi 0, %s246
    %s248 = sphi 0, %s246
    %s249 = sphi 0, %s248
    %s263 = sphi 0, %s249
    %s267 = sphi 0, %s267
    %s269 = sphi 0, %s267
    %s270 = sphi 0, %s269
    %s284 = sphi 0, %s270
    %s288 = sphi 0, %s288
    %s290 = sphi 0, %s288
    %s291 = sphi 0, %s290
    %s305 = sphi 0, %s291
    %s309 = sphi 0, %s309
    %s311 = sphi 0, %s309
    %s312 = sphi 0, %s311
    %s326 = sphi 0, %s312
    %s330 = sphi 0, %s330
    %s332 = sphi 0, %s330
    %s333 = sphi 0, %s332
    %s347 = sphi 0, %s333
    %s351 = sphi 0, %s351
    %s353 = sphi 0, %s351
    %s354 = sphi 0, %s353
    %s368 = sphi 0, %s354
    %s372 = sphi 0, %s372
    %s374 = sphi 0, %s372
    %s375 = sphi 0, %s374
    %s389 = sphi 0, %s375
    %s395 = sphi 0, %s397
    %s398 = sphi 0, %s395
    %s399 = sphi 0, %s398
    %s415 = sphi 0, %s399
  $region4: #{vit_backbone_forward.4} parent=0 // loop_header_branch
    %26 = sbr.rel (%p24) target = $region8
  $region5: #{vit_backbone_forward.4} parent=0 // loop_body
    %s28 = ssub.s32 %s23, 1
    %s29 = ssub.s32 %s23, 2
    %s30 = sadd.s32 %s23, 1
    %s31 = ssub.s32 %s23, %s30
    %p32 = scmp.eq.s32.totalorder %s31, 0
    %s34 = sadd.s32 %s33, 1
    %s35 = scalar_select %p32, %s33, %s34
    %p38 = pneg %p32
    %p39 = scmp.eq.s32.totalorder %s23, 1
    %p40 = por %p38, %p39
    %p41 = scmp.ne.s32.totalorder %s33, %s36
    %p42 = scmp.eq.s32.totalorder %s23, 0
    %p43 = por %p41, %p42
    %p44 = scmp.ne.s32.totalorder %s33, %s36
    %p45 = scmp.eq.s32.totalorder %s28, 1
    %p46 = por %p44, %p45
    %p47 = scmp.ne.s32.totalorder %s36, %s37
    %p48 = scmp.eq.s32.totalorder %s28, 0
    %p49 = por %p47, %p48
    %p50 = scmp.ne.s32.totalorder %s36, %s37
    %p51 = scmp.eq.s32.totalorder %s29, 1
    %p52 = por %p50, %p51
    %p54 = scmp.ne.s32.totalorder %s37, %s53
    %p55 = scmp.eq.s32.totalorder %s29, 0
    %p56 = por %p54, %p55
    %s58 = sadd.s32 %s57, 1
    %p61 = scmp.eq.s32.totalorder %s23, 1
    %p62 = scmp.ne.s32.totalorder %s57, %s59
    %p63 = scmp.eq.s32.totalorder %s23, 0
    %p64 = por %p62, %p63
    %p65 = scmp.ne.s32.totalorder %s57, %s59
    %p66 = scmp.eq.s32.totalorder %s28, 1
    %p67 = por %p65, %p66
    %p68 = scmp.ne.s32.totalorder %s59, %s60
    %p69 = scmp.eq.s32.totalorder %s28, 0
    %p70 = por %p68, %p69
    %p71 = scmp.ne.s32.totalorder %s59, %s60
    %p72 = scmp.eq.s32.totalorder %s29, 1
    %p73 = por %p71, %p72
    %p75 = scmp.ne.s32.totalorder %s60, %s74
    %p76 = scmp.eq.s32.totalorder %s29, 0
    %p77 = por %p75, %p76
    %s79 = sadd.s32 %s78, 1
    %p82 = scmp.eq.s32.totalorder %s23, 1
    %p83 = scmp.ne.s32.totalorder %s78, %s80
    %p84 = scmp.eq.s32.totalorder %s23, 0
    %p85 = por %p83, %p84
    %p86 = scmp.ne.s32.totalorder %s78, %s80
    %p87 = scmp.eq.s32.totalorder %s28, 1
    %p88 = por %p86, %p87
    %p89 = scmp.ne.s32.totalorder %s80, %s81
    %p90 = scmp.eq.s32.totalorder %s28, 0
    %p91 = por %p89, %p90
    %p92 = scmp.ne.s32.totalorder %s80, %s81
    %p93 = scmp.eq.s32.totalorder %s29, 1
    %p94 = por %p92, %p93
    %p96 = scmp.ne.s32.totalorder %s81, %s95
    %p97 = scmp.eq.s32.totalorder %s29, 0
    %p98 = por %p96, %p97
    %s100 = sadd.s32 %s99, 1
    %p103 = scmp.eq.s32.totalorder %s23, 1
    %p104 = scmp.ne.s32.totalorder %s99, %s101
    %p105 = scmp.eq.s32.totalorder %s23, 0
    %p106 = por %p104, %p105
    %p107 = scmp.ne.s32.totalorder %s99, %s101
    %p108 = scmp.eq.s32.totalorder %s28, 1
    %p109 = por %p107, %p108
    %p110 = scmp.ne.s32.totalorder %s101, %s102
    %p111 = scmp.eq.s32.totalorder %s28, 0
    %p112 = por %p110, %p111
    %p113 = scmp.ne.s32.totalorder %s101, %s102
    %p114 = scmp.eq.s32.totalorder %s29, 1
    %p115 = por %p113, %p114
    %p117 = scmp.ne.s32.totalorder %s102, %s116
    %p118 = scmp.eq.s32.totalorder %s29, 0
    %p119 = por %p117, %p118
    %s121 = sadd.s32 %s120, 1
    %p124 = scmp.eq.s32.totalorder %s23, 1
    %p125 = scmp.ne.s32.totalorder %s120, %s122
    %p126 = scmp.eq.s32.totalorder %s23, 0
    %p127 = por %p125, %p126
    %p128 = scmp.ne.s32.totalorder %s120, %s122
    %p129 = scmp.eq.s32.totalorder %s28, 1
    %p130 = por %p128, %p129
    %p131 = scmp.ne.s32.totalorder %s122, %s123
    %p132 = scmp.eq.s32.totalorder %s28, 0
    %p133 = por %p131, %p132
    %p134 = scmp.ne.s32.totalorder %s122, %s123
    %p135 = scmp.eq.s32.totalorder %s29, 1
    %p136 = por %p134, %p135
    %p138 = scmp.ne.s32.totalorder %s123, %s137
    %p139 = scmp.eq.s32.totalorder %s29, 0
    %p140 = por %p138, %p139
    %s142 = sadd.s32 %s141, 1
    %p145 = scmp.eq.s32.totalorder %s23, 1
    %p146 = scmp.ne.s32.totalorder %s141, %s143
    %p147 = scmp.eq.s32.totalorder %s23, 0
    %p148 = por %p146, %p147
    %p149 = scmp.ne.s32.totalorder %s141, %s143
    %p150 = scmp.eq.s32.totalorder %s28, 1
    %p151 = por %p149, %p150
    %p152 = scmp.ne.s32.totalorder %s143, %s144
    %p153 = scmp.eq.s32.totalorder %s28, 0
    %p154 = por %p152, %p153
    %p155 = scmp.ne.s32.totalorder %s143, %s144
    %p156 = scmp.eq.s32.totalorder %s29, 1
    %p157 = por %p155, %p156
    %p159 = scmp.ne.s32.totalorder %s144, %s158
    %p160 = scmp.eq.s32.totalorder %s29, 0
    %p161 = por %p159, %p160
    %s163 = sadd.s32 %s162, 1
    %p166 = scmp.eq.s32.totalorder %s23, 1
    %p167 = scmp.ne.s32.totalorder %s162, %s164
    %p168 = scmp.eq.s32.totalorder %s23, 0
    %p169 = por %p167, %p168
    %p170 = scmp.ne.s32.totalorder %s162, %s164
    %p171 = scmp.eq.s32.totalorder %s28, 1
    %p172 = por %p170, %p171
    %p173 = scmp.ne.s32.totalorder %s164, %s165
    %p174 = scmp.eq.s32.totalorder %s28, 0
    %p175 = por %p173, %p174
    %p176 = scmp.ne.s32.totalorder %s164, %s165
    %p177 = scmp.eq.s32.totalorder %s29, 1
    %p178 = por %p176, %p177
    %p180 = scmp.ne.s32.totalorder %s165, %s179
    %p181 = scmp.eq.s32.totalorder %s29, 0
    %p182 = por %p180, %p181
    %s184 = sadd.s32 %s183, 1
    %p187 = scmp.eq.s32.totalorder %s23, 1
    %p188 = scmp.ne.s32.totalorder %s183, %s185
    %p189 = scmp.eq.s32.totalorder %s23, 0
    %p190 = por %p188, %p189
    %p191 = scmp.ne.s32.totalorder %s183, %s185
    %p192 = scmp.eq.s32.totalorder %s28, 1
    %p193 = por %p191, %p192
    %p194 = scmp.ne.s32.totalorder %s185, %s186
    %p195 = scmp.eq.s32.totalorder %s28, 0
    %p196 = por %p194, %p195
    %p197 = scmp.ne.s32.totalorder %s185, %s186
    %p198 = scmp.eq.s32.totalorder %s29, 1
    %p199 = por %p197, %p198
    %p201 = scmp.ne.s32.totalorder %s186, %s200
    %p202 = scmp.eq.s32.totalorder %s29, 0
    %p203 = por %p201, %p202
    %s205 = sadd.s32 %s204, 1
    %p208 = scmp.eq.s32.totalorder %s23, 1
    %p209 = scmp.ne.s32.totalorder %s204, %s206
    %p210 = scmp.eq.s32.totalorder %s23, 0
    %p211 = por %p209, %p210
    %p212 = scmp.ne.s32.totalorder %s204, %s206
    %p213 = scmp.eq.s32.totalorder %s28, 1
    %p214 = por %p212, %p213
    %p215 = scmp.ne.s32.totalorder %s206, %s207
    %p216 = scmp.eq.s32.totalorder %s28, 0
    %p217 = por %p215, %p216
    %p218 = scmp.ne.s32.totalorder %s206, %s207
    %p219 = scmp.eq.s32.totalorder %s29, 1
    %p220 = por %p218, %p219
    %p222 = scmp.ne.s32.totalorder %s207, %s221
    %p223 = scmp.eq.s32.totalorder %s29, 0
    %p224 = por %p222, %p223
    %s226 = sadd.s32 %s225, 1
    %p229 = scmp.eq.s32.totalorder %s23, 1
    %p230 = scmp.ne.s32.totalorder %s225, %s227
    %p231 = scmp.eq.s32.totalorder %s23, 0
    %p232 = por %p230, %p231
    %p233 = scmp.ne.s32.totalorder %s225, %s227
    %p234 = scmp.eq.s32.totalorder %s28, 1
    %p235 = por %p233, %p234
    %p236 = scmp.ne.s32.totalorder %s227, %s228
    %p237 = scmp.eq.s32.totalorder %s28, 0
    %p238 = por %p236, %p237
    %p239 = scmp.ne.s32.totalorder %s227, %s228
    %p240 = scmp.eq.s32.totalorder %s29, 1
    %p241 = por %p239, %p240
    %p243 = scmp.ne.s32.totalorder %s228, %s242
    %p244 = scmp.eq.s32.totalorder %s29, 0
    %p245 = por %p243, %p244
    %s247 = sadd.s32 %s246, 1
    %p250 = scmp.eq.s32.totalorder %s23, 1
    %p251 = scmp.ne.s32.totalorder %s246, %s248
    %p252 = scmp.eq.s32.totalorder %s23, 0
    %p253 = por %p251, %p252
    %p254 = scmp.ne.s32.totalorder %s246, %s248
    %p255 = scmp.eq.s32.totalorder %s28, 1
    %p256 = por %p254, %p255
    %p257 = scmp.ne.s32.totalorder %s248, %s249
    %p258 = scmp.eq.s32.totalorder %s28, 0
    %p259 = por %p257, %p258
    %p260 = scmp.ne.s32.totalorder %s248, %s249
    %p261 = scmp.eq.s32.totalorder %s29, 1
    %p262 = por %p260, %p261
    %p264 = scmp.ne.s32.totalorder %s249, %s263
    %p265 = scmp.eq.s32.totalorder %s29, 0
    %p266 = por %p264, %p265
    %s268 = sadd.s32 %s267, 1
    %p271 = scmp.eq.s32.totalorder %s23, 1
    %p272 = scmp.ne.s32.totalorder %s267, %s269
    %p273 = scmp.eq.s32.totalorder %s23, 0
    %p274 = por %p272, %p273
    %p275 = scmp.ne.s32.totalorder %s267, %s269
    %p276 = scmp.eq.s32.totalorder %s28, 1
    %p277 = por %p275, %p276
    %p278 = scmp.ne.s32.totalorder %s269, %s270
    %p279 = scmp.eq.s32.totalorder %s28, 0
    %p280 = por %p278, %p279
    %p281 = scmp.ne.s32.totalorder %s269, %s270
    %p282 = scmp.eq.s32.totalorder %s29, 1
    %p283 = por %p281, %p282
    %p285 = scmp.ne.s32.totalorder %s270, %s284
    %p286 = scmp.eq.s32.totalorder %s29, 0
    %p287 = por %p285, %p286
    %s289 = sadd.s32 %s288, 1
    %p292 = scmp.eq.s32.totalorder %s23, 1
    %p293 = scmp.ne.s32.totalorder %s288, %s290
    %p294 = scmp.eq.s32.totalorder %s23, 0
    %p295 = por %p293, %p294
    %p296 = scmp.ne.s32.totalorder %s288, %s290
    %p297 = scmp.eq.s32.totalorder %s28, 1
    %p298 = por %p296, %p297
    %p299 = scmp.ne.s32.totalorder %s290, %s291
    %p300 = scmp.eq.s32.totalorder %s28, 0
    %p301 = por %p299, %p300
    %p302 = scmp.ne.s32.totalorder %s290, %s291
    %p303 = scmp.eq.s32.totalorder %s29, 1
    %p304 = por %p302, %p303
    %p306 = scmp.ne.s32.totalorder %s291, %s305
    %p307 = scmp.eq.s32.totalorder %s29, 0
    %p308 = por %p306, %p307
    %s310 = sadd.s32 %s309, 1
    %p313 = scmp.eq.s32.totalorder %s23, 1
    %p314 = scmp.ne.s32.totalorder %s309, %s311
    %p315 = scmp.eq.s32.totalorder %s23, 0
    %p316 = por %p314, %p315
    %p317 = scmp.ne.s32.totalorder %s309, %s311
    %p318 = scmp.eq.s32.totalorder %s28, 1
    %p319 = por %p317, %p318
    %p320 = scmp.ne.s32.totalorder %s311, %s312
    %p321 = scmp.eq.s32.totalorder %s28, 0
    %p322 = por %p320, %p321
    %p323 = scmp.ne.s32.totalorder %s311, %s312
    %p324 = scmp.eq.s32.totalorder %s29, 1
    %p325 = por %p323, %p324
    %p327 = scmp.ne.s32.totalorder %s312, %s326
    %p328 = scmp.eq.s32.totalorder %s29, 0
    %p329 = por %p327, %p328
    %s331 = sadd.s32 %s330, 1
    %p334 = scmp.eq.s32.totalorder %s23, 1
    %p335 = scmp.ne.s32.totalorder %s330, %s332
    %p336 = scmp.eq.s32.totalorder %s23, 0
    %p337 = por %p335, %p336
    %p338 = scmp.ne.s32.totalorder %s330, %s332
    %p339 = scmp.eq.s32.totalorder %s28, 1
    %p340 = por %p338, %p339
    %p341 = scmp.ne.s32.totalorder %s332, %s333
    %p342 = scmp.eq.s32.totalorder %s28, 0
    %p343 = por %p341, %p342
    %p344 = scmp.ne.s32.totalorder %s332, %s333
    %p345 = scmp.eq.s32.totalorder %s29, 1
    %p346 = por %p344, %p345
    %p348 = scmp.ne.s32.totalorder %s333, %s347
    %p349 = scmp.eq.s32.totalorder %s29, 0
    %p350 = por %p348, %p349
    %s352 = sadd.s32 %s351, 1
    %p355 = scmp.eq.s32.totalorder %s23, 1
    %p356 = scmp.ne.s32.totalorder %s351, %s353
    %p357 = scmp.eq.s32.totalorder %s23, 0
    %p358 = por %p356, %p357
    %p359 = scmp.ne.s32.totalorder %s351, %s353
    %p360 = scmp.eq.s32.totalorder %s28, 1
    %p361 = por %p359, %p360
    %p362 = scmp.ne.s32.totalorder %s353, %s354
    %p363 = scmp.eq.s32.totalorder %s28, 0
    %p364 = por %p362, %p363
    %p365 = scmp.ne.s32.totalorder %s353, %s354
    %p366 = scmp.eq.s32.totalorder %s29, 1
    %p367 = por %p365, %p366
    %p369 = scmp.ne.s32.totalorder %s354, %s368
    %p370 = scmp.eq.s32.totalorder %s29, 0
    %p371 = por %p369, %p370
    %s373 = sadd.s32 %s372, 1
    %p376 = scmp.eq.s32.totalorder %s23, 1
    %p377 = scmp.ne.s32.totalorder %s372, %s374
    %p378 = scmp.eq.s32.totalorder %s23, 0
    %p379 = por %p377, %p378
    %p380 = scmp.ne.s32.totalorder %s372, %s374
    %p381 = scmp.eq.s32.totalorder %s28, 1
    %p382 = por %p380, %p381
    %p383 = scmp.ne.s32.totalorder %s374, %s375
    %p384 = scmp.eq.s32.totalorder %s28, 0
    %p385 = por %p383, %p384
    %p386 = scmp.ne.s32.totalorder %s374, %s375
    %p387 = scmp.eq.s32.totalorder %s29, 1
    %p388 = por %p386, %p387
    %p390 = scmp.ne.s32.totalorder %s375, %s389
    %p391 = scmp.eq.s32.totalorder %s29, 0
    %p392 = por %p390, %p391
    %s393 = ssub.s32 %s23, %s30
    %p394 = scmp.eq.s32.totalorder %s393, 0
    %s396 = sadd.s32 %s395, 1
    %s397 = scalar_select %p394, %s395, %s396
    %p400 = pneg %p394
    %p401 = scmp.eq.s32.totalorder %s23, 1
    %p402 = por %p400, %p401
    %p403 = scmp.ne.s32.totalorder %s395, %s398
    %p404 = scmp.eq.s32.totalorder %s23, 0
    %p405 = por %p403, %p404
    %p406 = scmp.ne.s32.totalorder %s395, %s398
    %p407 = scmp.eq.s32.totalorder %s28, 1
    %p408 = por %p406, %p407
    %p409 = scmp.ne.s32.totalorder %s398, %s399
    %p410 = scmp.eq.s32.totalorder %s28, 0
    %p411 = por %p409, %p410
    %p412 = scmp.ne.s32.totalorder %s398, %s399
    %p413 = scmp.eq.s32.totalorder %s29, 1
    %p414 = por %p412, %p413
    %p416 = scmp.ne.s32.totalorder %s399, %s415
    %p417 = scmp.eq.s32.totalorder %s29, 0
    %p418 = por %p416, %p417
    %p419 = scmp.le.s32.totalorder 1, %s23
    %p420 = scmp.lt.s32.totalorder %s23, 3
    %p421 = pnand %p419, %p420
    %p422 = pneg %p421
    // Predicated region
    $region9: #{vit_backbone_forward.4} parent=5 // pred_check
      _
    $region10: #{vit_backbone_forward.4} parent=5 // pred_check_branch
      %424 = sbr.rel (%p421) target = $region12
    $region11: #{vit_backbone_forward.4} parent=5 // pred_region
      %s425 = ssub.s32 %s23, 1
      // Predicated region
      $region13: #{vit_backbone_forward.4} parent=11 // pred_check
        %p426 = pneg %p70
      $region14: #{vit_backbone_forward.4} parent=11 // pred_check_branch
        %428 = sbr.rel (%p426) target = $region16
      $region15: #{vit_backbone_forward.4} parent=11 // pred_region
        _
      $region16: #{vit_backbone_forward.4} parent=11 // pred_fallthru
        _
      // Predicated region
      $region17: #{vit_backbone_forward.4} parent=11 // pred_check
        %p429 = pneg %p91
      $region18: #{vit_backbone_forward.4} parent=11 // pred_check_branch
        %431 = sbr.rel (%p429) target = $region20
      $region19: #{vit_backbone_forward.4} parent=11 // pred_region
        _
      $region20: #{vit_backbone_forward.4} parent=11 // pred_fallthru
        _
      // Predicated region
      $region21: #{vit_backbone_forward.4} parent=11 // pred_check
        %p432 = pneg %p112
      $region22: #{vit_backbone_forward.4} parent=11 // pred_check_branch
        %434 = sbr.rel (%p432) target = $region24
      $region23: #{vit_backbone_forward.4} parent=11 // pred_region
        _
      $region24: #{vit_backbone_forward.4} parent=11 // pred_fallthru
        _
      // Predicated region
      $region25: #{vit_backbone_forward.4} parent=11 // pred_check
        %p435 = pneg %p133
      $region26: #{vit_backbone_forward.4} parent=11 // pred_check_branch
        %437 = sbr.rel (%p435) target = $region28
      $region27: #{vit_backbone_forward.4} parent=11 // pred_region
        _
      $region28: #{vit_backbone_forward.4} parent=11 // pred_fallthru
        _
      // Predicated region
      $region29: #{vit_backbone_forward.4} parent=11 // pred_check
        %p438 = pneg %p154
      $region30: #{vit_backbone_forward.4} parent=11 // pred_check_branch
        %440 = sbr.rel (%p438) target = $region32
      $region31: #{vit_backbone_forward.4} parent=11 // pred_region
        _
      $region32: #{vit_backbone_forward.4} parent=11 // pred_fallthru
        _
      // Predicated region
      $region33: #{vit_backbone_forward.4} parent=11 // pred_check
        %p441 = pneg %p175
      $region34: #{vit_backbone_forward.4} parent=11 // pred_check_branch
        %443 = sbr.rel (%p441) target = $region36
      $region35: #{vit_backbone_forward.4} parent=11 // pred_region
        _
      $region36: #{vit_backbone_forward.4} parent=11 // pred_fallthru
        _
      // Predicated region
      $region37: #{vit_backbone_forward.4} parent=11 // pred_check
        %p444 = pneg %p196
      $region38: #{vit_backbone_forward.4} parent=11 // pred_check_branch
        %446 = sbr.rel (%p444) target = $region40
      $region39: #{vit_backbone_forward.4} parent=11 // pred_region
        _
      $region40: #{vit_backbone_forward.4} parent=11 // pred_fallthru
        _
      // Predicated region
      $region41: #{vit_backbone_forward.4} parent=11 // pred_check
        %p447 = pneg %p217
      $region42: #{vit_backbone_forward.4} parent=11 // pred_check_branch
        %449 = sbr.rel (%p447) target = $region44
      $region43: #{vit_backbone_forward.4} parent=11 // pred_region
        _
      $region44: #{vit_backbone_forward.4} parent=11 // pred_fallthru
        _
      // Predicated region
      $region45: #{vit_backbone_forward.4} parent=11 // pred_check
        %p450 = pneg %p238
      $region46: #{vit_backbone_forward.4} parent=11 // pred_check_branch
        %452 = sbr.rel (%p450) target = $region48
      $region47: #{vit_backbone_forward.4} parent=11 // pred_region
        _
      $region48: #{vit_backbone_forward.4} parent=11 // pred_fallthru
        _
      // Predicated region
      $region49: #{vit_backbone_forward.4} parent=11 // pred_check
        %p453 = pneg %p259
      $region50: #{vit_backbone_forward.4} parent=11 // pred_check_branch
        %455 = sbr.rel (%p453) target = $region52
      $region51: #{vit_backbone_forward.4} parent=11 // pred_region
        _
      $region52: #{vit_backbone_forward.4} parent=11 // pred_fallthru
        _
      // Predicated region
      $region53: #{vit_backbone_forward.4} parent=11 // pred_check
        %p456 = pneg %p280
      $region54: #{vit_backbone_forward.4} parent=11 // pred_check_branch
        %458 = sbr.rel (%p456) target = $region56
      $region55: #{vit_backbone_forward.4} parent=11 // pred_region
        _
      $region56: #{vit_backbone_forward.4} parent=11 // pred_fallthru
        _
      // Predicated region
      $region57: #{vit_backbone_forward.4} parent=11 // pred_check
        %p459 = pneg %p301
      $region58: #{vit_backbone_forward.4} parent=11 // pred_check_branch
        %461 = sbr.rel (%p459) target = $region60
      $region59: #{vit_backbone_forward.4} parent=11 // pred_region
        _
      $region60: #{vit_backbone_forward.4} parent=11 // pred_fallthru
        _
      // Predicated region
      $region61: #{vit_backbone_forward.4} parent=11 // pred_check
        %p462 = pneg %p322
      $region62: #{vit_backbone_forward.4} parent=11 // pred_check_branch
        %464 = sbr.rel (%p462) target = $region64
      $region63: #{vit_backbone_forward.4} parent=11 // pred_region
        _
      $region64: #{vit_backbone_forward.4} parent=11 // pred_fallthru
        _
      // Predicated region
      $region65: #{vit_backbone_forward.4} parent=11 // pred_check
        %p465 = pneg %p343
      $region66: #{vit_backbone_forward.4} parent=11 // pred_check_branch
        %467 = sbr.rel (%p465) target = $region68
      $region67: #{vit_backbone_forward.4} parent=11 // pred_region
        _
      $region68: #{vit_backbone_forward.4} parent=11 // pred_fallthru
        _
      // Predicated region
      $region69: #{vit_backbone_forward.4} parent=11 // pred_check
        %p468 = pneg %p364
      $region70: #{vit_backbone_forward.4} parent=11 // pred_check_branch
        %470 = sbr.rel (%p468) target = $region72
      $region71: #{vit_backbone_forward.4} parent=11 // pred_region
        _
      $region72: #{vit_backbone_forward.4} parent=11 // pred_fallthru
        _
      // Predicated region
      $region73: #{vit_backbone_forward.4} parent=11 // pred_check
        %p471 = pneg %p385
      $region74: #{vit_backbone_forward.4} parent=11 // pred_check_branch
        %473 = sbr.rel (%p471) target = $region76
      $region75: #{vit_backbone_forward.4} parent=11 // pred_region
        _
      $region76: #{vit_backbone_forward.4} parent=11 // pred_fallthru
        _
    $region12: #{vit_backbone_forward.4} parent=5 // pred_fallthru
      _
    %p474 = scmp.lt.s32.totalorder %s23, 2
    // Predicated region
    $region77: #{vit_backbone_forward.4} parent=5 // pred_check
      %p475 = pneg %p474
    $region78: #{vit_backbone_forward.4} parent=5 // pred_check_branch
      %477 = sbr.rel (%p475) target = $region80
    $region79: #{vit_backbone_forward.4} parent=5 // pred_region
      // Predicated region
      $region81: #{vit_backbone_forward.4} parent=79 // pred_check
        %p478 = pneg %p43
      $region82: #{vit_backbone_forward.4} parent=79 // pred_check_branch
        %480 = sbr.rel (%p478) target = $region84
      $region83: #{vit_backbone_forward.4} parent=79 // pred_region
        %p481 = scmp.lt.s32.totalorder %s23, 1
        %s482 = scalar_select %p481, %s23, 1
        %s483 = smul.addr %s482, 3
        %s484 = smul.addr %s483, 4
        %s485 = scalar_lea.vmem %s0, %s484
      $region84: #{vit_backbone_forward.4} parent=79 // pred_fallthru
        _
    $region80: #{vit_backbone_forward.4} parent=5 // pred_fallthru
      _
    %p486 = scmp.le.s32.totalorder 1, %s23
    %p487 = scmp.lt.s32.totalorder %s23, 3
    %p488 = pnand %p486, %p487
    %p489 = pneg %p488
    // Predicated region
    $region85: #{vit_backbone_forward.4} parent=5 // pred_check
      _
    $region86: #{vit_backbone_forward.4} parent=5 // pred_check_branch
      %491 = sbr.rel (%p488) target = $region88
    $region87: #{vit_backbone_forward.4} parent=5 // pred_region
      %s492 = ssub.s32 %s23, 1
      %p493 = scmp.lt.s32.totalorder %s28, 1
      %s494 = scalar_select %p493, %s28, 1
      %s495 = smul.addr %s494, 3
      %s496 = smul.addr %s495, 4
      %s497 = scalar_lea.vmem %s0, %s496
      %p498 = pneg %p49
      %p499 = pneg %p46
      %p500 = pneg %p70
      %p501 = pneg %p67
      %p502 = pneg %p91
      %p503 = pneg %p88
      %p504 = pneg %p112
      %p505 = pneg %p109
      %p506 = pneg %p133
      %p507 = pneg %p130
      %p508 = pneg %p154
      %p509 = pneg %p151
      %p510 = pneg %p175
      %p511 = pneg %p172
      %p512 = pneg %p196
      %p513 = pneg %p193
      %p514 = pneg %p217
      %p515 = pneg %p214
      %p516 = pneg %p238
      %p517 = pneg %p235
      %p518 = pneg %p259
      %p519 = pneg %p256
      %p520 = pneg %p280
      %p521 = pneg %p277
      %p522 = pneg %p301
      %p523 = pneg %p298
      %p524 = pneg %p322
      %p525 = pneg %p319
      %p526 = pneg %p343
      %p527 = pneg %p340
      %p528 = pneg %p364
      %p529 = pneg %p361
      %p530 = pneg %p385
      %p531 = pneg %p382
      %p532 = pneg %p411
      %p533 = pneg %p408
      %p534 = scmp.lt.s32.totalorder %s28, 1
      %s535 = scalar_select %p534, %s28, 1
      %s536 = smul.addr %s535, 3
      %s537 = smul.addr %s536, 4
      %s538 = scalar_lea.vmem %s17, %s537
      %p539 = scmp.lt.s32.totalorder %s28, 1
      %s540 = scalar_select %p539, %s28, 1
      %s541 = smul.addr %s540, 3
      %s542 = smul.addr %s541, 4
      %s543 = scalar_lea.vmem %s0, %s542
      %p544 = scmp.lt.s32.totalorder %s28, 1
      %s545 = scalar_select %p544, %s28, 1
      %s546 = smul.addr %s545, 3
      %s547 = smul.addr %s546, 4
      %s548 = scalar_lea.vmem %s17, %s547
      %v550 = vld [vmem:[%s543] sm:$0xf]
      %v551 = vld [vmem:[%s543 + $0x4] sm:$0xf]
      %v552 = vld [vmem:[%s543 + $0x8] sm:$0xf]
      %v553 = vunpack.c.l.bf16 %v550
      %v554 = vunpack.c.l.bf16 %v551
      %v555 = vunpack.c.l.bf16 %v552
      %v556 = vld [vmem:[%s1] sm:$0xf]
      %v557 = vld [vmem:[%s1 + $0x4] sm:$0xf]
      %v558 = vld [vmem:[%s1 + $0x8] sm:$0xf]
      %v559 = vld [vmem:[%s1 + $0xc] sm:$0xf]
      %v560 = vld [vmem:[%s2] sm:$0x1]
      %v562 = vperm.slane %v560, 0
      %v567 = vunpack.c.l.b16 %v550
      %v568 = vunpack.c.l.b16 %v551
      %v569 = vunpack.c.l.b16 %v552
      %v570 = vpack.c.b16 %v568, %v567
      %v571 = vpack.c.b16 %v569, %v569
      %v576 = vunpack.c.l.b16 %v556
      %v577 = vunpack.c.l.b16 %v557
      %v578 = vunpack.c.l.b16 %v558
      %v579 = vunpack.c.l.b16 %v559
      %v580 = vpack.c.b16 %v577, %v576
      %v581 = vpack.c.b16 %v579, %v578
      %vm584 = vcmask 261120
      %v586 = vsel %vm584, %v570, 0
      %v589 = vsel %vm584, %v571, 0
      %591 = vmatpush.bf16.msra.mxu0 0
      %592 = vmatpush.bf16.msra.mxu0 0
      %593 = vmatpush.bf16.msra.mxu0 0
      %594 = vmatpush.bf16.msra.mxu0 0
      %595 = vmatpush.bf16.msra.mxu0 0
      %596 = vmatpush.bf16.msra.mxu0 0
      %597 = vmatpush.bf16.msra.mxu0 %v581
      %598 = vmatpush.bf16.msra.mxu0 %v580
      %599 = vmatmul.bf16.gmra.mxu0 %v586
      %v600 = vpop.f32.mrf.mxu0
      %v601 = vadd.f32 %v562, %v600
      %v602 = vpop.f32.mrf.mxu0
      %v603 = vadd.f32 %v562, %v602
      %604 = vmatmul.bf16.gmra.mxu0 %v589
      %v605 = vpop.f32.mrf.mxu0
      %v606 = vadd.f32 %v562, %v605
      %v607 = vpop.f32.mrf.mxu0
      %608 = vdwg.mxu0
      %612 = vrot.lane.b32.xlu0 %v601, 120
      %v613 = vpop.permute.xlu0 %612
      %614 = vrot.lane.b32.xlu0 %v603, 120
      %v615 = vpop.permute.xlu0 %614
      %616 = vrot.lane.b32.xlu0 %v606, 120
      %v617 = vpop.permute.xlu0 %616
      %621 = vrot.lane.b32.xlu0 %v601, 112
      %v622 = vpop.permute.xlu0 %621
      %623 = vrot.lane.b32.xlu0 %v603, 112
      %v624 = vpop.permute.xlu0 %623
      %625 = vrot.lane.b32.xlu0 %v606, 112
      %v626 = vpop.permute.xlu0 %625
      %630 = vrot.lane.b32.xlu0 %v601, 104
      %v631 = vpop.permute.xlu0 %630
      %632 = vrot.lane.b32.xlu0 %v603, 104
      %v633 = vpop.permute.xlu0 %632
      %634 = vrot.lane.b32.xlu0 %v606, 104
      %v635 = vpop.permute.xlu0 %634
      %v639 = vrot.slane %v622, 4
      %vm640 = vcmask 1047556
      %v641 = vsel %vm640, %v639, %v601
      %v642 = vrot.slane %v601, 4
      %v643 = vsel %vm640, %v622, %v642
      %v645 = vunpack.c.l.s4 1983009808
      %v646 = vunpack.c.0.s8 %v645
      %v647 = vperm.slane %v641, %v646
      %v649 = vunpack.c.l.s4 1983009808
      %v650 = vunpack.c.0.s8 %v649
      %v651 = vperm.slane %v643, %v650
      %v652 = vrot.slane %v631, 4
      %v653 = vsel %vm640, %v652, %v613
      %v654 = vrot.slane %v613, 4
      %v655 = vsel %vm640, %v631, %v654
      %v657 = vunpack.c.l.s4 1983009808
      %v658 = vunpack.c.0.s8 %v657
      %v659 = vperm.slane %v653, %v658
      %v661 = vunpack.c.l.s4 1983009808
      %v662 = vunpack.c.0.s8 %v661
      %v663 = vperm.slane %v655, %v662
      %v664 = vrot.slane %v659, 4
      %v665 = vsel %vm640, %v664, %v647
      %v666 = vrot.slane %v647, 4
      %v667 = vsel %vm640, %v659, %v666
      %v669 = vunpack.c.l.s4 1934713408
      %v670 = vunpack.c.0.s8 %v669
      %v671 = vperm.slane %v665, %v670
      %v673 = vunpack.c.l.s4 1934713408
      %v674 = vunpack.c.0.s8 %v673
      %v675 = vperm.slane %v667, %v674
      %v676 = vrot.slane %v663, 4
      %v677 = vsel %vm640, %v676, %v651
      %v678 = vrot.slane %v651, 4
      %v679 = vsel %vm640, %v663, %v678
      %v681 = vunpack.c.l.s4 1934713408
      %v682 = vunpack.c.0.s8 %v681
      %v683 = vperm.slane %v677, %v682
      %v685 = vunpack.c.l.s4 1934713408
      %v686 = vunpack.c.0.s8 %v685
      %v687 = vperm.slane %v679, %v686
      %v688 = vrot.slane %v671, 4
      %v689 = vsel %vm640, 0.0, %v688
      %v690 = vrot.slane %v675, 4
      %v691 = vsel %vm640, 0.0, %v690
      %v692 = vrot.slane %v683, 4
      %v693 = vsel %vm640, 0.0, %v692
      %v694 = vrot.slane %v687, 4
      %v695 = vsel %vm640, 0.0, %v694
      %v696 = vrot.slane %v624, 4
      %v697 = vsel %vm640, %v696, %v603
      %v698 = vrot.slane %v603, 4
      %v699 = vsel %vm640, %v624, %v698
      %v701 = vunpack.c.l.s4 1983009808
      %v702 = vunpack.c.0.s8 %v701
      %v703 = vperm.slane %v697, %v702
      %v705 = vunpack.c.l.s4 1983009808
      %v706 = vunpack.c.0.s8 %v705
      %v707 = vperm.slane %v699, %v706
      %v708 = vrot.slane %v633, 4
      %v709 = vsel %vm640, %v708, %v615
      %v710 = vrot.slane %v615, 4
      %v711 = vsel %vm640, %v633, %v710
      %v713 = vunpack.c.l.s4 1983009808
      %v714 = vunpack.c.0.s8 %v713
      %v715 = vperm.slane %v709, %v714
      %v717 = vunpack.c.l.s4 1983009808
      %v718 = vunpack.c.0.s8 %v717
      %v719 = vperm.slane %v711, %v718
      %v720 = vrot.slane %v715, 4
      %v721 = vsel %vm640, %v720, %v703
      %v722 = vrot.slane %v703, 4
      %v723 = vsel %vm640, %v715, %v722
      %v725 = vunpack.c.l.s4 1934713408
      %v726 = vunpack.c.0.s8 %v725
      %v727 = vperm.slane %v721, %v726
      %v729 = vunpack.c.l.s4 1934713408
      %v730 = vunpack.c.0.s8 %v729
      %v731 = vperm.slane %v723, %v730
      %v732 = vrot.slane %v719, 4
      %v733 = vsel %vm640, %v732, %v707
      %v734 = vrot.slane %v707, 4
      %v735 = vsel %vm640, %v719, %v734
      %v737 = vunpack.c.l.s4 1934713408
      %v738 = vunpack.c.0.s8 %v737
      %v739 = vperm.slane %v733, %v738
      %v741 = vunpack.c.l.s4 1934713408
      %v742 = vunpack.c.0.s8 %v741
      %v743 = vperm.slane %v735, %v742
      %v744 = vrot.slane %v727, 4
      %v745 = vsel %vm640, 0.0, %v744
      %v746 = vrot.slane %v731, 4
      %v747 = vsel %vm640, 0.0, %v746
      %v748 = vrot.slane %v739, 4
      %v749 = vsel %vm640, 0.0, %v748
      %v750 = vrot.slane %v743, 4
      %v751 = vsel %vm640, 0.0, %v750
      %v752 = vrot.slane %v626, 4
      %v753 = vsel %vm640, %v752, %v606
      %v754 = vrot.slane %v606, 4
      %v755 = vsel %vm640, %v626, %v754
      %v757 = vunpack.c.l.s4 1983009808
      %v758 = vunpack.c.0.s8 %v757
      %v759 = vperm.slane %v753, %v758
      %v761 = vunpack.c.l.s4 1983009808
      %v762 = vunpack.c.0.s8 %v761
      %v763 = vperm.slane %v755, %v762
      %v764 = vrot.slane %v635, 4
      %v765 = vsel %vm640, %v764, %v617
      %v766 = vrot.slane %v617, 4
      %v767 = vsel %vm640, %v635, %v766
      %v769 = vunpack.c.l.s4 1983009808
      %v770 = vunpack.c.0.s8 %v769
      %v771 = vperm.slane %v765, %v770
      %v773 = vunpack.c.l.s4 1983009808
      %v774 = vunpack.c.0.s8 %v773
      %v775 = vperm.slane %v767, %v774
      %v776 = vrot.slane %v771, 4
      %v777 = vsel %vm640, %v776, %v759
      %v778 = vrot.slane %v759, 4
      %v779 = vsel %vm640, %v771, %v778
      %v781 = vunpack.c.l.s4 1934713408
      %v782 = vunpack.c.0.s8 %v781
      %v783 = vperm.slane %v777, %v782
      %v785 = vunpack.c.l.s4 1934713408
      %v786 = vunpack.c.0.s8 %v785
      %v787 = vperm.slane %v779, %v786
      %v788 = vrot.slane %v775, 4
      %v789 = vsel %vm640, %v788, %v763
      %v790 = vrot.slane %v763, 4
      %v791 = vsel %vm640, %v775, %v790
      %v793 = vunpack.c.l.s4 1934713408
      %v794 = vunpack.c.0.s8 %v793
      %v795 = vperm.slane %v789, %v794
      %v797 = vunpack.c.l.s4 1934713408
      %v798 = vunpack.c.0.s8 %v797
      %v799 = vperm.slane %v791, %v798
      %v800 = vrot.slane %v783, 4
      %v801 = vsel %vm640, 0.0, %v800
      %v802 = vrot.slane %v787, 4
      %v803 = vsel %vm640, 0.0, %v802
      %v804 = vrot.slane %v795, 4
      %v805 = vsel %vm640, 0.0, %v804
      %v806 = vrot.slane %v799, 4
      %v807 = vsel %vm640, 0.0, %v806
      %808 = vrot.lane.b32.xlu0 %v601, 96
      %v809 = vpop.permute.xlu0 %808
      %810 = vrot.lane.b32.xlu0 %v603, 96
      %v811 = vpop.permute.xlu0 %810
      %812 = vrot.lane.b32.xlu0 %v606, 96
      %v813 = vpop.permute.xlu0 %812
      %814 = vrot.lane.b32.xlu0 %v613, 96
      %v815 = vpop.permute.xlu0 %814
      %816 = vrot.lane.b32.xlu0 %v615, 96
      %v817 = vpop.permute.xlu0 %816
      %818 = vrot.lane.b32.xlu0 %v617, 96
      %v819 = vpop.permute.xlu0 %818
      %820 = vrot.lane.b32.xlu0 %v622, 96
      %v821 = vpop.permute.xlu0 %820
      %822 = vrot.lane.b32.xlu0 %v624, 96
      %v823 = vpop.permute.xlu0 %822
      %824 = vrot.lane.b32.xlu0 %v626, 96
      %v825 = vpop.permute.xlu0 %824
      %826 = vrot.lane.b32.xlu0 %v631, 96
      %v827 = vpop.permute.xlu0 %826
      %828 = vrot.lane.b32.xlu0 %v633, 96
      %v829 = vpop.permute.xlu0 %828
      %830 = vrot.lane.b32.xlu0 %v635, 96
      %v831 = vpop.permute.xlu0 %830
      %v844 = vrot.slane %v821, 4
      %v845 = vsel %vm640, %v844, %v809
      %v846 = vrot.slane %v809, 4
      %v847 = vsel %vm640, %v821, %v846
      %v849 = vunpack.c.l.s4 1983009808
      %v850 = vunpack.c.0.s8 %v849
      %v851 = vperm.slane %v845, %v850
      %v853 = vunpack.c.l.s4 1983009808
      %v854 = vunpack.c.0.s8 %v853
      %v855 = vperm.slane %v847, %v854
      %v856 = vrot.slane %v827, 4
      %v857 = vsel %vm640, %v856, %v815
      %v858 = vrot.slane %v815, 4
      %v859 = vsel %vm640, %v827, %v858
      %v861 = vunpack.c.l.s4 1983009808
      %v862 = vunpack.c.0.s8 %v861
      %v863 = vperm.slane %v857, %v862
      %v865 = vunpack.c.l.s4 1983009808
      %v866 = vunpack.c.0.s8 %v865
      %v867 = vperm.slane %v859, %v866
      %v868 = vrot.slane %v863, 4
      %v869 = vsel %vm640, %v868, %v851
      %v870 = vrot.slane %v851, 4
      %v871 = vsel %vm640, %v863, %v870
      %v873 = vunpack.c.l.s4 1934713408
      %v874 = vunpack.c.0.s8 %v873
      %v875 = vperm.slane %v869, %v874
      %v877 = vunpack.c.l.s4 1934713408
      %v878 = vunpack.c.0.s8 %v877
      %v879 = vperm.slane %v871, %v878
      %v880 = vrot.slane %v867, 4
      %v881 = vsel %vm640, %v880, %v855
      %v882 = vrot.slane %v855, 4
      %v883 = vsel %vm640, %v867, %v882
      %v885 = vunpack.c.l.s4 1934713408
      %v886 = vunpack.c.0.s8 %v885
      %v887 = vperm.slane %v881, %v886
      %v889 = vunpack.c.l.s4 1934713408
      %v890 = vunpack.c.0.s8 %v889
      %v891 = vperm.slane %v883, %v890
      %v892 = vrot.slane %v875, 4
      %v893 = vsel %vm640, 0.0, %v892
      %v894 = vrot.slane %v879, 4
      %v895 = vsel %vm640, 0.0, %v894
      %v896 = vrot.slane %v887, 4
      %v897 = vsel %vm640, 0.0, %v896
      %v898 = vrot.slane %v891, 4
      %v899 = vsel %vm640, 0.0, %v898
      %v900 = vrot.slane %v823, 4
      %v901 = vsel %vm640, %v900, %v811
      %v902 = vrot.slane %v811, 4
      %v903 = vsel %vm640, %v823, %v902
      %v905 = vunpack.c.l.s4 1983009808
      %v906 = vunpack.c.0.s8 %v905
      %v907 = vperm.slane %v901, %v906
      %v909 = vunpack.c.l.s4 1983009808
      %v910 = vunpack.c.0.s8 %v909
      %v911 = vperm.slane %v903, %v910
      %v912 = vrot.slane %v829, 4
      %v913 = vsel %vm640, %v912, %v817
      %v914 = vrot.slane %v817, 4
      %v915 = vsel %vm640, %v829, %v914
      %v917 = vunpack.c.l.s4 1983009808
      %v918 = vunpack.c.0.s8 %v917
      %v919 = vperm.slane %v913, %v918
      %v921 = vunpack.c.l.s4 1983009808
      %v922 = vunpack.c.0.s8 %v921
      %v923 = vperm.slane %v915, %v922
      %v924 = vrot.slane %v919, 4
      %v925 = vsel %vm640, %v924, %v907
      %v926 = vrot.slane %v907, 4
      %v927 = vsel %vm640, %v919, %v926
      %v929 = vunpack.c.l.s4 1934713408
      %v930 = vunpack.c.0.s8 %v929
      %v931 = vperm.slane %v925, %v930
      %v933 = vunpack.c.l.s4 1934713408
      %v934 = vunpack.c.0.s8 %v933
      %v935 = vperm.slane %v927, %v934
      %v936 = vrot.slane %v923, 4
      %v937 = vsel %vm640, %v936, %v911
      %v938 = vrot.slane %v911, 4
      %v939 = vsel %vm640, %v923, %v938
      %v941 = vunpack.c.l.s4 1934713408
      %v942 = vunpack.c.0.s8 %v941
      %v943 = vperm.slane %v937, %v942
      %v945 = vunpack.c.l.s4 1934713408
      %v946 = vunpack.c.0.s8 %v945
      %v947 = vperm.slane %v939, %v946
      %v948 = vrot.slane %v931, 4
      %v949 = vsel %vm640, 0.0, %v948
      %v950 = vrot.slane %v935, 4
      %v951 = vsel %vm640, 0.0, %v950
      %v952 = vrot.slane %v943, 4
      %v953 = vsel %vm640, 0.0, %v952
      %v954 = vrot.slane %v947, 4
      %v955 = vsel %vm640, 0.0, %v954
      %v956 = vrot.slane %v825, 4
      %v957 = vsel %vm640, %v956, %v813
      %v958 = vrot.slane %v813, 4
      %v959 = vsel %vm640, %v825, %v958
      %v961 = vunpack.c.l.s4 1983009808
      %v962 = vunpack.c.0.s8 %v961
      %v963 = vperm.slane %v957, %v962
      %v965 = vunpack.c.l.s4 1983009808
      %v966 = vunpack.c.0.s8 %v965
      %v967 = vperm.slane %v959, %v966
      %v968 = vrot.slane %v831, 4
      %v969 = vsel %vm640, %v968, %v819
      %v970 = vrot.slane %v819, 4
      %v971 = vsel %vm640, %v831, %v970
      %v973 = vunpack.c.l.s4 1983009808
      %v974 = vunpack.c.0.s8 %v973
      %v975 = vperm.slane %v969, %v974
      %v977 = vunpack.c.l.s4 1983009808
      %v978 = vunpack.c.0.s8 %v977
      %v979 = vperm.slane %v971, %v978
      %v980 = vrot.slane %v975, 4
      %v981 = vsel %vm640, %v980, %v963
      %v982 = vrot.slane %v963, 4
      %v983 = vsel %vm640, %v975, %v982
      %v985 = vunpack.c.l.s4 1934713408
      %v986 = vunpack.c.0.s8 %v985
      %v987 = vperm.slane %v981, %v986
      %v989 = vunpack.c.l.s4 1934713408
      %v990 = vunpack.c.0.s8 %v989
      %v991 = vperm.slane %v983, %v990
      %v992 = vrot.slane %v979, 4
      %v993 = vsel %vm640, %v992, %v967
      %v994 = vrot.slane %v967, 4
      %v995 = vsel %vm640, %v979, %v994
      %v997 = vunpack.c.l.s4 1934713408
      %v998 = vunpack.c.0.s8 %v997
      %v999 = vperm.slane %v993, %v998
      %v1001 = vunpack.c.l.s4 1934713408
      %v1002 = vunpack.c.0.s8 %v1001
      %v1003 = vperm.slane %v995, %v1002
      %v1004 = vrot.slane %v987, 4
      %v1005 = vsel %vm640, 0.0, %v1004
      %v1006 = vrot.slane %v991, 4
      %v1007 = vsel %vm640, 0.0, %v1006
      %v1008 = vrot.slane %v999, 4
      %v1009 = vsel %vm640, 0.0, %v1008
      %v1010 = vrot.slane %v1003, 4
      %v1011 = vsel %vm640, 0.0, %v1010
      %1012 = vrot.lane.b32.xlu0 %v601, 64
      %v1013 = vpop.permute.xlu0 %1012
      %1014 = vrot.lane.b32.xlu0 %v603, 64
      %v1015 = vpop.permute.xlu0 %1014
      %1016 = vrot.lane.b32.xlu0 %v606, 64
      %v1017 = vpop.permute.xlu0 %1016
      %1018 = vrot.lane.b32.xlu0 %v613, 64
      %v1019 = vpop.permute.xlu0 %1018
      %1020 = vrot.lane.b32.xlu0 %v615, 64
      %v1021 = vpop.permute.xlu0 %1020
      %1022 = vrot.lane.b32.xlu0 %v617, 64
      %v1023 = vpop.permute.xlu0 %1022
      %1024 = vrot.lane.b32.xlu0 %v622, 64
      %v1025 = vpop.permute.xlu0 %1024
      %1026 = vrot.lane.b32.xlu0 %v624, 64
      %v1027 = vpop.permute.xlu0 %1026
      %1028 = vrot.lane.b32.xlu0 %v626, 64
      %v1029 = vpop.permute.xlu0 %1028
      %1030 = vrot.lane.b32.xlu0 %v631, 64
      %v1031 = vpop.permute.xlu0 %1030
      %1032 = vrot.lane.b32.xlu0 %v633, 64
      %v1033 = vpop.permute.xlu0 %1032
      %1034 = vrot.lane.b32.xlu0 %v635, 64
      %v1035 = vpop.permute.xlu0 %1034
      %v1048 = vrot.slane %v1025, 4
      %v1049 = vsel %vm640, %v1048, %v1013
      %v1050 = vrot.slane %v1013, 4
      %v1051 = vsel %vm640, %v1025, %v1050
      %v1053 = vunpack.c.l.s4 1983009808
      %v1054 = vunpack.c.0.s8 %v1053
      %v1055 = vperm.slane %v1049, %v1054
      %v1057 = vunpack.c.l.s4 1983009808
      %v1058 = vunpack.c.0.s8 %v1057
      %v1059 = vperm.slane %v1051, %v1058
      %v1060 = vrot.slane %v1031, 4
      %v1061 = vsel %vm640, %v1060, %v1019
      %v1062 = vrot.slane %v1019, 4
      %v1063 = vsel %vm640, %v1031, %v1062
      %v1065 = vunpack.c.l.s4 1983009808
      %v1066 = vunpack.c.0.s8 %v1065
      %v1067 = vperm.slane %v1061, %v1066
      %v1069 = vunpack.c.l.s4 1983009808
      %v1070 = vunpack.c.0.s8 %v1069
      %v1071 = vperm.slane %v1063, %v1070
      %v1072 = vrot.slane %v1067, 4
      %v1073 = vsel %vm640, %v1072, %v1055
      %v1074 = vrot.slane %v1055, 4
      %v1075 = vsel %vm640, %v1067, %v1074
      %v1077 = vunpack.c.l.s4 1934713408
      %v1078 = vunpack.c.0.s8 %v1077
      %v1079 = vperm.slane %v1073, %v1078
      %v1081 = vunpack.c.l.s4 1934713408
      %v1082 = vunpack.c.0.s8 %v1081
      %v1083 = vperm.slane %v1075, %v1082
      %v1084 = vrot.slane %v1071, 4
      %v1085 = vsel %vm640, %v1084, %v1059
      %v1086 = vrot.slane %v1059, 4
      %v1087 = vsel %vm640, %v1071, %v1086
      %v1089 = vunpack.c.l.s4 1934713408
      %v1090 = vunpack.c.0.s8 %v1089
      %v1091 = vperm.slane %v1085, %v1090
      %v1093 = vunpack.c.l.s4 1934713408
      %v1094 = vunpack.c.0.s8 %v1093
      %v1095 = vperm.slane %v1087, %v1094
      %v1096 = vrot.slane %v1079, 4
      %v1097 = vsel %vm640, 0.0, %v1096
      %v1098 = vrot.slane %v1083, 4
      %v1099 = vsel %vm640, 0.0, %v1098
      %v1100 = vrot.slane %v1091, 4
      %v1101 = vsel %vm640, 0.0, %v1100
      %v1102 = vrot.slane %v1095, 4
      %v1103 = vsel %vm640, 0.0, %v1102
      %v1104 = vrot.slane %v1027, 4
      %v1105 = vsel %vm640, %v1104, %v1015
      %v1106 = vrot.slane %v1015, 4
      %v1107 = vsel %vm640, %v1027, %v1106
      %v1109 = vunpack.c.l.s4 1983009808
      %v1110 = vunpack.c.0.s8 %v1109
      %v1111 = vperm.slane %v1105, %v1110
      %v1113 = vunpack.c.l.s4 1983009808
      %v1114 = vunpack.c.0.s8 %v1113
      %v1115 = vperm.slane %v1107, %v1114
      %v1116 = vrot.slane %v1033, 4
      %v1117 = vsel %vm640, %v1116, %v1021
      %v1118 = vrot.slane %v1021, 4
      %v1119 = vsel %vm640, %v1033, %v1118
      %v1121 = vunpack.c.l.s4 1983009808
      %v1122 = vunpack.c.0.s8 %v1121
      %v1123 = vperm.slane %v1117, %v1122
      %v1125 = vunpack.c.l.s4 1983009808
      %v1126 = vunpack.c.0.s8 %v1125
      %v1127 = vperm.slane %v1119, %v1126
      %v1128 = vrot.slane %v1123, 4
      %v1129 = vsel %vm640, %v1128, %v1111
      %v1130 = vrot.slane %v1111, 4
      %v1131 = vsel %vm640, %v1123, %v1130
      %v1133 = vunpack.c.l.s4 1934713408
      %v1134 = vunpack.c.0.s8 %v1133
      %v1135 = vperm.slane %v1129, %v1134
      %v1137 = vunpack.c.l.s4 1934713408
      %v1138 = vunpack.c.0.s8 %v1137
      %v1139 = vperm.slane %v1131, %v1138
      %v1140 = vrot.slane %v1127, 4
      %v1141 = vsel %vm640, %v1140, %v1115
      %v1142 = vrot.slane %v1115, 4
      %v1143 = vsel %vm640, %v1127, %v1142
      %v1145 = vunpack.c.l.s4 1934713408
      %v1146 = vunpack.c.0.s8 %v1145
      %v1147 = vperm.slane %v1141, %v1146
      %v1149 = vunpack.c.l.s4 1934713408
      %v1150 = vunpack.c.0.s8 %v1149
      %v1151 = vperm.slane %v1143, %v1150
      %v1152 = vrot.slane %v1135, 4
      %v1153 = vsel %vm640, 0.0, %v1152
      %v1154 = vrot.slane %v1139, 4
      %v1155 = vsel %vm640, 0.0, %v1154
      %v1156 = vrot.slane %v1147, 4
      %v1157 = vsel %vm640, 0.0, %v1156
      %v1158 = vrot.slane %v1151, 4
      %v1159 = vsel %vm640, 0.0, %v1158
      %v1160 = vrot.slane %v1029, 4
      %v1161 = vsel %vm640, %v1160, %v1017
      %v1162 = vrot.slane %v1017, 4
      %v1163 = vsel %vm640, %v1029, %v1162
      %v1165 = vunpack.c.l.s4 1983009808
      %v1166 = vunpack.c.0.s8 %v1165
      %v1167 = vperm.slane %v1161, %v1166
      %v1169 = vunpack.c.l.s4 1983009808
      %v1170 = vunpack.c.0.s8 %v1169
      %v1171 = vperm.slane %v1163, %v1170
      %v1172 = vrot.slane %v1035, 4
      %v1173 = vsel %vm640, %v1172, %v1023
      %v1174 = vrot.slane %v1023, 4
      %v1175 = vsel %vm640, %v1035, %v1174
      %v1177 = vunpack.c.l.s4 1983009808
      %v1178 = vunpack.c.0.s8 %v1177
      %v1179 = vperm.slane %v1173, %v1178
      %v1181 = vunpack.c.l.s4 1983009808
      %v1182 = vunpack.c.0.s8 %v1181
      %v1183 = vperm.slane %v1175, %v1182
      %v1184 = vrot.slane %v1179, 4
      %v1185 = vsel %vm640, %v1184, %v1167
      %v1186 = vrot.slane %v1167, 4
      %v1187 = vsel %vm640, %v1179, %v1186
      %v1189 = vunpack.c.l.s4 1934713408
      %v1190 = vunpack.c.0.s8 %v1189
      %v1191 = vperm.slane %v1185, %v1190
      %v1193 = vunpack.c.l.s4 1934713408
      %v1194 = vunpack.c.0.s8 %v1193
      %v1195 = vperm.slane %v1187, %v1194
      %v1196 = vrot.slane %v1183, 4
      %v1197 = vsel %vm640, %v1196, %v1171
      %v1198 = vrot.slane %v1171, 4
      %v1199 = vsel %vm640, %v1183, %v1198
      %v1201 = vunpack.c.l.s4 1934713408
      %v1202 = vunpack.c.0.s8 %v1201
      %v1203 = vperm.slane %v1197, %v1202
      %v1205 = vunpack.c.l.s4 1934713408
      %v1206 = vunpack.c.0.s8 %v1205
      %v1207 = vperm.slane %v1199, %v1206
      %v1208 = vrot.slane %v1191, 4
      %v1209 = vsel %vm640, 0.0, %v1208
      %v1210 = vrot.slane %v1195, 4
      %v1211 = vsel %vm640, 0.0, %v1210
      %v1212 = vrot.slane %v1203, 4
      %v1213 = vsel %vm640, 0.0, %v1212
      %v1214 = vrot.slane %v1207, 4
      %v1215 = vsel %vm640, 0.0, %v1214
      %v1216 = vld [vmem:[%s3] sm:$0x1]
      %v1217 = vmul.f32 %v1216, 0.35355338
      %v1218 = vld [vmem:[%s4] sm:$0x1]
      %v1219 = vmul.f32 %v1218, 0.35355338
      %vm1220 = vcmask 60416
      %v1221 = vsel %vm1220, %v671, 0.0
      %1222 = vadd.xlane.f32.xlu0 %v1221
      %v1223 = vpop.xlane.xlu0 %1222
      %v1224 = vsel %vm1220, %v689, 0.0
      %1225 = vadd.xlane.f32.xlu0 %v1224
      %v1226 = vpop.xlane.xlu0 %1225
      %v1227 = vsel %vm1220, %v675, 0.0
      %1228 = vadd.xlane.f32.xlu0 %v1227
      %v1229 = vpop.xlane.xlu0 %1228
      %v1230 = vsel %vm1220, %v691, 0.0
      %1231 = vadd.xlane.f32.xlu0 %v1230
      %v1232 = vpop.xlane.xlu0 %1231
      %v1233 = vsel %vm1220, %v683, 0.0
      %1234 = vadd.xlane.f32.xlu0 %v1233
      %v1235 = vpop.xlane.xlu0 %1234
      %v1236 = vsel %vm1220, %v693, 0.0
      %1237 = vadd.xlane.f32.xlu0 %v1236
      %v1238 = vpop.xlane.xlu0 %1237
      %v1239 = vsel %vm1220, %v687, 0.0
      %1240 = vadd.xlane.f32.xlu0 %v1239
      %v1241 = vpop.xlane.xlu0 %1240
      %v1242 = vsel %vm1220, %v695, 0.0
      %1243 = vadd.xlane.f32.xlu0 %v1242
      %v1244 = vpop.xlane.xlu0 %1243
      %v1245 = vsel %vm1220, %v727, 0.0
      %1246 = vadd.xlane.f32.xlu0 %v1245
      %v1247 = vpop.xlane.xlu0 %1246
      %v1248 = vsel %vm1220, %v745, 0.0
      %1249 = vadd.xlane.f32.xlu0 %v1248
      %v1250 = vpop.xlane.xlu0 %1249
      %v1251 = vsel %vm1220, %v731, 0.0
      %1252 = vadd.xlane.f32.xlu0 %v1251
      %v1253 = vpop.xlane.xlu0 %1252
      %v1254 = vsel %vm1220, %v747, 0.0
      %1255 = vadd.xlane.f32.xlu0 %v1254
      %v1256 = vpop.xlane.xlu0 %1255
      %v1257 = vsel %vm1220, %v739, 0.0
      %1258 = vadd.xlane.f32.xlu0 %v1257
      %v1259 = vpop.xlane.xlu0 %1258
      %v1260 = vsel %vm1220, %v749, 0.0
      %1261 = vadd.xlane.f32.xlu0 %v1260
      %v1262 = vpop.xlane.xlu0 %1261
      %v1263 = vsel %vm1220, %v743, 0.0
      %1264 = vadd.xlane.f32.xlu0 %v1263
      %v1265 = vpop.xlane.xlu0 %1264
      %v1266 = vsel %vm1220, %v751, 0.0
      %1267 = vadd.xlane.f32.xlu0 %v1266
      %v1268 = vpop.xlane.xlu0 %1267
      %v1269 = vsel %vm1220, %v783, 0.0
      %1270 = vadd.xlane.f32.xlu0 %v1269
      %v1271 = vpop.xlane.xlu0 %1270
      %v1272 = vsel %vm1220, %v801, 0.0
      %1273 = vadd.xlane.f32.xlu0 %v1272
      %v1274 = vpop.xlane.xlu0 %1273
      %v1275 = vsel %vm1220, %v787, 0.0
      %1276 = vadd.xlane.f32.xlu0 %v1275
      %v1277 = vpop.xlane.xlu0 %1276
      %v1278 = vsel %vm1220, %v803, 0.0
      %1279 = vadd.xlane.f32.xlu0 %v1278
      %v1280 = vpop.xlane.xlu0 %1279
      %v1281 = vsel %vm1220, %v795, 0.0
      %1282 = vadd.xlane.f32.xlu0 %v1281
      %v1283 = vpop.xlane.xlu0 %1282
      %v1284 = vsel %vm1220, %v805, 0.0
      %1285 = vadd.xlane.f32.xlu0 %v1284
      %v1286 = vpop.xlane.xlu0 %1285
      %v1287 = vsel %vm1220, %v799, 0.0
      %1288 = vadd.xlane.f32.xlu0 %v1287
      %v1289 = vpop.xlane.xlu0 %1288
      %v1290 = vsel %vm1220, %v807, 0.0
      %1291 = vadd.xlane.f32.xlu0 %v1290
      %v1292 = vpop.xlane.xlu0 %1291
      %v1293 = vrcp.pop 8.0
      %v1294 = vmul.f32 8.0, %v1293
      %v1295 = vsub.f32 1.0, %v1294
      %v1296 = vmul.f32 %v1293, %v1295
      %v1297 = vadd.f32 %v1293, %v1296
      %vm1298 = vweird.f32 %v1293
      %v1299 = vsel %vm1298, %v1293, %v1297
      %v1300 = vmul.f32 %v1223, %v1299
      %v1301 = vmul.f32 %v1226, %v1299
      %v1302 = vmul.f32 %v1229, %v1299
      %v1303 = vmul.f32 %v1232, %v1299
      %v1304 = vmul.f32 %v1235, %v1299
      %v1305 = vmul.f32 %v1238, %v1299
      %v1306 = vmul.f32 %v1241, %v1299
      %v1307 = vmul.f32 %v1244, %v1299
      %v1308 = vmul.f32 %v1247, %v1299
      %v1309 = vmul.f32 %v1250, %v1299
      %v1310 = vmul.f32 %v1253, %v1299
      %v1311 = vmul.f32 %v1256, %v1299
      %v1312 = vmul.f32 %v1259, %v1299
      %v1313 = vmul.f32 %v1262, %v1299
      %v1314 = vmul.f32 %v1265, %v1299
      %v1315 = vmul.f32 %v1268, %v1299
      %v1316 = vmul.f32 %v1271, %v1299
      %v1317 = vmul.f32 %v1274, %v1299
      %v1318 = vmul.f32 %v1277, %v1299
      %v1319 = vmul.f32 %v1280, %v1299
      %v1320 = vmul.f32 %v1283, %v1299
      %v1321 = vmul.f32 %v1286, %v1299
      %v1322 = vmul.f32 %v1289, %v1299
      %v1323 = vmul.f32 %v1292, %v1299
      %v1324 = vsub.f32 %v671, %v1300
      %v1325 = vsub.f32 %v689, %v1301
      %v1326 = vsub.f32 %v675, %v1302
      %v1327 = vsub.f32 %v691, %v1303
      %v1328 = vsub.f32 %v683, %v1304
      %v1329 = vsub.f32 %v693, %v1305
      %v1330 = vsub.f32 %v687, %v1306
      %v1331 = vsub.f32 %v695, %v1307
      %v1332 = vsub.f32 %v727, %v1308
      %v1333 = vsub.f32 %v745, %v1309
      %v1334 = vsub.f32 %v731, %v1310
      %v1335 = vsub.f32 %v747, %v1311
      %v1336 = vsub.f32 %v739, %v1312
      %v1337 = vsub.f32 %v749, %v1313
      %v1338 = vsub.f32 %v743, %v1314
      %v1339 = vsub.f32 %v751, %v1315
      %v1340 = vsub.f32 %v783, %v1316
      %v1341 = vsub.f32 %v801, %v1317
      %v1342 = vsub.f32 %v787, %v1318
      %v1343 = vsub.f32 %v803, %v1319
      %v1344 = vsub.f32 %v795, %v1320
      %v1345 = vsub.f32 %v805, %v1321
      %v1346 = vsub.f32 %v799, %v1322
      %v1347 = vsub.f32 %v807, %v1323
      %v1348 = vmul.f32 %v1324, %v1324
      %v1349 = vmul.f32 %v1325, %v1325
      %v1350 = vmul.f32 %v1326, %v1326
      %v1351 = vmul.f32 %v1327, %v1327
      %v1352 = vmul.f32 %v1328, %v1328
      %v1353 = vmul.f32 %v1329, %v1329
      %v1354 = vmul.f32 %v1330, %v1330
      %v1355 = vmul.f32 %v1331, %v1331
      %v1356 = vmul.f32 %v1332, %v1332
      %v1357 = vmul.f32 %v1333, %v1333
      %v1358 = vmul.f32 %v1334, %v1334
      %v1359 = vmul.f32 %v1335, %v1335
      %v1360 = vmul.f32 %v1336, %v1336
      %v1361 = vmul.f32 %v1337, %v1337
      %v1362 = vmul.f32 %v1338, %v1338
      %v1363 = vmul.f32 %v1339, %v1339
      %v1364 = vmul.f32 %v1340, %v1340
      %v1365 = vmul.f32 %v1341, %v1341
      %v1366 = vmul.f32 %v1342, %v1342
      %v1367 = vmul.f32 %v1343, %v1343
      %v1368 = vmul.f32 %v1344, %v1344
      %v1369 = vmul.f32 %v1345, %v1345
      %v1370 = vmul.f32 %v1346, %v1346
      %v1371 = vmul.f32 %v1347, %v1347
      %v1372 = vsel %vm1220, %v1348, 0.0
      %1373 = vadd.xlane.f32.xlu0 %v1372
      %v1374 = vpop.xlane.xlu0 %1373
      %v1375 = vsel %vm1220, %v1349, 0.0
      %1376 = vadd.xlane.f32.xlu0 %v1375
      %v1377 = vpop.xlane.xlu0 %1376
      %v1378 = vsel %vm1220, %v1350, 0.0
      %1379 = vadd.xlane.f32.xlu0 %v1378
      %v1380 = vpop.xlane.xlu0 %1379
      %v1381 = vsel %vm1220, %v1351, 0.0
      %1382 = vadd.xlane.f32.xlu0 %v1381
      %v1383 = vpop.xlane.xlu0 %1382
      %v1384 = vsel %vm1220, %v1352, 0.0
      %1385 = vadd.xlane.f32.xlu0 %v1384
      %v1386 = vpop.xlane.xlu0 %1385
      %v1387 = vsel %vm1220, %v1353, 0.0
      %1388 = vadd.xlane.f32.xlu0 %v1387
      %v1389 = vpop.xlane.xlu0 %1388
      %v1390 = vsel %vm1220, %v1354, 0.0
      %1391 = vadd.xlane.f32.xlu0 %v1390
      %v1392 = vpop.xlane.xlu0 %1391
      %v1393 = vsel %vm1220, %v1355, 0.0
      %1394 = vadd.xlane.f32.xlu0 %v1393
      %v1395 = vpop.xlane.xlu0 %1394
      %v1396 = vsel %vm1220, %v1356, 0.0
      %1397 = vadd.xlane.f32.xlu0 %v1396
      %v1398 = vpop.xlane.xlu0 %1397
      %v1399 = vsel %vm1220, %v1357, 0.0
      %1400 = vadd.xlane.f32.xlu0 %v1399
      %v1401 = vpop.xlane.xlu0 %1400
      %v1402 = vsel %vm1220, %v1358, 0.0
      %1403 = vadd.xlane.f32.xlu0 %v1402
      %v1404 = vpop.xlane.xlu0 %1403
      %v1405 = vsel %vm1220, %v1359, 0.0
      %1406 = vadd.xlane.f32.xlu0 %v1405
      %v1407 = vpop.xlane.xlu0 %1406
      %v1408 = vsel %vm1220, %v1360, 0.0
      %1409 = vadd.xlane.f32.xlu0 %v1408
      %v1410 = vpop.xlane.xlu0 %1409
      %v1411 = vsel %vm1220, %v1361, 0.0
      %1412 = vadd.xlane.f32.xlu0 %v1411
      %v1413 = vpop.xlane.xlu0 %1412
      %v1414 = vsel %vm1220, %v1362, 0.0
      %1415 = vadd.xlane.f32.xlu0 %v1414
      %v1416 = vpop.xlane.xlu0 %1415
      %v1417 = vsel %vm1220, %v1363, 0.0
      %1418 = vadd.xlane.f32.xlu0 %v1417
      %v1419 = vpop.xlane.xlu0 %1418
      %v1420 = vsel %vm1220, %v1364, 0.0
      %1421 = vadd.xlane.f32.xlu0 %v1420
      %v1422 = vpop.xlane.xlu0 %1421
      %v1423 = vsel %vm1220, %v1365, 0.0
      %1424 = vadd.xlane.f32.xlu0 %v1423
      %v1425 = vpop.xlane.xlu0 %1424
      %v1426 = vsel %vm1220, %v1366, 0.0
      %1427 = vadd.xlane.f32.xlu0 %v1426
      %v1428 = vpop.xlane.xlu0 %1427
      %v1429 = vsel %vm1220, %v1367, 0.0
      %1430 = vadd.xlane.f32.xlu0 %v1429
      %v1431 = vpop.xlane.xlu0 %1430
      %v1432 = vsel %vm1220, %v1368, 0.0
      %1433 = vadd.xlane.f32.xlu0 %v1432
      %v1434 = vpop.xlane.xlu0 %1433
      %v1435 = vsel %vm1220, %v1369, 0.0
      %1436 = vadd.xlane.f32.xlu0 %v1435
      %v1437 = vpop.xlane.xlu0 %1436
      %v1438 = vsel %vm1220, %v1370, 0.0
      %1439 = vadd.xlane.f32.xlu0 %v1438
      %v1440 = vpop.xlane.xlu0 %1439
      %v1441 = vsel %vm1220, %v1371, 0.0
      %1442 = vadd.xlane.f32.xlu0 %v1441
      %v1443 = vpop.xlane.xlu0 %1442
      %v1444 = vmul.f32 %v1374, %v1299
      %v1445 = vmul.f32 %v1377, %v1299
      %v1446 = vmul.f32 %v1380, %v1299
      %v1447 = vmul.f32 %v1383, %v1299
      %v1448 = vmul.f32 %v1386, %v1299
      %v1449 = vmul.f32 %v1389, %v1299
      %v1450 = vmul.f32 %v1392, %v1299
      %v1451 = vmul.f32 %v1395, %v1299
      %v1452 = vmul.f32 %v1398, %v1299
      %v1453 = vmul.f32 %v1401, %v1299
      %v1454 = vmul.f32 %v1404, %v1299
      %v1455 = vmul.f32 %v1407, %v1299
      %v1456 = vmul.f32 %v1410, %v1299
      %v1457 = vmul.f32 %v1413, %v1299
      %v1458 = vmul.f32 %v1416, %v1299
      %v1459 = vmul.f32 %v1419, %v1299
      %v1460 = vmul.f32 %v1422, %v1299
      %v1461 = vmul.f32 %v1425, %v1299
      %v1462 = vmul.f32 %v1428, %v1299
      %v1463 = vmul.f32 %v1431, %v1299
      %v1464 = vmul.f32 %v1434, %v1299
      %v1465 = vmul.f32 %v1437, %v1299
      %v1466 = vmul.f32 %v1440, %v1299
      %v1467 = vmul.f32 %v1443, %v1299
      %v1468 = vadd.f32 %v1444, 1e-05
      %v1469 = vadd.f32 %v1445, 1e-05
      %v1470 = vadd.f32 %v1446, 1e-05
      %v1471 = vadd.f32 %v1447, 1e-05
      %v1472 = vadd.f32 %v1448, 1e-05
      %v1473 = vadd.f32 %v1449, 1e-05
      %v1474 = vadd.f32 %v1450, 1e-05
      %v1475 = vadd.f32 %v1451, 1e-05
      %v1476 = vadd.f32 %v1452, 1e-05
      %v1477 = vadd.f32 %v1453, 1e-05
      %v1478 = vadd.f32 %v1454, 1e-05
      %v1479 = vadd.f32 %v1455, 1e-05
      %v1480 = vadd.f32 %v1456, 1e-05
      %v1481 = vadd.f32 %v1457, 1e-05
      %v1482 = vadd.f32 %v1458, 1e-05
      %v1483 = vadd.f32 %v1459, 1e-05
      %v1484 = vadd.f32 %v1460, 1e-05
      %v1485 = vadd.f32 %v1461, 1e-05
      %v1486 = vadd.f32 %v1462, 1e-05
      %v1487 = vadd.f32 %v1463, 1e-05
      %v1488 = vadd.f32 %v1464, 1e-05
      %v1489 = vadd.f32 %v1465, 1e-05
      %v1490 = vadd.f32 %v1466, 1e-05
      %v1491 = vadd.f32 %v1467, 1e-05
      %v1492 = vrsqrt.pop %v1468
      %v1493 = vmul.f32 %v1492, %v1468
      %v1494 = vmul.f32 %v1493, %v1492
      %v1495 = vmul.f32 0.5, %v1494
      %v1496 = vsub.f32 1.5, %v1495
      %v1497 = vmul.f32 %v1492, %v1496
      %vm1498 = vweird.f32 %v1468
      %vm1499 = vweird.f32 %v1492
      %vm1500 = vmor %vm1498, %vm1499
      %v1501 = vsel %vm1500, %v1492, %v1497
      %v1502 = vrsqrt.pop %v1469
      %v1503 = vmul.f32 %v1502, %v1469
      %v1504 = vmul.f32 %v1503, %v1502
      %v1505 = vmul.f32 0.5, %v1504
      %v1506 = vsub.f32 1.5, %v1505
      %v1507 = vmul.f32 %v1502, %v1506
      %vm1508 = vweird.f32 %v1469
      %vm1509 = vweird.f32 %v1502
      %vm1510 = vmor %vm1508, %vm1509
      %v1511 = vsel %vm1510, %v1502, %v1507
      %v1512 = vrsqrt.pop %v1470
      %v1513 = vmul.f32 %v1512, %v1470
      %v1514 = vmul.f32 %v1513, %v1512
      %v1515 = vmul.f32 0.5, %v1514
      %v1516 = vsub.f32 1.5, %v1515
      %v1517 = vmul.f32 %v1512, %v1516
      %vm1518 = vweird.f32 %v1470
      %vm1519 = vweird.f32 %v1512
      %vm1520 = vmor %vm1518, %vm1519
      %v1521 = vsel %vm1520, %v1512, %v1517
      %v1522 = vrsqrt.pop %v1471
      %v1523 = vmul.f32 %v1522, %v1471
      %v1524 = vmul.f32 %v1523, %v1522
      %v1525 = vmul.f32 0.5, %v1524
      %v1526 = vsub.f32 1.5, %v1525
      %v1527 = vmul.f32 %v1522, %v1526
      %vm1528 = vweird.f32 %v1471
      %vm1529 = vweird.f32 %v1522
      %vm1530 = vmor %vm1528, %vm1529
      %v1531 = vsel %vm1530, %v1522, %v1527
      %v1532 = vrsqrt.pop %v1472
      %v1533 = vmul.f32 %v1532, %v1472
      %v1534 = vmul.f32 %v1533, %v1532
      %v1535 = vmul.f32 0.5, %v1534
      %v1536 = vsub.f32 1.5, %v1535
      %v1537 = vmul.f32 %v1532, %v1536
      %vm1538 = vweird.f32 %v1472
      %vm1539 = vweird.f32 %v1532
      %vm1540 = vmor %vm1538, %vm1539
      %v1541 = vsel %vm1540, %v1532, %v1537
      %v1542 = vrsqrt.pop %v1473
      %v1543 = vmul.f32 %v1542, %v1473
      %v1544 = vmul.f32 %v1543, %v1542
      %v1545 = vmul.f32 0.5, %v1544
      %v1546 = vsub.f32 1.5, %v1545
      %v1547 = vmul.f32 %v1542, %v1546
      %vm1548 = vweird.f32 %v1473
      %vm1549 = vweird.f32 %v1542
      %vm1550 = vmor %vm1548, %vm1549
      %v1551 = vsel %vm1550, %v1542, %v1547
      %v1552 = vrsqrt.pop %v1474
      %v1553 = vmul.f32 %v1552, %v1474
      %v1554 = vmul.f32 %v1553, %v1552
      %v1555 = vmul.f32 0.5, %v1554
      %v1556 = vsub.f32 1.5, %v1555
      %v1557 = vmul.f32 %v1552, %v1556
      %vm1558 = vweird.f32 %v1474
      %vm1559 = vweird.f32 %v1552
      %vm1560 = vmor %vm1558, %vm1559
      %v1561 = vsel %vm1560, %v1552, %v1557
      %v1562 = vrsqrt.pop %v1475
      %v1563 = vmul.f32 %v1562, %v1475
      %v1564 = vmul.f32 %v1563, %v1562
      %v1565 = vmul.f32 0.5, %v1564
      %v1566 = vsub.f32 1.5, %v1565
      %v1567 = vmul.f32 %v1562, %v1566
      %vm1568 = vweird.f32 %v1475
      %vm1569 = vweird.f32 %v1562
      %vm1570 = vmor %vm1568, %vm1569
      %v1571 = vsel %vm1570, %v1562, %v1567
      %v1572 = vrsqrt.pop %v1476
      %v1573 = vmul.f32 %v1572, %v1476
      %v1574 = vmul.f32 %v1573, %v1572
      %v1575 = vmul.f32 0.5, %v1574
      %v1576 = vsub.f32 1.5, %v1575
      %v1577 = vmul.f32 %v1572, %v1576
      %vm1578 = vweird.f32 %v1476
      %vm1579 = vweird.f32 %v1572
      %vm1580 = vmor %vm1578, %vm1579
      %v1581 = vsel %vm1580, %v1572, %v1577
      %v1582 = vrsqrt.pop %v1477
      %v1583 = vmul.f32 %v1582, %v1477
      %v1584 = vmul.f32 %v1583, %v1582
      %v1585 = vmul.f32 0.5, %v1584
      %v1586 = vsub.f32 1.5, %v1585
      %v1587 = vmul.f32 %v1582, %v1586
      %vm1588 = vweird.f32 %v1477
      %vm1589 = vweird.f32 %v1582
      %vm1590 = vmor %vm1588, %vm1589
      %v1591 = vsel %vm1590, %v1582, %v1587
      %v1592 = vrsqrt.pop %v1478
      %v1593 = vmul.f32 %v1592, %v1478
      %v1594 = vmul.f32 %v1593, %v1592
      %v1595 = vmul.f32 0.5, %v1594
      %v1596 = vsub.f32 1.5, %v1595
      %v1597 = vmul.f32 %v1592, %v1596
      %vm1598 = vweird.f32 %v1478
      %vm1599 = vweird.f32 %v1592
      %vm1600 = vmor %vm1598, %vm1599
      %v1601 = vsel %vm1600, %v1592, %v1597
      %v1602 = vrsqrt.pop %v1479
      %v1603 = vmul.f32 %v1602, %v1479
      %v1604 = vmul.f32 %v1603, %v1602
      %v1605 = vmul.f32 0.5, %v1604
      %v1606 = vsub.f32 1.5, %v1605
      %v1607 = vmul.f32 %v1602, %v1606
      %vm1608 = vweird.f32 %v1479
      %vm1609 = vweird.f32 %v1602
      %vm1610 = vmor %vm1608, %vm1609
      %v1611 = vsel %vm1610, %v1602, %v1607
      %v1612 = vrsqrt.pop %v1480
      %v1613 = vmul.f32 %v1612, %v1480
      %v1614 = vmul.f32 %v1613, %v1612
      %v1615 = vmul.f32 0.5, %v1614
      %v1616 = vsub.f32 1.5, %v1615
      %v1617 = vmul.f32 %v1612, %v1616
      %vm1618 = vweird.f32 %v1480
      %vm1619 = vweird.f32 %v1612
      %vm1620 = vmor %vm1618, %vm1619
      %v1621 = vsel %vm1620, %v1612, %v1617
      %v1622 = vrsqrt.pop %v1481
      %v1623 = vmul.f32 %v1622, %v1481
      %v1624 = vmul.f32 %v1623, %v1622
      %v1625 = vmul.f32 0.5, %v1624
      %v1626 = vsub.f32 1.5, %v1625
      %v1627 = vmul.f32 %v1622, %v1626
      %vm1628 = vweird.f32 %v1481
      %vm1629 = vweird.f32 %v1622
      %vm1630 = vmor %vm1628, %vm1629
      %v1631 = vsel %vm1630, %v1622, %v1627
      %v1632 = vrsqrt.pop %v1482
      %v1633 = vmul.f32 %v1632, %v1482
      %v1634 = vmul.f32 %v1633, %v1632
      %v1635 = vmul.f32 0.5, %v1634
      %v1636 = vsub.f32 1.5, %v1635
      %v1637 = vmul.f32 %v1632, %v1636
      %vm1638 = vweird.f32 %v1482
      %vm1639 = vweird.f32 %v1632
      %vm1640 = vmor %vm1638, %vm1639
      %v1641 = vsel %vm1640, %v1632, %v1637
      %v1642 = vrsqrt.pop %v1483
      %v1643 = vmul.f32 %v1642, %v1483
      %v1644 = vmul.f32 %v1643, %v1642
      %v1645 = vmul.f32 0.5, %v1644
      %v1646 = vsub.f32 1.5, %v1645
      %v1647 = vmul.f32 %v1642, %v1646
      %vm1648 = vweird.f32 %v1483
      %vm1649 = vweird.f32 %v1642
      %vm1650 = vmor %vm1648, %vm1649
      %v1651 = vsel %vm1650, %v1642, %v1647
      %v1652 = vrsqrt.pop %v1484
      %v1653 = vmul.f32 %v1652, %v1484
      %v1654 = vmul.f32 %v1653, %v1652
      %v1655 = vmul.f32 0.5, %v1654
      %v1656 = vsub.f32 1.5, %v1655
      %v1657 = vmul.f32 %v1652, %v1656
      %vm1658 = vweird.f32 %v1484
      %vm1659 = vweird.f32 %v1652
      %vm1660 = vmor %vm1658, %vm1659
      %v1661 = vsel %vm1660, %v1652, %v1657
      %v1662 = vrsqrt.pop %v1485
      %v1663 = vmul.f32 %v1662, %v1485
      %v1664 = vmul.f32 %v1663, %v1662
      %v1665 = vmul.f32 0.5, %v1664
      %v1666 = vsub.f32 1.5, %v1665
      %v1667 = vmul.f32 %v1662, %v1666
      %vm1668 = vweird.f32 %v1485
      %vm1669 = vweird.f32 %v1662
      %vm1670 = vmor %vm1668, %vm1669
      %v1671 = vsel %vm1670, %v1662, %v1667
      %v1672 = vrsqrt.pop %v1486
      %v1673 = vmul.f32 %v1672, %v1486
      %v1674 = vmul.f32 %v1673, %v1672
      %v1675 = vmul.f32 0.5, %v1674
      %v1676 = vsub.f32 1.5, %v1675
      %v1677 = vmul.f32 %v1672, %v1676
      %vm1678 = vweird.f32 %v1486
      %vm1679 = vweird.f32 %v1672
      %vm1680 = vmor %vm1678, %vm1679
      %v1681 = vsel %vm1680, %v1672, %v1677
      %v1682 = vrsqrt.pop %v1487
      %v1683 = vmul.f32 %v1682, %v1487
      %v1684 = vmul.f32 %v1683, %v1682
      %v1685 = vmul.f32 0.5, %v1684
      %v1686 = vsub.f32 1.5, %v1685
      %v1687 = vmul.f32 %v1682, %v1686
      %vm1688 = vweird.f32 %v1487
      %vm1689 = vweird.f32 %v1682
      %vm1690 = vmor %vm1688, %vm1689
      %v1691 = vsel %vm1690, %v1682, %v1687
      %v1692 = vrsqrt.pop %v1488
      %v1693 = vmul.f32 %v1692, %v1488
      %v1694 = vmul.f32 %v1693, %v1692
      %v1695 = vmul.f32 0.5, %v1694
      %v1696 = vsub.f32 1.5, %v1695
      %v1697 = vmul.f32 %v1692, %v1696
      %vm1698 = vweird.f32 %v1488
      %vm1699 = vweird.f32 %v1692
      %vm1700 = vmor %vm1698, %vm1699
      %v1701 = vsel %vm1700, %v1692, %v1697
      %v1702 = vrsqrt.pop %v1489
      %v1703 = vmul.f32 %v1702, %v1489
      %v1704 = vmul.f32 %v1703, %v1702
      %v1705 = vmul.f32 0.5, %v1704
      %v1706 = vsub.f32 1.5, %v1705
      %v1707 = vmul.f32 %v1702, %v1706
      %vm1708 = vweird.f32 %v1489
      %vm1709 = vweird.f32 %v1702
      %vm1710 = vmor %vm1708, %vm1709
      %v1711 = vsel %vm1710, %v1702, %v1707
      %v1712 = vrsqrt.pop %v1490
      %v1713 = vmul.f32 %v1712, %v1490
      %v1714 = vmul.f32 %v1713, %v1712
      %v1715 = vmul.f32 0.5, %v1714
      %v1716 = vsub.f32 1.5, %v1715
      %v1717 = vmul.f32 %v1712, %v1716
      %vm1718 = vweird.f32 %v1490
      %vm1719 = vweird.f32 %v1712
      %vm1720 = vmor %vm1718, %vm1719
      %v1721 = vsel %vm1720, %v1712, %v1717
      %v1722 = vrsqrt.pop %v1491
      %v1723 = vmul.f32 %v1722, %v1491
      %v1724 = vmul.f32 %v1723, %v1722
      %v1725 = vmul.f32 0.5, %v1724
      %v1726 = vsub.f32 1.5, %v1725
      %v1727 = vmul.f32 %v1722, %v1726
      %vm1728 = vweird.f32 %v1491
      %vm1729 = vweird.f32 %v1722
      %vm1730 = vmor %vm1728, %vm1729
      %v1731 = vsel %vm1730, %v1722, %v1727
      %v1732 = vmul.f32 %v1324, %v1501
      %v1733 = vmul.f32 %v1325, %v1511
      %v1734 = vmul.f32 %v1326, %v1521
      %v1735 = vmul.f32 %v1327, %v1531
      %v1736 = vmul.f32 %v1328, %v1541
      %v1737 = vmul.f32 %v1329, %v1551
      %v1738 = vmul.f32 %v1330, %v1561
      %v1739 = vmul.f32 %v1331, %v1571
      %v1740 = vmul.f32 %v1332, %v1581
      %v1741 = vmul.f32 %v1333, %v1591
      %v1742 = vmul.f32 %v1334, %v1601
      %v1743 = vmul.f32 %v1335, %v1611
      %v1744 = vmul.f32 %v1336, %v1621
      %v1745 = vmul.f32 %v1337, %v1631
      %v1746 = vmul.f32 %v1338, %v1641
      %v1747 = vmul.f32 %v1339, %v1651
      %v1748 = vmul.f32 %v1340, %v1661
      %v1749 = vmul.f32 %v1341, %v1671
      %v1750 = vmul.f32 %v1342, %v1681
      %v1751 = vmul.f32 %v1343, %v1691
      %v1752 = vmul.f32 %v1344, %v1701
      %v1753 = vmul.f32 %v1345, %v1711
      %v1754 = vmul.f32 %v1346, %v1721
      %v1755 = vmul.f32 %v1347, %v1731
      %v1757 = vperm.slane %v1217, 0
      %v1759 = vmul.f32 %v1732, %v1757
      %v1760 = vmul.f32 %v1733, %v1757
      %v1761 = vmul.f32 %v1734, %v1757
      %v1762 = vmul.f32 %v1735, %v1757
      %v1763 = vmul.f32 %v1736, %v1757
      %v1764 = vmul.f32 %v1737, %v1757
      %v1765 = vmul.f32 %v1738, %v1757
      %v1766 = vmul.f32 %v1739, %v1757
      %v1767 = vmul.f32 %v1740, %v1757
      %v1768 = vmul.f32 %v1741, %v1757
      %v1769 = vmul.f32 %v1742, %v1757
      %v1770 = vmul.f32 %v1743, %v1757
      %v1771 = vmul.f32 %v1744, %v1757
      %v1772 = vmul.f32 %v1745, %v1757
      %v1773 = vmul.f32 %v1746, %v1757
      %v1774 = vmul.f32 %v1747, %v1757
      %v1775 = vmul.f32 %v1748, %v1757
      %v1776 = vmul.f32 %v1749, %v1757
      %v1777 = vmul.f32 %v1750, %v1757
      %v1778 = vmul.f32 %v1751, %v1757
      %v1779 = vmul.f32 %v1752, %v1757
      %v1780 = vmul.f32 %v1753, %v1757
      %v1781 = vmul.f32 %v1754, %v1757
      %v1782 = vmul.f32 %v1755, %v1757
      %v1784 = vperm.slane %v1219, 0
      %v1786 = vadd.f32 %v1759, %v1784
      %v1787 = vadd.f32 %v1760, %v1784
      %v1788 = vadd.f32 %v1761, %v1784
      %v1789 = vadd.f32 %v1762, %v1784
      %v1790 = vadd.f32 %v1763, %v1784
      %v1791 = vadd.f32 %v1764, %v1784
      %v1792 = vadd.f32 %v1765, %v1784
      %v1793 = vadd.f32 %v1766, %v1784
      %v1794 = vadd.f32 %v1767, %v1784
      %v1795 = vadd.f32 %v1768, %v1784
      %v1796 = vadd.f32 %v1769, %v1784
      %v1797 = vadd.f32 %v1770, %v1784
      %v1798 = vadd.f32 %v1771, %v1784
      %v1799 = vadd.f32 %v1772, %v1784
      %v1800 = vadd.f32 %v1773, %v1784
      %v1801 = vadd.f32 %v1774, %v1784
      %v1802 = vadd.f32 %v1775, %v1784
      %v1803 = vadd.f32 %v1776, %v1784
      %v1804 = vadd.f32 %v1777, %v1784
      %v1805 = vadd.f32 %v1778, %v1784
      %v1806 = vadd.f32 %v1779, %v1784
      %v1807 = vadd.f32 %v1780, %v1784
      %v1808 = vadd.f32 %v1781, %v1784
      %v1809 = vadd.f32 %v1782, %v1784
      %v1810 = vld [vmem:[%s5] sm:$0x1]
      %v1811 = vld [vmem:[%s6] sm:$0x1]
      %v1812 = vsel %vm1220, %v875, 0.0
      %1813 = vadd.xlane.f32.xlu0 %v1812
      %v1814 = vpop.xlane.xlu0 %1813
      %v1815 = vsel %vm1220, %v893, 0.0
      %1816 = vadd.xlane.f32.xlu0 %v1815
      %v1817 = vpop.xlane.xlu0 %1816
      %v1818 = vsel %vm1220, %v879, 0.0
      %1819 = vadd.xlane.f32.xlu0 %v1818
      %v1820 = vpop.xlane.xlu0 %1819
      %v1821 = vsel %vm1220, %v895, 0.0
      %1822 = vadd.xlane.f32.xlu0 %v1821
      %v1823 = vpop.xlane.xlu0 %1822
      %v1824 = vsel %vm1220, %v887, 0.0
      %1825 = vadd.xlane.f32.xlu0 %v1824
      %v1826 = vpop.xlane.xlu0 %1825
      %v1827 = vsel %vm1220, %v897, 0.0
      %1828 = vadd.xlane.f32.xlu0 %v1827
      %v1829 = vpop.xlane.xlu0 %1828
      %v1830 = vsel %vm1220, %v891, 0.0
      %1831 = vadd.xlane.f32.xlu0 %v1830
      %v1832 = vpop.xlane.xlu0 %1831
      %v1833 = vsel %vm1220, %v899, 0.0
      %1834 = vadd.xlane.f32.xlu0 %v1833
      %v1835 = vpop.xlane.xlu0 %1834
      %v1836 = vsel %vm1220, %v931, 0.0
      %1837 = vadd.xlane.f32.xlu0 %v1836
      %v1838 = vpop.xlane.xlu0 %1837
      %v1839 = vsel %vm1220, %v949, 0.0
      %1840 = vadd.xlane.f32.xlu0 %v1839
      %v1841 = vpop.xlane.xlu0 %1840
      %v1842 = vsel %vm1220, %v935, 0.0
      %1843 = vadd.xlane.f32.xlu0 %v1842
      %v1844 = vpop.xlane.xlu0 %1843
      %v1845 = vsel %vm1220, %v951, 0.0
      %1846 = vadd.xlane.f32.xlu0 %v1845
      %v1847 = vpop.xlane.xlu0 %1846
      %v1848 = vsel %vm1220, %v943, 0.0
      %1849 = vadd.xlane.f32.xlu0 %v1848
      %v1850 = vpop.xlane.xlu0 %1849
      %v1851 = vsel %vm1220, %v953, 0.0
      %1852 = vadd.xlane.f32.xlu0 %v1851
      %v1853 = vpop.xlane.xlu0 %1852
      %v1854 = vsel %vm1220, %v947, 0.0
      %1855 = vadd.xlane.f32.xlu0 %v1854
      %v1856 = vpop.xlane.xlu0 %1855
      %v1857 = vsel %vm1220, %v955, 0.0
      %1858 = vadd.xlane.f32.xlu0 %v1857
      %v1859 = vpop.xlane.xlu0 %1858
      %v1860 = vsel %vm1220, %v987, 0.0
      %1861 = vadd.xlane.f32.xlu0 %v1860
      %v1862 = vpop.xlane.xlu0 %1861
      %v1863 = vsel %vm1220, %v1005, 0.0
      %1864 = vadd.xlane.f32.xlu0 %v1863
      %v1865 = vpop.xlane.xlu0 %1864
      %v1866 = vsel %vm1220, %v991, 0.0
      %1867 = vadd.xlane.f32.xlu0 %v1866
      %v1868 = vpop.xlane.xlu0 %1867
      %v1869 = vsel %vm1220, %v1007, 0.0
      %1870 = vadd.xlane.f32.xlu0 %v1869
      %v1871 = vpop.xlane.xlu0 %1870
      %v1872 = vsel %vm1220, %v999, 0.0
      %1873 = vadd.xlane.f32.xlu0 %v1872
      %v1874 = vpop.xlane.xlu0 %1873
      %v1875 = vsel %vm1220, %v1009, 0.0
      %1876 = vadd.xlane.f32.xlu0 %v1875
      %v1877 = vpop.xlane.xlu0 %1876
      %v1878 = vsel %vm1220, %v1003, 0.0
      %1879 = vadd.xlane.f32.xlu0 %v1878
      %v1880 = vpop.xlane.xlu0 %1879
      %v1881 = vsel %vm1220, %v1011, 0.0
      %1882 = vadd.xlane.f32.xlu0 %v1881
      %v1883 = vpop.xlane.xlu0 %1882
      %v1884 = vmul.f32 %v1814, %v1299
      %v1885 = vmul.f32 %v1817, %v1299
      %v1886 = vmul.f32 %v1820, %v1299
      %v1887 = vmul.f32 %v1823, %v1299
      %v1888 = vmul.f32 %v1826, %v1299
      %v1889 = vmul.f32 %v1829, %v1299
      %v1890 = vmul.f32 %v1832, %v1299
      %v1891 = vmul.f32 %v1835, %v1299
      %v1892 = vmul.f32 %v1838, %v1299
      %v1893 = vmul.f32 %v1841, %v1299
      %v1894 = vmul.f32 %v1844, %v1299
      %v1895 = vmul.f32 %v1847, %v1299
      %v1896 = vmul.f32 %v1850, %v1299
      %v1897 = vmul.f32 %v1853, %v1299
      %v1898 = vmul.f32 %v1856, %v1299
      %v1899 = vmul.f32 %v1859, %v1299
      %v1900 = vmul.f32 %v1862, %v1299
      %v1901 = vmul.f32 %v1865, %v1299
      %v1902 = vmul.f32 %v1868, %v1299
      %v1903 = vmul.f32 %v1871, %v1299
      %v1904 = vmul.f32 %v1874, %v1299
      %v1905 = vmul.f32 %v1877, %v1299
      %v1906 = vmul.f32 %v1880, %v1299
      %v1907 = vmul.f32 %v1883, %v1299
      %v1908 = vsub.f32 %v875, %v1884
      %v1909 = vsub.f32 %v893, %v1885
      %v1910 = vsub.f32 %v879, %v1886
      %v1911 = vsub.f32 %v895, %v1887
      %v1912 = vsub.f32 %v887, %v1888
      %v1913 = vsub.f32 %v897, %v1889
      %v1914 = vsub.f32 %v891, %v1890
      %v1915 = vsub.f32 %v899, %v1891
      %v1916 = vsub.f32 %v931, %v1892
      %v1917 = vsub.f32 %v949, %v1893
      %v1918 = vsub.f32 %v935, %v1894
      %v1919 = vsub.f32 %v951, %v1895
      %v1920 = vsub.f32 %v943, %v1896
      %v1921 = vsub.f32 %v953, %v1897
      %v1922 = vsub.f32 %v947, %v1898
      %v1923 = vsub.f32 %v955, %v1899
      %v1924 = vsub.f32 %v987, %v1900
      %v1925 = vsub.f32 %v1005, %v1901
      %v1926 = vsub.f32 %v991, %v1902
      %v1927 = vsub.f32 %v1007, %v1903
      %v1928 = vsub.f32 %v999, %v1904
      %v1929 = vsub.f32 %v1009, %v1905
      %v1930 = vsub.f32 %v1003, %v1906
      %v1931 = vsub.f32 %v1011, %v1907
      %v1932 = vmul.f32 %v1908, %v1908
      %v1933 = vmul.f32 %v1909, %v1909
      %v1934 = vmul.f32 %v1910, %v1910
      %v1935 = vmul.f32 %v1911, %v1911
      %v1936 = vmul.f32 %v1912, %v1912
      %v1937 = vmul.f32 %v1913, %v1913
      %v1938 = vmul.f32 %v1914, %v1914
      %v1939 = vmul.f32 %v1915, %v1915
      %v1940 = vmul.f32 %v1916, %v1916
      %v1941 = vmul.f32 %v1917, %v1917
      %v1942 = vmul.f32 %v1918, %v1918
      %v1943 = vmul.f32 %v1919, %v1919
      %v1944 = vmul.f32 %v1920, %v1920
      %v1945 = vmul.f32 %v1921, %v1921
      %v1946 = vmul.f32 %v1922, %v1922
      %v1947 = vmul.f32 %v1923, %v1923
      %v1948 = vmul.f32 %v1924, %v1924
      %v1949 = vmul.f32 %v1925, %v1925
      %v1950 = vmul.f32 %v1926, %v1926
      %v1951 = vmul.f32 %v1927, %v1927
      %v1952 = vmul.f32 %v1928, %v1928
      %v1953 = vmul.f32 %v1929, %v1929
      %v1954 = vmul.f32 %v1930, %v1930
      %v1955 = vmul.f32 %v1931, %v1931
      %v1956 = vsel %vm1220, %v1932, 0.0
      %1957 = vadd.xlane.f32.xlu0 %v1956
      %v1958 = vpop.xlane.xlu0 %1957
      %v1959 = vsel %vm1220, %v1933, 0.0
      %1960 = vadd.xlane.f32.xlu0 %v1959
      %v1961 = vpop.xlane.xlu0 %1960
      %v1962 = vsel %vm1220, %v1934, 0.0
      %1963 = vadd.xlane.f32.xlu0 %v1962
      %v1964 = vpop.xlane.xlu0 %1963
      %v1965 = vsel %vm1220, %v1935, 0.0
      %1966 = vadd.xlane.f32.xlu0 %v1965
      %v1967 = vpop.xlane.xlu0 %1966
      %v1968 = vsel %vm1220, %v1936, 0.0
      %1969 = vadd.xlane.f32.xlu0 %v1968
      %v1970 = vpop.xlane.xlu0 %1969
      %v1971 = vsel %vm1220, %v1937, 0.0
      %1972 = vadd.xlane.f32.xlu0 %v1971
      %v1973 = vpop.xlane.xlu0 %1972
      %v1974 = vsel %vm1220, %v1938, 0.0
      %1975 = vadd.xlane.f32.xlu0 %v1974
      %v1976 = vpop.xlane.xlu0 %1975
      %v1977 = vsel %vm1220, %v1939, 0.0
      %1978 = vadd.xlane.f32.xlu0 %v1977
      %v1979 = vpop.xlane.xlu0 %1978
      %v1980 = vsel %vm1220, %v1940, 0.0
      %1981 = vadd.xlane.f32.xlu0 %v1980
      %v1982 = vpop.xlane.xlu0 %1981
      %v1983 = vsel %vm1220, %v1941, 0.0
      %1984 = vadd.xlane.f32.xlu0 %v1983
      %v1985 = vpop.xlane.xlu0 %1984
      %v1986 = vsel %vm1220, %v1942, 0.0
      %1987 = vadd.xlane.f32.xlu0 %v1986
      %v1988 = vpop.xlane.xlu0 %1987
      %v1989 = vsel %vm1220, %v1943, 0.0
      %1990 = vadd.xlane.f32.xlu0 %v1989
      %v1991 = vpop.xlane.xlu0 %1990
      %v1992 = vsel %vm1220, %v1944, 0.0
      %1993 = vadd.xlane.f32.xlu0 %v1992
      %v1994 = vpop.xlane.xlu0 %1993
      %v1995 = vsel %vm1220, %v1945, 0.0
      %1996 = vadd.xlane.f32.xlu0 %v1995
      %v1997 = vpop.xlane.xlu0 %1996
      %v1998 = vsel %vm1220, %v1946, 0.0
      %1999 = vadd.xlane.f32.xlu0 %v1998
      %v2000 = vpop.xlane.xlu0 %1999
      %v2001 = vsel %vm1220, %v1947, 0.0
      %2002 = vadd.xlane.f32.xlu0 %v2001
      %v2003 = vpop.xlane.xlu0 %2002
      %v2004 = vsel %vm1220, %v1948, 0.0
      %2005 = vadd.xlane.f32.xlu0 %v2004
      %v2006 = vpop.xlane.xlu0 %2005
      %v2007 = vsel %vm1220, %v1949, 0.0
      %2008 = vadd.xlane.f32.xlu0 %v2007
      %v2009 = vpop.xlane.xlu0 %2008
      %v2010 = vsel %vm1220, %v1950, 0.0
      %2011 = vadd.xlane.f32.xlu0 %v2010
      %v2012 = vpop.xlane.xlu0 %2011
      %v2013 = vsel %vm1220, %v1951, 0.0
      %2014 = vadd.xlane.f32.xlu0 %v2013
      %v2015 = vpop.xlane.xlu0 %2014
      %v2016 = vsel %vm1220, %v1952, 0.0
      %2017 = vadd.xlane.f32.xlu0 %v2016
      %v2018 = vpop.xlane.xlu0 %2017
      %v2019 = vsel %vm1220, %v1953, 0.0
      %2020 = vadd.xlane.f32.xlu0 %v2019
      %v2021 = vpop.xlane.xlu0 %2020
      %v2022 = vsel %vm1220, %v1954, 0.0
      %2023 = vadd.xlane.f32.xlu0 %v2022
      %v2024 = vpop.xlane.xlu0 %2023
      %v2025 = vsel %vm1220, %v1955, 0.0
      %2026 = vadd.xlane.f32.xlu0 %v2025
      %v2027 = vpop.xlane.xlu0 %2026
      %v2028 = vmul.f32 %v1958, %v1299
      %v2029 = vmul.f32 %v1961, %v1299
      %v2030 = vmul.f32 %v1964, %v1299
      %v2031 = vmul.f32 %v1967, %v1299
      %v2032 = vmul.f32 %v1970, %v1299
      %v2033 = vmul.f32 %v1973, %v1299
      %v2034 = vmul.f32 %v1976, %v1299
      %v2035 = vmul.f32 %v1979, %v1299
      %v2036 = vmul.f32 %v1982, %v1299
      %v2037 = vmul.f32 %v1985, %v1299
      %v2038 = vmul.f32 %v1988, %v1299
      %v2039 = vmul.f32 %v1991, %v1299
      %v2040 = vmul.f32 %v1994, %v1299
      %v2041 = vmul.f32 %v1997, %v1299
      %v2042 = vmul.f32 %v2000, %v1299
      %v2043 = vmul.f32 %v2003, %v1299
      %v2044 = vmul.f32 %v2006, %v1299
      %v2045 = vmul.f32 %v2009, %v1299
      %v2046 = vmul.f32 %v2012, %v1299
      %v2047 = vmul.f32 %v2015, %v1299
      %v2048 = vmul.f32 %v2018, %v1299
      %v2049 = vmul.f32 %v2021, %v1299
      %v2050 = vmul.f32 %v2024, %v1299
      %v2051 = vmul.f32 %v2027, %v1299
      %v2052 = vadd.f32 %v2028, 1e-05
      %v2053 = vadd.f32 %v2029, 1e-05
      %v2054 = vadd.f32 %v2030, 1e-05
      %v2055 = vadd.f32 %v2031, 1e-05
      %v2056 = vadd.f32 %v2032, 1e-05
      %v2057 = vadd.f32 %v2033, 1e-05
      %v2058 = vadd.f32 %v2034, 1e-05
      %v2059 = vadd.f32 %v2035, 1e-05
      %v2060 = vadd.f32 %v2036, 1e-05
      %v2061 = vadd.f32 %v2037, 1e-05
      %v2062 = vadd.f32 %v2038, 1e-05
      %v2063 = vadd.f32 %v2039, 1e-05
      %v2064 = vadd.f32 %v2040, 1e-05
      %v2065 = vadd.f32 %v2041, 1e-05
      %v2066 = vadd.f32 %v2042, 1e-05
      %v2067 = vadd.f32 %v2043, 1e-05
      %v2068 = vadd.f32 %v2044, 1e-05
      %v2069 = vadd.f32 %v2045, 1e-05
      %v2070 = vadd.f32 %v2046, 1e-05
      %v2071 = vadd.f32 %v2047, 1e-05
      %v2072 = vadd.f32 %v2048, 1e-05
      %v2073 = vadd.f32 %v2049, 1e-05
      %v2074 = vadd.f32 %v2050, 1e-05
      %v2075 = vadd.f32 %v2051, 1e-05
      %v2076 = vrsqrt.pop %v2052
      %v2077 = vmul.f32 %v2076, %v2052
      %v2078 = vmul.f32 %v2077, %v2076
      %v2079 = vmul.f32 0.5, %v2078
      %v2080 = vsub.f32 1.5, %v2079
      %v2081 = vmul.f32 %v2076, %v2080
      %vm2082 = vweird.f32 %v2052
      %vm2083 = vweird.f32 %v2076
      %vm2084 = vmor %vm2082, %vm2083
      %v2085 = vsel %vm2084, %v2076, %v2081
      %v2086 = vrsqrt.pop %v2053
      %v2087 = vmul.f32 %v2086, %v2053
      %v2088 = vmul.f32 %v2087, %v2086
      %v2089 = vmul.f32 0.5, %v2088
      %v2090 = vsub.f32 1.5, %v2089
      %v2091 = vmul.f32 %v2086, %v2090
      %vm2092 = vweird.f32 %v2053
      %vm2093 = vweird.f32 %v2086
      %vm2094 = vmor %vm2092, %vm2093
      %v2095 = vsel %vm2094, %v2086, %v2091
      %v2096 = vrsqrt.pop %v2054
      %v2097 = vmul.f32 %v2096, %v2054
      %v2098 = vmul.f32 %v2097, %v2096
      %v2099 = vmul.f32 0.5, %v2098
      %v2100 = vsub.f32 1.5, %v2099
      %v2101 = vmul.f32 %v2096, %v2100
      %vm2102 = vweird.f32 %v2054
      %vm2103 = vweird.f32 %v2096
      %vm2104 = vmor %vm2102, %vm2103
      %v2105 = vsel %vm2104, %v2096, %v2101
      %v2106 = vrsqrt.pop %v2055
      %v2107 = vmul.f32 %v2106, %v2055
      %v2108 = vmul.f32 %v2107, %v2106
      %v2109 = vmul.f32 0.5, %v2108
      %v2110 = vsub.f32 1.5, %v2109
      %v2111 = vmul.f32 %v2106, %v2110
      %vm2112 = vweird.f32 %v2055
      %vm2113 = vweird.f32 %v2106
      %vm2114 = vmor %vm2112, %vm2113
      %v2115 = vsel %vm2114, %v2106, %v2111
      %v2116 = vrsqrt.pop %v2056
      %v2117 = vmul.f32 %v2116, %v2056
      %v2118 = vmul.f32 %v2117, %v2116
      %v2119 = vmul.f32 0.5, %v2118
      %v2120 = vsub.f32 1.5, %v2119
      %v2121 = vmul.f32 %v2116, %v2120
      %vm2122 = vweird.f32 %v2056
      %vm2123 = vweird.f32 %v2116
      %vm2124 = vmor %vm2122, %vm2123
      %v2125 = vsel %vm2124, %v2116, %v2121
      %v2126 = vrsqrt.pop %v2057
      %v2127 = vmul.f32 %v2126, %v2057
      %v2128 = vmul.f32 %v2127, %v2126
      %v2129 = vmul.f32 0.5, %v2128
      %v2130 = vsub.f32 1.5, %v2129
      %v2131 = vmul.f32 %v2126, %v2130
      %vm2132 = vweird.f32 %v2057
      %vm2133 = vweird.f32 %v2126
      %vm2134 = vmor %vm2132, %vm2133
      %v2135 = vsel %vm2134, %v2126, %v2131
      %v2136 = vrsqrt.pop %v2058
      %v2137 = vmul.f32 %v2136, %v2058
      %v2138 = vmul.f32 %v2137, %v2136
      %v2139 = vmul.f32 0.5, %v2138
      %v2140 = vsub.f32 1.5, %v2139
      %v2141 = vmul.f32 %v2136, %v2140
      %vm2142 = vweird.f32 %v2058
      %vm2143 = vweird.f32 %v2136
      %vm2144 = vmor %vm2142, %vm2143
      %v2145 = vsel %vm2144, %v2136, %v2141
      %v2146 = vrsqrt.pop %v2059
      %v2147 = vmul.f32 %v2146, %v2059
      %v2148 = vmul.f32 %v2147, %v2146
      %v2149 = vmul.f32 0.5, %v2148
      %v2150 = vsub.f32 1.5, %v2149
      %v2151 = vmul.f32 %v2146, %v2150
      %vm2152 = vweird.f32 %v2059
      %vm2153 = vweird.f32 %v2146
      %vm2154 = vmor %vm2152, %vm2153
      %v2155 = vsel %vm2154, %v2146, %v2151
      %v2156 = vrsqrt.pop %v2060
      %v2157 = vmul.f32 %v2156, %v2060
      %v2158 = vmul.f32 %v2157, %v2156
      %v2159 = vmul.f32 0.5, %v2158
      %v2160 = vsub.f32 1.5, %v2159
      %v2161 = vmul.f32 %v2156, %v2160
      %vm2162 = vweird.f32 %v2060
      %vm2163 = vweird.f32 %v2156
      %vm2164 = vmor %vm2162, %vm2163
      %v2165 = vsel %vm2164, %v2156, %v2161
      %v2166 = vrsqrt.pop %v2061
      %v2167 = vmul.f32 %v2166, %v2061
      %v2168 = vmul.f32 %v2167, %v2166
      %v2169 = vmul.f32 0.5, %v2168
      %v2170 = vsub.f32 1.5, %v2169
      %v2171 = vmul.f32 %v2166, %v2170
      %vm2172 = vweird.f32 %v2061
      %vm2173 = vweird.f32 %v2166
      %vm2174 = vmor %vm2172, %vm2173
      %v2175 = vsel %vm2174, %v2166, %v2171
      %v2176 = vrsqrt.pop %v2062
      %v2177 = vmul.f32 %v2176, %v2062
      %v2178 = vmul.f32 %v2177, %v2176
      %v2179 = vmul.f32 0.5, %v2178
      %v2180 = vsub.f32 1.5, %v2179
      %v2181 = vmul.f32 %v2176, %v2180
      %vm2182 = vweird.f32 %v2062
      %vm2183 = vweird.f32 %v2176
      %vm2184 = vmor %vm2182, %vm2183
      %v2185 = vsel %vm2184, %v2176, %v2181
      %v2186 = vrsqrt.pop %v2063
      %v2187 = vmul.f32 %v2186, %v2063
      %v2188 = vmul.f32 %v2187, %v2186
      %v2189 = vmul.f32 0.5, %v2188
      %v2190 = vsub.f32 1.5, %v2189
      %v2191 = vmul.f32 %v2186, %v2190
      %vm2192 = vweird.f32 %v2063
      %vm2193 = vweird.f32 %v2186
      %vm2194 = vmor %vm2192, %vm2193
      %v2195 = vsel %vm2194, %v2186, %v2191
      %v2196 = vrsqrt.pop %v2064
      %v2197 = vmul.f32 %v2196, %v2064
      %v2198 = vmul.f32 %v2197, %v2196
      %v2199 = vmul.f32 0.5, %v2198
      %v2200 = vsub.f32 1.5, %v2199
      %v2201 = vmul.f32 %v2196, %v2200
      %vm2202 = vweird.f32 %v2064
      %vm2203 = vweird.f32 %v2196
      %vm2204 = vmor %vm2202, %vm2203
      %v2205 = vsel %vm2204, %v2196, %v2201
      %v2206 = vrsqrt.pop %v2065
      %v2207 = vmul.f32 %v2206, %v2065
      %v2208 = vmul.f32 %v2207, %v2206
      %v2209 = vmul.f32 0.5, %v2208
      %v2210 = vsub.f32 1.5, %v2209
      %v2211 = vmul.f32 %v2206, %v2210
      %vm2212 = vweird.f32 %v2065
      %vm2213 = vweird.f32 %v2206
      %vm2214 = vmor %vm2212, %vm2213
      %v2215 = vsel %vm2214, %v2206, %v2211
      %v2216 = vrsqrt.pop %v2066
      %v2217 = vmul.f32 %v2216, %v2066
      %v2218 = vmul.f32 %v2217, %v2216
      %v2219 = vmul.f32 0.5, %v2218
      %v2220 = vsub.f32 1.5, %v2219
      %v2221 = vmul.f32 %v2216, %v2220
      %vm2222 = vweird.f32 %v2066
      %vm2223 = vweird.f32 %v2216
      %vm2224 = vmor %vm2222, %vm2223
      %v2225 = vsel %vm2224, %v2216, %v2221
      %v2226 = vrsqrt.pop %v2067
      %v2227 = vmul.f32 %v2226, %v2067
      %v2228 = vmul.f32 %v2227, %v2226
      %v2229 = vmul.f32 0.5, %v2228
      %v2230 = vsub.f32 1.5, %v2229
      %v2231 = vmul.f32 %v2226, %v2230
      %vm2232 = vweird.f32 %v2067
      %vm2233 = vweird.f32 %v2226
      %vm2234 = vmor %vm2232, %vm2233
      %v2235 = vsel %vm2234, %v2226, %v2231
      %v2236 = vrsqrt.pop %v2068
      %v2237 = vmul.f32 %v2236, %v2068
      %v2238 = vmul.f32 %v2237, %v2236
      %v2239 = vmul.f32 0.5, %v2238
      %v2240 = vsub.f32 1.5, %v2239
      %v2241 = vmul.f32 %v2236, %v2240
      %vm2242 = vweird.f32 %v2068
      %vm2243 = vweird.f32 %v2236
      %vm2244 = vmor %vm2242, %vm2243
      %v2245 = vsel %vm2244, %v2236, %v2241
      %v2246 = vrsqrt.pop %v2069
      %v2247 = vmul.f32 %v2246, %v2069
      %v2248 = vmul.f32 %v2247, %v2246
      %v2249 = vmul.f32 0.5, %v2248
      %v2250 = vsub.f32 1.5, %v2249
      %v2251 = vmul.f32 %v2246, %v2250
      %vm2252 = vweird.f32 %v2069
      %vm2253 = vweird.f32 %v2246
      %vm2254 = vmor %vm2252, %vm2253
      %v2255 = vsel %vm2254, %v2246, %v2251
      %v2256 = vrsqrt.pop %v2070
      %v2257 = vmul.f32 %v2256, %v2070
      %v2258 = vmul.f32 %v2257, %v2256
      %v2259 = vmul.f32 0.5, %v2258
      %v2260 = vsub.f32 1.5, %v2259
      %v2261 = vmul.f32 %v2256, %v2260
      %vm2262 = vweird.f32 %v2070
      %vm2263 = vweird.f32 %v2256
      %vm2264 = vmor %vm2262, %vm2263
      %v2265 = vsel %vm2264, %v2256, %v2261
      %v2266 = vrsqrt.pop %v2071
      %v2267 = vmul.f32 %v2266, %v2071
      %v2268 = vmul.f32 %v2267, %v2266
      %v2269 = vmul.f32 0.5, %v2268
      %v2270 = vsub.f32 1.5, %v2269
      %v2271 = vmul.f32 %v2266, %v2270
      %vm2272 = vweird.f32 %v2071
      %vm2273 = vweird.f32 %v2266
      %vm2274 = vmor %vm2272, %vm2273
      %v2275 = vsel %vm2274, %v2266, %v2271
      %v2276 = vrsqrt.pop %v2072
      %v2277 = vmul.f32 %v2276, %v2072
      %v2278 = vmul.f32 %v2277, %v2276
      %v2279 = vmul.f32 0.5, %v2278
      %v2280 = vsub.f32 1.5, %v2279
      %v2281 = vmul.f32 %v2276, %v2280
      %vm2282 = vweird.f32 %v2072
      %vm2283 = vweird.f32 %v2276
      %vm2284 = vmor %vm2282, %vm2283
      %v2285 = vsel %vm2284, %v2276, %v2281
      %v2286 = vrsqrt.pop %v2073
      %v2287 = vmul.f32 %v2286, %v2073
      %v2288 = vmul.f32 %v2287, %v2286
      %v2289 = vmul.f32 0.5, %v2288
      %v2290 = vsub.f32 1.5, %v2289
      %v2291 = vmul.f32 %v2286, %v2290
      %vm2292 = vweird.f32 %v2073
      %vm2293 = vweird.f32 %v2286
      %vm2294 = vmor %vm2292, %vm2293
      %v2295 = vsel %vm2294, %v2286, %v2291
      %v2296 = vrsqrt.pop %v2074
      %v2297 = vmul.f32 %v2296, %v2074
      %v2298 = vmul.f32 %v2297, %v2296
      %v2299 = vmul.f32 0.5, %v2298
      %v2300 = vsub.f32 1.5, %v2299
      %v2301 = vmul.f32 %v2296, %v2300
      %vm2302 = vweird.f32 %v2074
      %vm2303 = vweird.f32 %v2296
      %vm2304 = vmor %vm2302, %vm2303
      %v2305 = vsel %vm2304, %v2296, %v2301
      %v2306 = vrsqrt.pop %v2075
      %v2307 = vmul.f32 %v2306, %v2075
      %v2308 = vmul.f32 %v2307, %v2306
      %v2309 = vmul.f32 0.5, %v2308
      %v2310 = vsub.f32 1.5, %v2309
      %v2311 = vmul.f32 %v2306, %v2310
      %vm2312 = vweird.f32 %v2075
      %vm2313 = vweird.f32 %v2306
      %vm2314 = vmor %vm2312, %vm2313
      %v2315 = vsel %vm2314, %v2306, %v2311
      %v2316 = vmul.f32 %v1908, %v2085
      %v2317 = vmul.f32 %v1909, %v2095
      %v2318 = vmul.f32 %v1910, %v2105
      %v2319 = vmul.f32 %v1911, %v2115
      %v2320 = vmul.f32 %v1912, %v2125
      %v2321 = vmul.f32 %v1913, %v2135
      %v2322 = vmul.f32 %v1914, %v2145
      %v2323 = vmul.f32 %v1915, %v2155
      %v2324 = vmul.f32 %v1916, %v2165
      %v2325 = vmul.f32 %v1917, %v2175
      %v2326 = vmul.f32 %v1918, %v2185
      %v2327 = vmul.f32 %v1919, %v2195
      %v2328 = vmul.f32 %v1920, %v2205
      %v2329 = vmul.f32 %v1921, %v2215
      %v2330 = vmul.f32 %v1922, %v2225
      %v2331 = vmul.f32 %v1923, %v2235
      %v2332 = vmul.f32 %v1924, %v2245
      %v2333 = vmul.f32 %v1925, %v2255
      %v2334 = vmul.f32 %v1926, %v2265
      %v2335 = vmul.f32 %v1927, %v2275
      %v2336 = vmul.f32 %v1928, %v2285
      %v2337 = vmul.f32 %v1929, %v2295
      %v2338 = vmul.f32 %v1930, %v2305
      %v2339 = vmul.f32 %v1931, %v2315
      %v2341 = vperm.slane %v1810, 0
      %v2343 = vmul.f32 %v2316, %v2341
      %v2344 = vmul.f32 %v2317, %v2341
      %v2345 = vmul.f32 %v2318, %v2341
      %v2346 = vmul.f32 %v2319, %v2341
      %v2347 = vmul.f32 %v2320, %v2341
      %v2348 = vmul.f32 %v2321, %v2341
      %v2349 = vmul.f32 %v2322, %v2341
      %v2350 = vmul.f32 %v2323, %v2341
      %v2351 = vmul.f32 %v2324, %v2341
      %v2352 = vmul.f32 %v2325, %v2341
      %v2353 = vmul.f32 %v2326, %v2341
      %v2354 = vmul.f32 %v2327, %v2341
      %v2355 = vmul.f32 %v2328, %v2341
      %v2356 = vmul.f32 %v2329, %v2341
      %v2357 = vmul.f32 %v2330, %v2341
      %v2358 = vmul.f32 %v2331, %v2341
      %v2359 = vmul.f32 %v2332, %v2341
      %v2360 = vmul.f32 %v2333, %v2341
      %v2361 = vmul.f32 %v2334, %v2341
      %v2362 = vmul.f32 %v2335, %v2341
      %v2363 = vmul.f32 %v2336, %v2341
      %v2364 = vmul.f32 %v2337, %v2341
      %v2365 = vmul.f32 %v2338, %v2341
      %v2366 = vmul.f32 %v2339, %v2341
      %v2368 = vperm.slane %v1811, 0
      %v2370 = vadd.f32 %v2343, %v2368
      %v2371 = vadd.f32 %v2344, %v2368
      %v2372 = vadd.f32 %v2345, %v2368
      %v2373 = vadd.f32 %v2346, %v2368
      %v2374 = vadd.f32 %v2347, %v2368
      %v2375 = vadd.f32 %v2348, %v2368
      %v2376 = vadd.f32 %v2349, %v2368
      %v2377 = vadd.f32 %v2350, %v2368
      %v2378 = vadd.f32 %v2351, %v2368
      %v2379 = vadd.f32 %v2352, %v2368
      %v2380 = vadd.f32 %v2353, %v2368
      %v2381 = vadd.f32 %v2354, %v2368
      %v2382 = vadd.f32 %v2355, %v2368
      %v2383 = vadd.f32 %v2356, %v2368
      %v2384 = vadd.f32 %v2357, %v2368
      %v2385 = vadd.f32 %v2358, %v2368
      %v2386 = vadd.f32 %v2359, %v2368
      %v2387 = vadd.f32 %v2360, %v2368
      %v2388 = vadd.f32 %v2361, %v2368
      %v2389 = vadd.f32 %v2362, %v2368
      %v2390 = vadd.f32 %v2363, %v2368
      %v2391 = vadd.f32 %v2364, %v2368
      %v2392 = vadd.f32 %v2365, %v2368
      %v2393 = vadd.f32 %v2366, %v2368
      %v2394 = vpack.c.bf16 %v1786, %v1786
      %v2395 = vpack.c.bf16 %v1787, %v1787
      %v2396 = vpack.c.bf16 %v1788, %v1788
      %v2397 = vpack.c.bf16 %v1789, %v1789
      %v2398 = vpack.c.bf16 %v1790, %v1790
      %v2399 = vpack.c.bf16 %v1791, %v1791
      %v2400 = vpack.c.bf16 %v1792, %v1792
      %v2401 = vpack.c.bf16 %v1793, %v1793
      %v2402 = vpack.c.bf16 %v1794, %v1794
      %v2403 = vpack.c.bf16 %v1795, %v1795
      %v2404 = vpack.c.bf16 %v1796, %v1796
      %v2405 = vpack.c.bf16 %v1797, %v1797
      %v2406 = vpack.c.bf16 %v1798, %v1798
      %v2407 = vpack.c.bf16 %v1799, %v1799
      %v2408 = vpack.c.bf16 %v1800, %v1800
      %v2409 = vpack.c.bf16 %v1801, %v1801
      %v2410 = vpack.c.bf16 %v1802, %v1802
      %v2411 = vpack.c.bf16 %v1803, %v1803
      %v2412 = vpack.c.bf16 %v1804, %v1804
      %v2413 = vpack.c.bf16 %v1805, %v1805
      %v2414 = vpack.c.bf16 %v1806, %v1806
      %v2415 = vpack.c.bf16 %v1807, %v1807
      %v2416 = vpack.c.bf16 %v1808, %v1808
      %v2417 = vpack.c.bf16 %v1809, %v1809
      %v2418 = vpack.c.bf16 %v2370, %v2370
      %v2419 = vpack.c.bf16 %v2371, %v2371
      %v2420 = vpack.c.bf16 %v2372, %v2372
      %v2421 = vpack.c.bf16 %v2373, %v2373
      %v2422 = vpack.c.bf16 %v2374, %v2374
      %v2423 = vpack.c.bf16 %v2375, %v2375
      %v2424 = vpack.c.bf16 %v2376, %v2376
      %v2425 = vpack.c.bf16 %v2377, %v2377
      %v2426 = vpack.c.bf16 %v2378, %v2378
      %v2427 = vpack.c.bf16 %v2379, %v2379
      %v2428 = vpack.c.bf16 %v2380, %v2380
      %v2429 = vpack.c.bf16 %v2381, %v2381
      %v2430 = vpack.c.bf16 %v2382, %v2382
      %v2431 = vpack.c.bf16 %v2383, %v2383
      %v2432 = vpack.c.bf16 %v2384, %v2384
      %v2433 = vpack.c.bf16 %v2385, %v2385
      %v2434 = vpack.c.bf16 %v2386, %v2386
      %v2435 = vpack.c.bf16 %v2387, %v2387
      %v2436 = vpack.c.bf16 %v2388, %v2388
      %v2437 = vpack.c.bf16 %v2389, %v2389
      %v2438 = vpack.c.bf16 %v2390, %v2390
      %v2439 = vpack.c.bf16 %v2391, %v2391
      %v2440 = vpack.c.bf16 %v2392, %v2392
      %v2441 = vpack.c.bf16 %v2393, %v2393
      %v2442 = vrot.slane %v2398, 4
      %vm2443 = vcmask 1047556
      %v2444 = vsel %vm2443, %v2442, %v2394
      %v2446 = vunpack.c.l.s4 1983009808
      %v2447 = vunpack.c.0.s8 %v2446
      %v2448 = vperm.slane %v2444, %v2447
      %v2449 = vrot.slane %v2400, 4
      %v2450 = vsel %vm2443, %v2449, %v2396
      %v2452 = vunpack.c.l.s4 1983009808
      %v2453 = vunpack.c.0.s8 %v2452
      %v2454 = vperm.slane %v2450, %v2453
      %v2455 = vrot.slane %v2454, 4
      %v2456 = vsel %vm2443, %v2455, %v2448
      %v2458 = vunpack.c.l.s4 1934713408
      %v2459 = vunpack.c.0.s8 %v2458
      %v2460 = vperm.slane %v2456, %v2459
      %v2461 = vrot.slane %v2460, 4
      %v2462 = vsel %vm2443, 0, %v2461
      %v2463 = vrot.slane %v2399, 4
      %v2464 = vsel %vm2443, %v2463, %v2395
      %v2466 = vunpack.c.l.s4 1983009808
      %v2467 = vunpack.c.0.s8 %v2466
      %v2468 = vperm.slane %v2464, %v2467
      %v2469 = vrot.slane %v2401, 4
      %v2470 = vsel %vm2443, %v2469, %v2397
      %v2472 = vunpack.c.l.s4 1983009808
      %v2473 = vunpack.c.0.s8 %v2472
      %v2474 = vperm.slane %v2470, %v2473
      %v2475 = vrot.slane %v2474, 4
      %v2476 = vsel %vm2443, %v2475, %v2468
      %v2478 = vunpack.c.l.s4 1934713408
      %v2479 = vunpack.c.0.s8 %v2478
      %v2480 = vperm.slane %v2476, %v2479
      %v2481 = vrot.slane %v2480, 4
      %v2482 = vsel %vm2443, 0, %v2481
      %v2483 = vrot.slane %v2406, 4
      %v2484 = vsel %vm2443, %v2483, %v2402
      %v2486 = vunpack.c.l.s4 1983009808
      %v2487 = vunpack.c.0.s8 %v2486
      %v2488 = vperm.slane %v2484, %v2487
      %v2489 = vrot.slane %v2408, 4
      %v2490 = vsel %vm2443, %v2489, %v2404
      %v2492 = vunpack.c.l.s4 1983009808
      %v2493 = vunpack.c.0.s8 %v2492
      %v2494 = vperm.slane %v2490, %v2493
      %v2495 = vrot.slane %v2494, 4
      %v2496 = vsel %vm2443, %v2495, %v2488
      %v2498 = vunpack.c.l.s4 1934713408
      %v2499 = vunpack.c.0.s8 %v2498
      %v2500 = vperm.slane %v2496, %v2499
      %v2501 = vrot.slane %v2500, 4
      %v2502 = vsel %vm2443, 0, %v2501
      %v2503 = vrot.slane %v2407, 4
      %v2504 = vsel %vm2443, %v2503, %v2403
      %v2506 = vunpack.c.l.s4 1983009808
      %v2507 = vunpack.c.0.s8 %v2506
      %v2508 = vperm.slane %v2504, %v2507
      %v2509 = vrot.slane %v2409, 4
      %v2510 = vsel %vm2443, %v2509, %v2405
      %v2512 = vunpack.c.l.s4 1983009808
      %v2513 = vunpack.c.0.s8 %v2512
      %v2514 = vperm.slane %v2510, %v2513
      %v2515 = vrot.slane %v2514, 4
      %v2516 = vsel %vm2443, %v2515, %v2508
      %v2518 = vunpack.c.l.s4 1934713408
      %v2519 = vunpack.c.0.s8 %v2518
      %v2520 = vperm.slane %v2516, %v2519
      %v2521 = vrot.slane %v2520, 4
      %v2522 = vsel %vm2443, 0, %v2521
      %v2523 = vrot.slane %v2414, 4
      %v2524 = vsel %vm2443, %v2523, %v2410
      %v2526 = vunpack.c.l.s4 1983009808
      %v2527 = vunpack.c.0.s8 %v2526
      %v2528 = vperm.slane %v2524, %v2527
      %v2529 = vrot.slane %v2416, 4
      %v2530 = vsel %vm2443, %v2529, %v2412
      %v2532 = vunpack.c.l.s4 1983009808
      %v2533 = vunpack.c.0.s8 %v2532
      %v2534 = vperm.slane %v2530, %v2533
      %v2535 = vrot.slane %v2534, 4
      %v2536 = vsel %vm2443, %v2535, %v2528
      %v2538 = vunpack.c.l.s4 1934713408
      %v2539 = vunpack.c.0.s8 %v2538
      %v2540 = vperm.slane %v2536, %v2539
      %v2541 = vrot.slane %v2540, 4
      %v2542 = vsel %vm2443, 0, %v2541
      %v2543 = vrot.slane %v2415, 4
      %v2544 = vsel %vm2443, %v2543, %v2411
      %v2546 = vunpack.c.l.s4 1983009808
      %v2547 = vunpack.c.0.s8 %v2546
      %v2548 = vperm.slane %v2544, %v2547
      %v2549 = vrot.slane %v2417, 4
      %v2550 = vsel %vm2443, %v2549, %v2413
      %v2552 = vunpack.c.l.s4 1983009808
      %v2553 = vunpack.c.0.s8 %v2552
      %v2554 = vperm.slane %v2550, %v2553
      %v2555 = vrot.slane %v2554, 4
      %v2556 = vsel %vm2443, %v2555, %v2548
      %v2558 = vunpack.c.l.s4 1934713408
      %v2559 = vunpack.c.0.s8 %v2558
      %v2560 = vperm.slane %v2556, %v2559
      %v2561 = vrot.slane %v2560, 4
      %v2562 = vsel %vm2443, 0, %v2561
      %v2565 = vpack.i.b16 %v2480, %v2460
      %v2566 = vshrl.u32 %v2460, 16
      %v2567 = vshrl.u32 %v2480, 16
      %v2568 = vpack.i.b16 %v2567, %v2566
      %v2571 = vpack.i.b16 %v2482, %v2462
      %v2572 = vshrl.u32 %v2462, 16
      %v2573 = vshrl.u32 %v2482, 16
      %v2574 = vpack.i.b16 %v2573, %v2572
      %v2577 = vpack.i.b16 %v2520, %v2500
      %v2578 = vshrl.u32 %v2500, 16
      %v2579 = vshrl.u32 %v2520, 16
      %v2580 = vpack.i.b16 %v2579, %v2578
      %v2583 = vpack.i.b16 %v2522, %v2502
      %v2584 = vshrl.u32 %v2502, 16
      %v2585 = vshrl.u32 %v2522, 16
      %v2586 = vpack.i.b16 %v2585, %v2584
      %v2589 = vpack.i.b16 %v2560, %v2540
      %v2590 = vshrl.u32 %v2540, 16
      %v2591 = vshrl.u32 %v2560, 16
      %v2592 = vpack.i.b16 %v2591, %v2590
      %v2595 = vpack.i.b16 %v2562, %v2542
      %v2596 = vshrl.u32 %v2542, 16
      %v2597 = vshrl.u32 %v2562, 16
      %v2598 = vpack.i.b16 %v2597, %v2596
      %2599 = vxpose.xlu0.c.b16.start [1/8] %v2418, 128
      %2600 = vxpose.xlu0.c.b16.cont [2/8] 0, 128
      %2601 = vxpose.xlu0.c.b16.cont [3/8] 0, 128
      %2602 = vxpose.xlu0.c.b16.cont [4/8] 0, 128
      %2603 = vxpose.xlu0.c.b16.cont [5/8] 0, 128
      %2604 = vxpose.xlu0.c.b16.cont [6/8] 0, 128
      %2605 = vxpose.xlu0.c.b16.cont [7/8] 0, 128
      %2606 = vxpose.xlu0.c.b16.end [8/8] 0, 128
      %v2607 = vpop.trf.xlu0
      %v2608 = vpop.trf.xlu0
      %v2609 = vpop.trf.xlu0
      %v2610 = vpop.trf.xlu0
      %v2611 = vpop.trf.xlu0
      %v2612 = vpop.trf.xlu0
      %v2613 = vpop.trf.xlu0
      %v2614 = vpop.trf.xlu0
      %2615 = vxpose.xlu0.c.b16.start [1/8] %v2419, 128
      %2616 = vxpose.xlu0.c.b16.cont [2/8] 0, 128
      %2617 = vxpose.xlu0.c.b16.cont [3/8] 0, 128
      %2618 = vxpose.xlu0.c.b16.cont [4/8] 0, 128
      %2619 = vxpose.xlu0.c.b16.cont [5/8] 0, 128
      %2620 = vxpose.xlu0.c.b16.cont [6/8] 0, 128
      %2621 = vxpose.xlu0.c.b16.cont [7/8] 0, 128
      %2622 = vxpose.xlu0.c.b16.end [8/8] 0, 128
      %v2623 = vpop.trf.xlu0
      %v2624 = vpop.trf.xlu0
      %v2625 = vpop.trf.xlu0
      %v2626 = vpop.trf.xlu0
      %v2627 = vpop.trf.xlu0
      %v2628 = vpop.trf.xlu0
      %v2629 = vpop.trf.xlu0
      %v2630 = vpop.trf.xlu0
      %2631 = vxpose.xlu0.c.b16.start [1/8] %v2420, 128
      %2632 = vxpose.xlu0.c.b16.cont [2/8] 0, 128
      %2633 = vxpose.xlu0.c.b16.cont [3/8] 0, 128
      %2634 = vxpose.xlu0.c.b16.cont [4/8] 0, 128
      %2635 = vxpose.xlu0.c.b16.cont [5/8] 0, 128
      %2636 = vxpose.xlu0.c.b16.cont [6/8] 0, 128
      %2637 = vxpose.xlu0.c.b16.cont [7/8] 0, 128
      %2638 = vxpose.xlu0.c.b16.end [8/8] 0, 128
      %v2639 = vpop.trf.xlu0
      %v2640 = vpop.trf.xlu0
      %v2641 = vpop.trf.xlu0
      %v2642 = vpop.trf.xlu0
      %v2643 = vpop.trf.xlu0
      %v2644 = vpop.trf.xlu0
      %v2645 = vpop.trf.xlu0
      %v2646 = vpop.trf.xlu0
      %2647 = vxpose.xlu0.c.b16.start [1/8] %v2421, 128
      %2648 = vxpose.xlu0.c.b16.cont [2/8] 0, 128
      %2649 = vxpose.xlu0.c.b16.cont [3/8] 0, 128
      %2650 = vxpose.xlu0.c.b16.cont [4/8] 0, 128
      %2651 = vxpose.xlu0.c.b16.cont [5/8] 0, 128
      %2652 = vxpose.xlu0.c.b16.cont [6/8] 0, 128
      %2653 = vxpose.xlu0.c.b16.cont [7/8] 0, 128
      %2654 = vxpose.xlu0.c.b16.end [8/8] 0, 128
      %v2655 = vpop.trf.xlu0
      %v2656 = vpop.trf.xlu0
      %v2657 = vpop.trf.xlu0
      %v2658 = vpop.trf.xlu0
      %v2659 = vpop.trf.xlu0
      %v2660 = vpop.trf.xlu0
      %v2661 = vpop.trf.xlu0
      %v2662 = vpop.trf.xlu0
      %2663 = vxpose.xlu0.c.b16.start [1/8] %v2422, 128
      %2664 = vxpose.xlu0.c.b16.cont [2/8] 0, 128
      %2665 = vxpose.xlu0.c.b16.cont [3/8] 0, 128
      %2666 = vxpose.xlu0.c.b16.cont [4/8] 0, 128
      %2667 = vxpose.xlu0.c.b16.cont [5/8] 0, 128
      %2668 = vxpose.xlu0.c.b16.cont [6/8] 0, 128
      %2669 = vxpose.xlu0.c.b16.cont [7/8] 0, 128
      %2670 = vxpose.xlu0.c.b16.end [8/8] 0, 128
      %v2671 = vpop.trf.xlu0
      %v2672 = vpop.trf.xlu0
      %v2673 = vpop.trf.xlu0
      %v2674 = vpop.trf.xlu0
      %v2675 = vpop.trf.xlu0
      %v2676 = vpop.trf.xlu0
      %v2677 = vpop.trf.xlu0
      %v2678 = vpop.trf.xlu0
      %2679 = vxpose.xlu0.c.b16.start [1/8] %v2423, 128
      %2680 = vxpose.xlu0.c.b16.cont [2/8] 0, 128
      %2681 = vxpose.xlu0.c.b16.cont [3/8] 0, 128
      %2682 = vxpose.xlu0.c.b16.cont [4/8] 0, 128
      %2683 = vxpose.xlu0.c.b16.cont [5/8] 0, 128
      %2684 = vxpose.xlu0.c.b16.cont [6/8] 0, 128
      %2685 = vxpose.xlu0.c.b16.cont [7/8] 0, 128
      %2686 = vxpose.xlu0.c.b16.end [8/8] 0, 128
      %v2687 = vpop.trf.xlu0
      %v2688 = vpop.trf.xlu0
      %v2689 = vpop.trf.xlu0
      %v2690 = vpop.trf.xlu0
      %v2691 = vpop.trf.xlu0
      %v2692 = vpop.trf.xlu0
      %v2693 = vpop.trf.xlu0
      %v2694 = vpop.trf.xlu0
      %2695 = vxpose.xlu0.c.b16.start [1/8] %v2424, 128
      %2696 = vxpose.xlu0.c.b16.cont [2/8] 0, 128
      %2697 = vxpose.xlu0.c.b16.cont [3/8] 0, 128
      %2698 = vxpose.xlu0.c.b16.cont [4/8] 0, 128
      %2699 = vxpose.xlu0.c.b16.cont [5/8] 0, 128
      %2700 = vxpose.xlu0.c.b16.cont [6/8] 0, 128
      %2701 = vxpose.xlu0.c.b16.cont [7/8] 0, 128
      %2702 = vxpose.xlu0.c.b16.end [8/8] 0, 128
      %v2703 = vpop.trf.xlu0
      %v2704 = vpop.trf.xlu0
      %v2705 = vpop.trf.xlu0
      %v2706 = vpop.trf.xlu0
      %v2707 = vpop.trf.xlu0
      %v2708 = vpop.trf.xlu0
      %v2709 = vpop.trf.xlu0
      %v2710 = vpop.trf.xlu0
      %2711 = vxpose.xlu0.c.b16.start [1/8] %v2425, 128
      %2712 = vxpose.xlu0.c.b16.cont [2/8] 0, 128
      %2713 = vxpose.xlu0.c.b16.cont [3/8] 0, 128
      %2714 = vxpose.xlu0.c.b16.cont [4/8] 0, 128
      %2715 = vxpose.xlu0.c.b16.cont [5/8] 0, 128
      %2716 = vxpose.xlu0.c.b16.cont [6/8] 0, 128
      %2717 = vxpose.xlu0.c.b16.cont [7/8] 0, 128
      %2718 = vxpose.xlu0.c.b16.end [8/8] 0, 128
      %v2719 = vpop.trf.xlu0
      %v2720 = vpop.trf.xlu0
      %v2721 = vpop.trf.xlu0
      %v2722 = vpop.trf.xlu0
      %v2723 = vpop.trf.xlu0
      %v2724 = vpop.trf.xlu0
      %v2725 = vpop.trf.xlu0
      %v2726 = vpop.trf.xlu0
      %2727 = vxpose.xlu0.c.b16.start [1/8] %v2426, 128
      %2728 = vxpose.xlu0.c.b16.cont [2/8] 0, 128
      %2729 = vxpose.xlu0.c.b16.cont [3/8] 0, 128
      %2730 = vxpose.xlu0.c.b16.cont [4/8] 0, 128
      %2731 = vxpose.xlu0.c.b16.cont [5/8] 0, 128
      %2732 = vxpose.xlu0.c.b16.cont [6/8] 0, 128
      %2733 = vxpose.xlu0.c.b16.cont [7/8] 0, 128
      %2734 = vxpose.xlu0.c.b16.end [8/8] 0, 128
      %v2735 = vpop.trf.xlu0
      %v2736 = vpop.trf.xlu0
      %v2737 = vpop.trf.xlu0
      %v2738 = vpop.trf.xlu0
      %v2739 = vpop.trf.xlu0
      %v2740 = vpop.trf.xlu0
      %v2741 = vpop.trf.xlu0
      %v2742 = vpop.trf.xlu0
      %2743 = vxpose.xlu0.c.b16.start [1/8] %v2427, 128
      %2744 = vxpose.xlu0.c.b16.cont [2/8] 0, 128
      %2745 = vxpose.xlu0.c.b16.cont [3/8] 0, 128
      %2746 = vxpose.xlu0.c.b16.cont [4/8] 0, 128
      %2747 = vxpose.xlu0.c.b16.cont [5/8] 0, 128
      %2748 = vxpose.xlu0.c.b16.cont [6/8] 0, 128
      %2749 = vxpose.xlu0.c.b16.cont [7/8] 0, 128
      %2750 = vxpose.xlu0.c.b16.end [8/8] 0, 128
      %v2751 = vpop.trf.xlu0
      %v2752 = vpop.trf.xlu0
      %v2753 = vpop.trf.xlu0
      %v2754 = vpop.trf.xlu0
      %v2755 = vpop.trf.xlu0
      %v2756 = vpop.trf.xlu0
      %v2757 = vpop.trf.xlu0
      %v2758 = vpop.trf.xlu0
      %2759 = vxpose.xlu0.c.b16.start [1/8] %v2428, 128
      %2760 = vxpose.xlu0.c.b16.cont [2/8] 0, 128
      %2761 = vxpose.xlu0.c.b16.cont [3/8] 0, 128
      %2762 = vxpose.xlu0.c.b16.cont [4/8] 0, 128
      %2763 = vxpose.xlu0.c.b16.cont [5/8] 0, 128
      %2764 = vxpose.xlu0.c.b16.cont [6/8] 0, 128
      %2765 = vxpose.xlu0.c.b16.cont [7/8] 0, 128
      %2766 = vxpose.xlu0.c.b16.end [8/8] 0, 128
      %v2767 = vpop.trf.xlu0
      %v2768 = vpop.trf.xlu0
      %v2769 = vpop.trf.xlu0
      %v2770 = vpop.trf.xlu0
      %v2771 = vpop.trf.xlu0
      %v2772 = vpop.trf.xlu0
      %v2773 = vpop.trf.xlu0
      %v2774 = vpop.trf.xlu0
      %2775 = vxpose.xlu0.c.b16.start [1/8] %v2429, 128
      %2776 = vxpose.xlu0.c.b16.cont [2/8] 0, 128
      %2777 = vxpose.xlu0.c.b16.cont [3/8] 0, 128
      %2778 = vxpose.xlu0.c.b16.cont [4/8] 0, 128
      %2779 = vxpose.xlu0.c.b16.cont [5/8] 0, 128
      %2780 = vxpose.xlu0.c.b16.cont [6/8] 0, 128
      %2781 = vxpose.xlu0.c.b16.cont [7/8] 0, 128
      %2782 = vxpose.xlu0.c.b16.end [8/8] 0, 128
      %v2783 = vpop.trf.xlu0
      %v2784 = vpop.trf.xlu0
      %v2785 = vpop.trf.xlu0
      %v2786 = vpop.trf.xlu0
      %v2787 = vpop.trf.xlu0
      %v2788 = vpop.trf.xlu0
      %v2789 = vpop.trf.xlu0
      %v2790 = vpop.trf.xlu0
      %2791 = vxpose.xlu0.c.b16.start [1/8] %v2430, 128
      %2792 = vxpose.xlu0.c.b16.cont [2/8] 0, 128
      %2793 = vxpose.xlu0.c.b16.cont [3/8] 0, 128
      %2794 = vxpose.xlu0.c.b16.cont [4/8] 0, 128
      %2795 = vxpose.xlu0.c.b16.cont [5/8] 0, 128
      %2796 = vxpose.xlu0.c.b16.cont [6/8] 0, 128
      %2797 = vxpose.xlu0.c.b16.cont [7/8] 0, 128
      %2798 = vxpose.xlu0.c.b16.end [8/8] 0, 128
      %v2799 = vpop.trf.xlu0
      %v2800 = vpop.trf.xlu0
      %v2801 = vpop.trf.xlu0
      %v2802 = vpop.trf.xlu0
      %v2803 = vpop.trf.xlu0
      %v2804 = vpop.trf.xlu0
      %v2805 = vpop.trf.xlu0
      %v2806 = vpop.trf.xlu0
      %2807 = vxpose.xlu0.c.b16.start [1/8] %v2431, 128
      %2808 = vxpose.xlu0.c.b16.cont [2/8] 0, 128
      %2809 = vxpose.xlu0.c.b16.cont [3/8] 0, 128
      %2810 = vxpose.xlu0.c.b16.cont [4/8] 0, 128
      %2811 = vxpose.xlu0.c.b16.cont [5/8] 0, 128
      %2812 = vxpose.xlu0.c.b16.cont [6/8] 0, 128
      %2813 = vxpose.xlu0.c.b16.cont [7/8] 0, 128
      %2814 = vxpose.xlu0.c.b16.end [8/8] 0, 128
      %v2815 = vpop.trf.xlu0
      %v2816 = vpop.trf.xlu0
      %v2817 = vpop.trf.xlu0
      %v2818 = vpop.trf.xlu0
      %v2819 = vpop.trf.xlu0
      %v2820 = vpop.trf.xlu0
      %v2821 = vpop.trf.xlu0
      %v2822 = vpop.trf.xlu0
      %2823 = vxpose.xlu0.c.b16.start [1/8] %v2432, 128
      %2824 = vxpose.xlu0.c.b16.cont [2/8] 0, 128
      %2825 = vxpose.xlu0.c.b16.cont [3/8] 0, 128
      %2826 = vxpose.xlu0.c.b16.cont [4/8] 0, 128
      %2827 = vxpose.xlu0.c.b16.cont [5/8] 0, 128
      %2828 = vxpose.xlu0.c.b16.cont [6/8] 0, 128
      %2829 = vxpose.xlu0.c.b16.cont [7/8] 0, 128
      %2830 = vxpose.xlu0.c.b16.end [8/8] 0, 128
      %v2831 = vpop.trf.xlu0
      %v2832 = vpop.trf.xlu0
      %v2833 = vpop.trf.xlu0
      %v2834 = vpop.trf.xlu0
      %v2835 = vpop.trf.xlu0
      %v2836 = vpop.trf.xlu0
      %v2837 = vpop.trf.xlu0
      %v2838 = vpop.trf.xlu0
      %2839 = vxpose.xlu0.c.b16.start [1/8] %v2433, 128
      %2840 = vxpose.xlu0.c.b16.cont [2/8] 0, 128
      %2841 = vxpose.xlu0.c.b16.cont [3/8] 0, 128
      %2842 = vxpose.xlu0.c.b16.cont [4/8] 0, 128
      %2843 = vxpose.xlu0.c.b16.cont [5/8] 0, 128
      %2844 = vxpose.xlu0.c.b16.cont [6/8] 0, 128
      %2845 = vxpose.xlu0.c.b16.cont [7/8] 0, 128
      %2846 = vxpose.xlu0.c.b16.end [8/8] 0, 128
      %v2847 = vpop.trf.xlu0
      %v2848 = vpop.trf.xlu0
      %v2849 = vpop.trf.xlu0
      %v2850 = vpop.trf.xlu0
      %v2851 = vpop.trf.xlu0
      %v2852 = vpop.trf.xlu0
      %v2853 = vpop.trf.xlu0
      %v2854 = vpop.trf.xlu0
      %2855 = vxpose.xlu0.c.b16.start [1/8] %v2434, 128
      %2856 = vxpose.xlu0.c.b16.cont [2/8] 0, 128
      %2857 = vxpose.xlu0.c.b16.cont [3/8] 0, 128
      %2858 = vxpose.xlu0.c.b16.cont [4/8] 0, 128
      %2859 = vxpose.xlu0.c.b16.cont [5/8] 0, 128
      %2860 = vxpose.xlu0.c.b16.cont [6/8] 0, 128
      %2861 = vxpose.xlu0.c.b16.cont [7/8] 0, 128
      %2862 = vxpose.xlu0.c.b16.end [8/8] 0, 128
      %v2863 = vpop.trf.xlu0
      %v2864 = vpop.trf.xlu0
      %v2865 = vpop.trf.xlu0
      %v2866 = vpop.trf.xlu0
      %v2867 = vpop.trf.xlu0
      %v2868 = vpop.trf.xlu0
      %v2869 = vpop.trf.xlu0
      %v2870 = vpop.trf.xlu0
      %2871 = vxpose.xlu0.c.b16.start [1/8] %v2435, 128
      %2872 = vxpose.xlu0.c.b16.cont [2/8] 0, 128
      %2873 = vxpose.xlu0.c.b16.cont [3/8] 0, 128
      %2874 = vxpose.xlu0.c.b16.cont [4/8] 0, 128
      %2875 = vxpose.xlu0.c.b16.cont [5/8] 0, 128
      %2876 = vxpose.xlu0.c.b16.cont [6/8] 0, 128
      %2877 = vxpose.xlu0.c.b16.cont [7/8] 0, 128
      %2878 = vxpose.xlu0.c.b16.end [8/8] 0, 128
      %v2879 = vpop.trf.xlu0
      %v2880 = vpop.trf.xlu0
      %v2881 = vpop.trf.xlu0
      %v2882 = vpop.trf.xlu0
      %v2883 = vpop.trf.xlu0
      %v2884 = vpop.trf.xlu0
      %v2885 = vpop.trf.xlu0
      %v2886 = vpop.trf.xlu0
      %2887 = vxpose.xlu0.c.b16.start [1/8] %v2436, 128
      %2888 = vxpose.xlu0.c.b16.cont [2/8] 0, 128
      %2889 = vxpose.xlu0.c.b16.cont [3/8] 0, 128
      %2890 = vxpose.xlu0.c.b16.cont [4/8] 0, 128
      %2891 = vxpose.xlu0.c.b16.cont [5/8] 0, 128
      %2892 = vxpose.xlu0.c.b16.cont [6/8] 0, 128
      %2893 = vxpose.xlu0.c.b16.cont [7/8] 0, 128
      %2894 = vxpose.xlu0.c.b16.end [8/8] 0, 128
      %v2895 = vpop.trf.xlu0
      %v2896 = vpop.trf.xlu0
      %v2897 = vpop.trf.xlu0
      %v2898 = vpop.trf.xlu0
      %v2899 = vpop.trf.xlu0
      %v2900 = vpop.trf.xlu0
      %v2901 = vpop.trf.xlu0
      %v2902 = vpop.trf.xlu0
      %2903 = vxpose.xlu0.c.b16.start [1/8] %v2437, 128
      %2904 = vxpose.xlu0.c.b16.cont [2/8] 0, 128
      %2905 = vxpose.xlu0.c.b16.cont [3/8] 0, 128
      %2906 = vxpose.xlu0.c.b16.cont [4/8] 0, 128
      %2907 = vxpose.xlu0.c.b16.cont [5/8] 0, 128
      %2908 = vxpose.xlu0.c.b16.cont [6/8] 0, 128
      %2909 = vxpose.xlu0.c.b16.cont [7/8] 0, 128
      %2910 = vxpose.xlu0.c.b16.end [8/8] 0, 128
      %v2911 = vpop.trf.xlu0
      %v2912 = vpop.trf.xlu0
      %v2913 = vpop.trf.xlu0
      %v2914 = vpop.trf.xlu0
      %v2915 = vpop.trf.xlu0
      %v2916 = vpop.trf.xlu0
      %v2917 = vpop.trf.xlu0
      %v2918 = vpop.trf.xlu0
      %2919 = vxpose.xlu0.c.b16.start [1/8] %v2438, 128
      %2920 = vxpose.xlu0.c.b16.cont [2/8] 0, 128
      %2921 = vxpose.xlu0.c.b16.cont [3/8] 0, 128
      %2922 = vxpose.xlu0.c.b16.cont [4/8] 0, 128
      %2923 = vxpose.xlu0.c.b16.cont [5/8] 0, 128
      %2924 = vxpose.xlu0.c.b16.cont [6/8] 0, 128
      %2925 = vxpose.xlu0.c.b16.cont [7/8] 0, 128
      %2926 = vxpose.xlu0.c.b16.end [8/8] 0, 128
      %v2927 = vpop.trf.xlu0
      %v2928 = vpop.trf.xlu0
      %v2929 = vpop.trf.xlu0
      %v2930 = vpop.trf.xlu0
      %v2931 = vpop.trf.xlu0
      %v2932 = vpop.trf.xlu0
      %v2933 = vpop.trf.xlu0
      %v2934 = vpop.trf.xlu0
      %2935 = vxpose.xlu0.c.b16.start [1/8] %v2439, 128
      %2936 = vxpose.xlu0.c.b16.cont [2/8] 0, 128
      %2937 = vxpose.xlu0.c.b16.cont [3/8] 0, 128
      %2938 = vxpose.xlu0.c.b16.cont [4/8] 0, 128
      %2939 = vxpose.xlu0.c.b16.cont [5/8] 0, 128
      %2940 = vxpose.xlu0.c.b16.cont [6/8] 0, 128
      %2941 = vxpose.xlu0.c.b16.cont [7/8] 0, 128
      %2942 = vxpose.xlu0.c.b16.end [8/8] 0, 128
      %v2943 = vpop.trf.xlu0
      %v2944 = vpop.trf.xlu0
      %v2945 = vpop.trf.xlu0
      %v2946 = vpop.trf.xlu0
      %v2947 = vpop.trf.xlu0
      %v2948 = vpop.trf.xlu0
      %v2949 = vpop.trf.xlu0
      %v2950 = vpop.trf.xlu0
      %2951 = vxpose.xlu0.c.b16.start [1/8] %v2440, 128
      %2952 = vxpose.xlu0.c.b16.cont [2/8] 0, 128
      %2953 = vxpose.xlu0.c.b16.cont [3/8] 0, 128
      %2954 = vxpose.xlu0.c.b16.cont [4/8] 0, 128
      %2955 = vxpose.xlu0.c.b16.cont [5/8] 0, 128
      %2956 = vxpose.xlu0.c.b16.cont [6/8] 0, 128
      %2957 = vxpose.xlu0.c.b16.cont [7/8] 0, 128
      %2958 = vxpose.xlu0.c.b16.end [8/8] 0, 128
      %v2959 = vpop.trf.xlu0
      %v2960 = vpop.trf.xlu0
      %v2961 = vpop.trf.xlu0
      %v2962 = vpop.trf.xlu0
      %v2963 = vpop.trf.xlu0
      %v2964 = vpop.trf.xlu0
      %v2965 = vpop.trf.xlu0
      %v2966 = vpop.trf.xlu0
      %2967 = vxpose.xlu0.c.b16.start [1/8] %v2441, 128
      %2968 = vxpose.xlu0.c.b16.cont [2/8] 0, 128
      %2969 = vxpose.xlu0.c.b16.cont [3/8] 0, 128
      %2970 = vxpose.xlu0.c.b16.cont [4/8] 0, 128
      %2971 = vxpose.xlu0.c.b16.cont [5/8] 0, 128
      %2972 = vxpose.xlu0.c.b16.cont [6/8] 0, 128
      %2973 = vxpose.xlu0.c.b16.cont [7/8] 0, 128
      %2974 = vxpose.xlu0.c.b16.end [8/8] 0, 128
      %v2975 = vpop.trf.xlu0
      %v2976 = vpop.trf.xlu0
      %v2977 = vpop.trf.xlu0
      %v2978 = vpop.trf.xlu0
      %v2979 = vpop.trf.xlu0
      %v2980 = vpop.trf.xlu0
      %v2981 = vpop.trf.xlu0
      %v2982 = vpop.trf.xlu0
      %v2983 = vrot.slane %v2671, 4
      %v2984 = vsel %vm2443, %v2983, %v2607
      %v2986 = vunpack.c.l.s4 1983009808
      %v2987 = vunpack.c.0.s8 %v2986
      %v2988 = vperm.slane %v2984, %v2987
      %v2989 = vrot.slane %v2703, 4
      %v2990 = vsel %vm2443, %v2989, %v2639
      %v2992 = vunpack.c.l.s4 1983009808
      %v2993 = vunpack.c.0.s8 %v2992
      %v2994 = vperm.slane %v2990, %v2993
      %v2995 = vrot.slane %v2799, 4
      %v2996 = vsel %vm2443, %v2995, %v2735
      %v2998 = vunpack.c.l.s4 1983009808
      %v2999 = vunpack.c.0.s8 %v2998
      %v3000 = vperm.slane %v2996, %v2999
      %v3001 = vrot.slane %v2831, 4
      %v3002 = vsel %vm2443, %v3001, %v2767
      %v3004 = vunpack.c.l.s4 1983009808
      %v3005 = vunpack.c.0.s8 %v3004
      %v3006 = vperm.slane %v3002, %v3005
      %v3007 = vrot.slane %v2994, 4
      %v3008 = vsel %vm2443, %v3007, %v2988
      %v3009 = vrot.slane %v2988, 4
      %v3010 = vsel %vm2443, %v2994, %v3009
      %v3012 = vunpack.c.l.s4 1934713408
      %v3013 = vunpack.c.0.s8 %v3012
      %v3014 = vperm.slane %v3008, %v3013
      %v3016 = vunpack.c.l.s4 1934713408
      %v3017 = vunpack.c.0.s8 %v3016
      %v3018 = vperm.slane %v3010, %v3017
      %v3019 = vrot.slane %v3006, 4
      %v3020 = vsel %vm2443, %v3019, %v3000
      %v3021 = vrot.slane %v3000, 4
      %v3022 = vsel %vm2443, %v3006, %v3021
      %v3024 = vunpack.c.l.s4 1934713408
      %v3025 = vunpack.c.0.s8 %v3024
      %v3026 = vperm.slane %v3020, %v3025
      %v3028 = vunpack.c.l.s4 1934713408
      %v3029 = vunpack.c.0.s8 %v3028
      %v3030 = vperm.slane %v3022, %v3029
      %v3031 = vrot.slane %v3026, 4
      %v3032 = vsel %vm2443, %v3031, %v3014
      %v3033 = vrot.slane %v3014, 4
      %v3034 = vsel %vm2443, %v3026, %v3033
      %v3035 = vrot.slane %v3030, 4
      %v3036 = vsel %vm2443, %v3035, %v3018
      %v3037 = vrot.slane %v3018, 4
      %v3038 = vsel %vm2443, %v3030, %v3037
      %v3039 = vrot.slane %v2687, 4
      %v3040 = vsel %vm2443, %v3039, %v2623
      %v3042 = vunpack.c.l.s4 1983009808
      %v3043 = vunpack.c.0.s8 %v3042
      %v3044 = vperm.slane %v3040, %v3043
      %v3045 = vrot.slane %v2719, 4
      %v3046 = vsel %vm2443, %v3045, %v2655
      %v3048 = vunpack.c.l.s4 1983009808
      %v3049 = vunpack.c.0.s8 %v3048
      %v3050 = vperm.slane %v3046, %v3049
      %v3051 = vrot.slane %v2815, 4
      %v3052 = vsel %vm2443, %v3051, %v2751
      %v3054 = vunpack.c.l.s4 1983009808
      %v3055 = vunpack.c.0.s8 %v3054
      %v3056 = vperm.slane %v3052, %v3055
      %v3057 = vrot.slane %v2847, 4
      %v3058 = vsel %vm2443, %v3057, %v2783
      %v3060 = vunpack.c.l.s4 1983009808
      %v3061 = vunpack.c.0.s8 %v3060
      %v3062 = vperm.slane %v3058, %v3061
      %v3063 = vrot.slane %v3050, 4
      %v3064 = vsel %vm2443, %v3063, %v3044
      %v3065 = vrot.slane %v3044, 4
      %v3066 = vsel %vm2443, %v3050, %v3065
      %v3068 = vunpack.c.l.s4 1934713408
      %v3069 = vunpack.c.0.s8 %v3068
      %v3070 = vperm.slane %v3064, %v3069
      %v3072 = vunpack.c.l.s4 1934713408
      %v3073 = vunpack.c.0.s8 %v3072
      %v3074 = vperm.slane %v3066, %v3073
      %v3075 = vrot.slane %v3062, 4
      %v3076 = vsel %vm2443, %v3075, %v3056
      %v3077 = vrot.slane %v3056, 4
      %v3078 = vsel %vm2443, %v3062, %v3077
      %v3080 = vunpack.c.l.s4 1934713408
      %v3081 = vunpack.c.0.s8 %v3080
      %v3082 = vperm.slane %v3076, %v3081
      %v3084 = vunpack.c.l.s4 1934713408
      %v3085 = vunpack.c.0.s8 %v3084
      %v3086 = vperm.slane %v3078, %v3085
      %v3087 = vrot.slane %v3082, 4
      %v3088 = vsel %vm2443, %v3087, %v3070
      %v3089 = vrot.slane %v3070, 4
      %v3090 = vsel %vm2443, %v3082, %v3089
      %v3091 = vrot.slane %v3086, 4
      %v3092 = vsel %vm2443, %v3091, %v3074
      %v3093 = vrot.slane %v3074, 4
      %v3094 = vsel %vm2443, %v3086, %v3093
      %v3095 = vrot.slane %v2927, 4
      %v3096 = vsel %vm2443, %v3095, %v2863
      %v3098 = vunpack.c.l.s4 1983009808
      %v3099 = vunpack.c.0.s8 %v3098
      %v3100 = vperm.slane %v3096, %v3099
      %v3101 = vrot.slane %v2959, 4
      %v3102 = vsel %vm2443, %v3101, %v2895
      %v3104 = vunpack.c.l.s4 1983009808
      %v3105 = vunpack.c.0.s8 %v3104
      %v3106 = vperm.slane %v3102, %v3105
      %v3107 = vrot.slane %v3106, 4
      %v3108 = vsel %vm2443, %v3107, %v3100
      %v3109 = vrot.slane %v3100, 4
      %v3110 = vsel %vm2443, %v3106, %v3109
      %v3112 = vunpack.c.l.s4 1934713408
      %v3113 = vunpack.c.0.s8 %v3112
      %v3114 = vperm.slane %v3108, %v3113
      %v3116 = vunpack.c.l.s4 1934713408
      %v3117 = vunpack.c.0.s8 %v3116
      %v3118 = vperm.slane %v3110, %v3117
      %v3119 = vrot.slane %v3114, 4
      %v3120 = vsel %vm2443, 0, %v3119
      %v3121 = vrot.slane %v3118, 4
      %v3122 = vsel %vm2443, 0, %v3121
      %v3123 = vrot.slane %v2943, 4
      %v3124 = vsel %vm2443, %v3123, %v2879
      %v3126 = vunpack.c.l.s4 1983009808
      %v3127 = vunpack.c.0.s8 %v3126
      %v3128 = vperm.slane %v3124, %v3127
      %v3129 = vrot.slane %v2975, 4
      %v3130 = vsel %vm2443, %v3129, %v2911
      %v3132 = vunpack.c.l.s4 1983009808
      %v3133 = vunpack.c.0.s8 %v3132
      %v3134 = vperm.slane %v3130, %v3133
      %v3135 = vrot.slane %v3134, 4
      %v3136 = vsel %vm2443, %v3135, %v3128
      %v3137 = vrot.slane %v3128, 4
      %v3138 = vsel %vm2443, %v3134, %v3137
      %v3140 = vunpack.c.l.s4 1934713408
      %v3141 = vunpack.c.0.s8 %v3140
      %v3142 = vperm.slane %v3136, %v3141
      %v3144 = vunpack.c.l.s4 1934713408
      %v3145 = vunpack.c.0.s8 %v3144
      %v3146 = vperm.slane %v3138, %v3145
      %v3147 = vrot.slane %v3142, 4
      %v3148 = vsel %vm2443, 0, %v3147
      %v3149 = vrot.slane %v3146, 4
      %v3150 = vsel %vm2443, 0, %v3149
      %v3153 = vpack.i.b16 %v3088, %v3032
      %v3155 = vshrl.u32 %v3032, 16
      %v3156 = vshrl.u32 %v3088, 16
      %v3157 = vpack.i.b16 %v3156, %v3155
      %v3161 = vpack.i.b16 %v3090, %v3034
      %v3163 = vshrl.u32 %v3034, 16
      %v3164 = vshrl.u32 %v3090, 16
      %v3165 = vpack.i.b16 %v3164, %v3163
      %v3169 = vpack.i.b16 %v3092, %v3036
      %v3171 = vshrl.u32 %v3036, 16
      %v3172 = vshrl.u32 %v3092, 16
      %v3173 = vpack.i.b16 %v3172, %v3171
      %v3177 = vpack.i.b16 %v3094, %v3038
      %v3179 = vshrl.u32 %v3038, 16
      %v3180 = vshrl.u32 %v3094, 16
      %v3181 = vpack.i.b16 %v3180, %v3179
      %v3185 = vpack.i.b16 %v3142, %v3114
      %v3187 = vshrl.u32 %v3114, 16
      %v3188 = vshrl.u32 %v3142, 16
      %v3189 = vpack.i.b16 %v3188, %v3187
      %v3193 = vpack.i.b16 %v3148, %v3120
      %v3195 = vshrl.u32 %v3120, 16
      %v3196 = vshrl.u32 %v3148, 16
      %v3197 = vpack.i.b16 %v3196, %v3195
      %v3201 = vpack.i.b16 %v3146, %v3118
      %v3203 = vshrl.u32 %v3118, 16
      %v3204 = vshrl.u32 %v3146, 16
      %v3205 = vpack.i.b16 %v3204, %v3203
      %v3209 = vpack.i.b16 %v3150, %v3122
      %v3211 = vshrl.u32 %v3122, 16
      %v3212 = vshrl.u32 %v3150, 16
      %v3213 = vpack.i.b16 %v3212, %v3211
      %3215 = vxpose.xlu0.c.b16.start [1/8] %v3153, 128
      %3216 = vxpose.xlu0.c.b16.cont [2/8] %v3185, 128
      %3217 = vxpose.xlu0.c.b16.cont [3/8] 0, 128
      %3218 = vxpose.xlu0.c.b16.cont [4/8] 0, 128
      %3219 = vxpose.xlu0.c.b16.cont [5/8] 0, 128
      %3220 = vxpose.xlu0.c.b16.cont [6/8] 0, 128
      %3221 = vxpose.xlu0.c.b16.cont [7/8] 0, 128
      %3222 = vxpose.xlu0.c.b16.end [8/8] 0, 128
      %v3223 = vpop.trf.xlu0
      %v3224 = vpop.trf.xlu0
      %v3225 = vpop.trf.xlu0
      %v3226 = vpop.trf.xlu0
      %v3227 = vpop.trf.xlu0
      %v3228 = vpop.trf.xlu0
      %v3229 = vpop.trf.xlu0
      %v3230 = vpop.trf.xlu0
      %3231 = vxpose.xlu0.c.b16.start [1/8] %v3157, 128
      %3232 = vxpose.xlu0.c.b16.cont [2/8] %v3189, 128
      %3233 = vxpose.xlu0.c.b16.cont [3/8] 0, 128
      %3234 = vxpose.xlu0.c.b16.cont [4/8] 0, 128
      %3235 = vxpose.xlu0.c.b16.cont [5/8] 0, 128
      %3236 = vxpose.xlu0.c.b16.cont [6/8] 0, 128
      %3237 = vxpose.xlu0.c.b16.cont [7/8] 0, 128
      %3238 = vxpose.xlu0.c.b16.end [8/8] 0, 128
      %v3239 = vpop.trf.xlu0
      %v3240 = vpop.trf.xlu0
      %v3241 = vpop.trf.xlu0
      %v3242 = vpop.trf.xlu0
      %v3243 = vpop.trf.xlu0
      %v3244 = vpop.trf.xlu0
      %v3245 = vpop.trf.xlu0
      %v3246 = vpop.trf.xlu0
      %3247 = vxpose.xlu0.c.b16.start [1/8] %v3161, 128
      %3248 = vxpose.xlu0.c.b16.cont [2/8] %v3193, 128
      %3249 = vxpose.xlu0.c.b16.cont [3/8] 0, 128
      %3250 = vxpose.xlu0.c.b16.cont [4/8] 0, 128
      %3251 = vxpose.xlu0.c.b16.cont [5/8] 0, 128
      %3252 = vxpose.xlu0.c.b16.cont [6/8] 0, 128
      %3253 = vxpose.xlu0.c.b16.cont [7/8] 0, 128
      %3254 = vxpose.xlu0.c.b16.end [8/8] 0, 128
      %v3255 = vpop.trf.xlu0
      %v3256 = vpop.trf.xlu0
      %v3257 = vpop.trf.xlu0
      %v3258 = vpop.trf.xlu0
      %v3259 = vpop.trf.xlu0
      %v3260 = vpop.trf.xlu0
      %v3261 = vpop.trf.xlu0
      %v3262 = vpop.trf.xlu0
      %3263 = vxpose.xlu0.c.b16.start [1/8] %v3165, 128
      %3264 = vxpose.xlu0.c.b16.cont [2/8] %v3197, 128
      %3265 = vxpose.xlu0.c.b16.cont [3/8] 0, 128
      %3266 = vxpose.xlu0.c.b16.cont [4/8] 0, 128
      %3267 = vxpose.xlu0.c.b16.cont [5/8] 0, 128
      %3268 = vxpose.xlu0.c.b16.cont [6/8] 0, 128
      %3269 = vxpose.xlu0.c.b16.cont [7/8] 0, 128
      %3270 = vxpose.xlu0.c.b16.end [8/8] 0, 128
      %v3271 = vpop.trf.xlu0
      %v3272 = vpop.trf.xlu0
      %v3273 = vpop.trf.xlu0
      %v3274 = vpop.trf.xlu0
      %v3275 = vpop.trf.xlu0
      %v3276 = vpop.trf.xlu0
      %v3277 = vpop.trf.xlu0
      %v3278 = vpop.trf.xlu0
      %3279 = vxpose.xlu0.c.b16.start [1/8] %v3169, 128
      %3280 = vxpose.xlu0.c.b16.cont [2/8] %v3201, 128
      %3281 = vxpose.xlu0.c.b16.cont [3/8] 0, 128
      %3282 = vxpose.xlu0.c.b16.cont [4/8] 0, 128
      %3283 = vxpose.xlu0.c.b16.cont [5/8] 0, 128
      %3284 = vxpose.xlu0.c.b16.cont [6/8] 0, 128
      %3285 = vxpose.xlu0.c.b16.cont [7/8] 0, 128
      %3286 = vxpose.xlu0.c.b16.end [8/8] 0, 128
      %v3287 = vpop.trf.xlu0
      %v3288 = vpop.trf.xlu0
      %v3289 = vpop.trf.xlu0
      %v3290 = vpop.trf.xlu0
      %v3291 = vpop.trf.xlu0
      %v3292 = vpop.trf.xlu0
      %v3293 = vpop.trf.xlu0
      %v3294 = vpop.trf.xlu0
      %3295 = vxpose.xlu0.c.b16.start [1/8] %v3173, 128
      %3296 = vxpose.xlu0.c.b16.cont [2/8] %v3205, 128
      %3297 = vxpose.xlu0.c.b16.cont [3/8] 0, 128
      %3298 = vxpose.xlu0.c.b16.cont [4/8] 0, 128
      %3299 = vxpose.xlu0.c.b16.cont [5/8] 0, 128
      %3300 = vxpose.xlu0.c.b16.cont [6/8] 0, 128
      %3301 = vxpose.xlu0.c.b16.cont [7/8] 0, 128
      %3302 = vxpose.xlu0.c.b16.end [8/8] 0, 128
      %v3303 = vpop.trf.xlu0
      %v3304 = vpop.trf.xlu0
      %v3305 = vpop.trf.xlu0
      %v3306 = vpop.trf.xlu0
      %v3307 = vpop.trf.xlu0
      %v3308 = vpop.trf.xlu0
      %v3309 = vpop.trf.xlu0
      %v3310 = vpop.trf.xlu0
      %3311 = vxpose.xlu0.c.b16.start [1/8] %v3177, 128
      %3312 = vxpose.xlu0.c.b16.cont [2/8] %v3209, 128
      %3313 = vxpose.xlu0.c.b16.cont [3/8] 0, 128
      %3314 = vxpose.xlu0.c.b16.cont [4/8] 0, 128
      %3315 = vxpose.xlu0.c.b16.cont [5/8] 0, 128
      %3316 = vxpose.xlu0.c.b16.cont [6/8] 0, 128
      %3317 = vxpose.xlu0.c.b16.cont [7/8] 0, 128
      %3318 = vxpose.xlu0.c.b16.end [8/8] 0, 128
      %v3319 = vpop.trf.xlu0
      %v3320 = vpop.trf.xlu0
      %v3321 = vpop.trf.xlu0
      %v3322 = vpop.trf.xlu0
      %v3323 = vpop.trf.xlu0
      %v3324 = vpop.trf.xlu0
      %v3325 = vpop.trf.xlu0
      %v3326 = vpop.trf.xlu0
      %3327 = vxpose.xlu0.c.b16.start [1/8] %v3181, 128
      %3328 = vxpose.xlu0.c.b16.cont [2/8] %v3213, 128
      %3329 = vxpose.xlu0.c.b16.cont [3/8] 0, 128
      %3330 = vxpose.xlu0.c.b16.cont [4/8] 0, 128
      %3331 = vxpose.xlu0.c.b16.cont [5/8] 0, 128
      %3332 = vxpose.xlu0.c.b16.cont [6/8] 0, 128
      %3333 = vxpose.xlu0.c.b16.cont [7/8] 0, 128
      %3334 = vxpose.xlu0.c.b16.end [8/8] 0, 128
      %v3335 = vpop.trf.xlu0
      %v3336 = vpop.trf.xlu0
      %v3337 = vpop.trf.xlu0
      %v3338 = vpop.trf.xlu0
      %v3339 = vpop.trf.xlu0
      %v3340 = vpop.trf.xlu0
      %v3341 = vpop.trf.xlu0
      %v3342 = vpop.trf.xlu0
      %v3343 = vrot.slane %v3287, 4
      %v3344 = vsel %vm2443, %v3343, %v3223
      %v3346 = vunpack.c.l.s4 1983009808
      %v3347 = vunpack.c.0.s8 %v3346
      %v3348 = vperm.slane %v3344, %v3347
      %v3349 = vrot.slane %v3319, 4
      %v3350 = vsel %vm2443, %v3349, %v3255
      %v3352 = vunpack.c.l.s4 1983009808
      %v3353 = vunpack.c.0.s8 %v3352
      %v3354 = vperm.slane %v3350, %v3353
      %v3355 = vrot.slane %v3354, 4
      %v3356 = vsel %vm2443, %v3355, %v3348
      %v3358 = vunpack.c.l.s4 1934713408
      %v3359 = vunpack.c.0.s8 %v3358
      %v3360 = vperm.slane %v3356, %v3359
      %v3361 = vrot.slane %v3360, 4
      %v3362 = vsel %vm2443, 0, %v3361
      %v3363 = vrot.slane %v3303, 4
      %v3364 = vsel %vm2443, %v3363, %v3239
      %v3366 = vunpack.c.l.s4 1983009808
      %v3367 = vunpack.c.0.s8 %v3366
      %v3368 = vperm.slane %v3364, %v3367
      %v3369 = vrot.slane %v3335, 4
      %v3370 = vsel %vm2443, %v3369, %v3271
      %v3372 = vunpack.c.l.s4 1983009808
      %v3373 = vunpack.c.0.s8 %v3372
      %v3374 = vperm.slane %v3370, %v3373
      %v3375 = vrot.slane %v3374, 4
      %v3376 = vsel %vm2443, %v3375, %v3368
      %v3378 = vunpack.c.l.s4 1934713408
      %v3379 = vunpack.c.0.s8 %v3378
      %v3380 = vperm.slane %v3376, %v3379
      %v3381 = vrot.slane %v3380, 4
      %v3382 = vsel %vm2443, 0, %v3381
      %v3385 = vpack.i.b16 %v3380, %v3360
      %v3386 = vshrl.u32 %v3360, 16
      %v3387 = vshrl.u32 %v3380, 16
      %v3388 = vpack.i.b16 %v3387, %v3386
      %v3391 = vpack.i.b16 %v3382, %v3362
      %v3392 = vshrl.u32 %v3362, 16
      %v3393 = vshrl.u32 %v3382, 16
      %v3394 = vpack.i.b16 %v3393, %v3392
      %v3395 = vunpack.c.l.b16 %v2565
      %v3396 = vunpack.c.l.b16 %v2577
      %v3397 = vunpack.c.l.b16 %v2589
      %v3398 = vpack.c.b16 %v3396, %v3395
      %v3399 = vpack.c.b16 %v3397, %v3397
      %vm3400 = vcmask 64512
      %v3402 = vsel %vm3400, %v3398, 0
      %v3405 = vsel %vm3400, %v3399, 0
      %vm3407 = vcmask 1043456
      %v3409 = vsel %vm3407, %v3385, 0
      %3411 = vmatpush.bf16.msra.mxu0 0
      %3412 = vmatpush.bf16.msra.mxu0 0
      %3413 = vmatpush.bf16.msra.mxu0 0
      %3414 = vmatpush.bf16.msra.mxu0 0
      %3415 = vmatpush.bf16.msra.mxu0 0
      %3416 = vmatpush.bf16.msra.mxu0 0
      %3417 = vmatpush.bf16.msra.mxu0 0
      %3418 = vmatpush.bf16.msra.mxu0 %v3409
      %3419 = vmatmul.bf16.gmra.mxu0 %v3402
      %v3420 = vpop.f32.mrf.mxu0
      %v3421 = vadd.f32 0.0, %v3420
      %v3422 = vpop.f32.mrf.mxu0
      %v3423 = vadd.f32 0.0, %v3422
      %3424 = vmatmul.bf16.gmra.mxu0 %v3405
      %v3425 = vpop.f32.mrf.mxu0
      %v3426 = vadd.f32 0.0, %v3425
      %v3427 = vpop.f32.mrf.mxu0
      %3428 = vdwg.mxu0
      %v3429 = vunpack.c.l.b16 %v2568
      %v3430 = vunpack.c.l.b16 %v2580
      %v3431 = vunpack.c.l.b16 %v2592
      %v3432 = vpack.c.b16 %v3430, %v3429
      %v3433 = vpack.c.b16 %v3431, %v3431
      %v3435 = vsel %vm3400, %v3432, 0
      %v3438 = vsel %vm3400, %v3433, 0
      %v3441 = vsel %vm3407, %v3388, 0
      %3443 = vmatpush.bf16.msra.mxu0 0
      %3444 = vmatpush.bf16.msra.mxu0 0
      %3445 = vmatpush.bf16.msra.mxu0 0
      %3446 = vmatpush.bf16.msra.mxu0 0
      %3447 = vmatpush.bf16.msra.mxu0 0
      %3448 = vmatpush.bf16.msra.mxu0 0
      %3449 = vmatpush.bf16.msra.mxu0 0
      %3450 = vmatpush.bf16.msra.mxu0 %v3441
      %3451 = vmatmul.bf16.gmra.mxu0 %v3435
      %v3452 = vpop.f32.mrf.mxu0
      %v3453 = vadd.f32 0.0, %v3452
      %v3454 = vpop.f32.mrf.mxu0
      %v3455 = vadd.f32 0.0, %v3454
      %3456 = vmatmul.bf16.gmra.mxu0 %v3438
      %v3457 = vpop.f32.mrf.mxu0
      %v3458 = vadd.f32 0.0, %v3457
      %v3459 = vpop.f32.mrf.mxu0
      %3460 = vdwg.mxu0
      %v3461 = vunpack.c.l.b16 %v2571
      %v3462 = vunpack.c.l.b16 %v2583
      %v3463 = vunpack.c.l.b16 %v2595
      %v3464 = vpack.c.b16 %v3462, %v3461
      %v3465 = vpack.c.b16 %v3463, %v3463
      %v3467 = vsel %vm3400, %v3464, 0
      %v3470 = vsel %vm3400, %v3465, 0
      %v3473 = vsel %vm3407, %v3391, 0
      %3475 = vmatpush.bf16.msra.mxu0 0
      %3476 = vmatpush.bf16.msra.mxu0 0
      %3477 = vmatpush.bf16.msra.mxu0 0
      %3478 = vmatpush.bf16.msra.mxu0 0
      %3479 = vmatpush.bf16.msra.mxu0 0
      %3480 = vmatpush.bf16.msra.mxu0 0
      %3481 = vmatpush.bf16.msra.mxu0 0
      %3482 = vmatpush.bf16.msra.mxu0 %v3473
      %3483 = vmatmul.bf16.gmra.mxu0 %v3467
      %v3484 = vpop.f32.mrf.mxu0
      %v3485 = vadd.f32 0.0, %v3484
      %v3486 = vpop.f32.mrf.mxu0
      %v3487 = vadd.f32 0.0, %v3486
      %3488 = vmatmul.bf16.gmra.mxu0 %v3470
      %v3489 = vpop.f32.mrf.mxu0
      %v3490 = vadd.f32 0.0, %v3489
      %v3491 = vpop.f32.mrf.mxu0
      %3492 = vdwg.mxu0
      %v3493 = vunpack.c.l.b16 %v2574
      %v3494 = vunpack.c.l.b16 %v2586
      %v3495 = vunpack.c.l.b16 %v2598
      %v3496 = vpack.c.b16 %v3494, %v3493
      %v3497 = vpack.c.b16 %v3495, %v3495
      %v3499 = vsel %vm3400, %v3496, 0
      %v3502 = vsel %vm3400, %v3497, 0
      %v3505 = vsel %vm3407, %v3394, 0
      %3507 = vmatpush.bf16.msra.mxu0 0
      %3508 = vmatpush.bf16.msra.mxu0 0
      %3509 = vmatpush.bf16.msra.mxu0 0
      %3510 = vmatpush.bf16.msra.mxu0 0
      %3511 = vmatpush.bf16.msra.mxu0 0
      %3512 = vmatpush.bf16.msra.mxu0 0
      %3513 = vmatpush.bf16.msra.mxu0 0
      %3514 = vmatpush.bf16.msra.mxu0 %v3505
      %3515 = vmatmul.bf16.gmra.mxu0 %v3499
      %v3516 = vpop.f32.mrf.mxu0
      %v3517 = vadd.f32 0.0, %v3516
      %v3518 = vpop.f32.mrf.mxu0
      %v3519 = vadd.f32 0.0, %v3518
      %3520 = vmatmul.bf16.gmra.mxu0 %v3502
      %v3521 = vpop.f32.mrf.mxu0
      %v3522 = vadd.f32 0.0, %v3521
      %v3523 = vpop.f32.mrf.mxu0
      %3524 = vdwg.mxu0
      %v3525 = vlaneseq
      %v3526 = vand.u32 %v3525, 127
      %vm3527 = vcmp.lt.s32.totalorder %v3526, 17
      %v3528 = vsel %vm3527, 1, 0
      %vm3529 = vcmp.eq.s32.totalorder %v3528, 1
      %v3530 = vsel %vm3529, %v3421, -1e+30
      %v3531 = vsel %vm3529, %v3423, -1e+30
      %v3532 = vsel %vm3529, %v3426, -1e+30
      %v3533 = vsel %vm3529, %v3453, -1e+30
      %v3534 = vsel %vm3529, %v3455, -1e+30
      %v3535 = vsel %vm3529, %v3458, -1e+30
      %v3536 = vsel %vm3529, %v3485, -1e+30
      %v3537 = vsel %vm3529, %v3487, -1e+30
      %v3538 = vsel %vm3529, %v3490, -1e+30
      %v3539 = vsel %vm3529, %v3517, -1e+30
      %v3540 = vsel %vm3529, %v3519, -1e+30
      %v3541 = vsel %vm3529, %v3522, -1e+30
      %vm3542 = vcmask 195584
      %v3543 = vsel %vm3542, %v3530, -inf
      %3544 = vmax.xlane.f32.xlu0 %v3543
      %v3545 = vpop.xlane.xlu0 %3544
      %v3546 = vsel %vm3542, %v3531, -inf
      %3547 = vmax.xlane.f32.xlu0 %v3546
      %v3548 = vpop.xlane.xlu0 %3547
      %v3549 = vsel %vm3542, %v3532, -inf
      %3550 = vmax.xlane.f32.xlu0 %v3549
      %v3551 = vpop.xlane.xlu0 %3550
      %v3552 = vsel %vm3542, %v3533, -inf
      %3553 = vmax.xlane.f32.xlu0 %v3552
      %v3554 = vpop.xlane.xlu0 %3553
      %v3555 = vsel %vm3542, %v3534, -inf
      %3556 = vmax.xlane.f32.xlu0 %v3555
      %v3557 = vpop.xlane.xlu0 %3556
      %v3558 = vsel %vm3542, %v3535, -inf
      %3559 = vmax.xlane.f32.xlu0 %v3558
      %v3560 = vpop.xlane.xlu0 %3559
      %v3561 = vsel %vm3542, %v3536, -inf
      %3562 = vmax.xlane.f32.xlu0 %v3561
      %v3563 = vpop.xlane.xlu0 %3562
      %v3564 = vsel %vm3542, %v3537, -inf
      %3565 = vmax.xlane.f32.xlu0 %v3564
      %v3566 = vpop.xlane.xlu0 %3565
      %v3567 = vsel %vm3542, %v3538, -inf
      %3568 = vmax.xlane.f32.xlu0 %v3567
      %v3569 = vpop.xlane.xlu0 %3568
      %v3570 = vsel %vm3542, %v3539, -inf
      %3571 = vmax.xlane.f32.xlu0 %v3570
      %v3572 = vpop.xlane.xlu0 %3571
      %v3573 = vsel %vm3542, %v3540, -inf
      %3574 = vmax.xlane.f32.xlu0 %v3573
      %v3575 = vpop.xlane.xlu0 %3574
      %v3576 = vsel %vm3542, %v3541, -inf
      %3577 = vmax.xlane.f32.xlu0 %v3576
      %v3578 = vpop.xlane.xlu0 %3577
      %v3579 = vsub.f32 %v3530, %v3545
      %v3580 = vsub.f32 %v3531, %v3548
      %v3581 = vsub.f32 %v3532, %v3551
      %v3582 = vsub.f32 %v3533, %v3554
      %v3583 = vsub.f32 %v3534, %v3557
      %v3584 = vsub.f32 %v3535, %v3560
      %v3585 = vsub.f32 %v3536, %v3563
      %v3586 = vsub.f32 %v3537, %v3566
      %v3587 = vsub.f32 %v3538, %v3569
      %v3588 = vsub.f32 %v3539, %v3572
      %v3589 = vsub.f32 %v3540, %v3575
      %v3590 = vsub.f32 %v3541, %v3578
      %v3591 = vmul.f32 %v3579, 1.442695
      %v3592 = vpow.pop %v3591
      %v3593 = vmul.f32 %v3580, 1.442695
      %v3594 = vpow.pop %v3593
      %v3595 = vmul.f32 %v3581, 1.442695
      %v3596 = vpow.pop %v3595
      %v3597 = vmul.f32 %v3582, 1.442695
      %v3598 = vpow.pop %v3597
      %v3599 = vmul.f32 %v3583, 1.442695
      %v3600 = vpow.pop %v3599
      %v3601 = vmul.f32 %v3584, 1.442695
      %v3602 = vpow.pop %v3601
      %v3603 = vmul.f32 %v3585, 1.442695
      %v3604 = vpow.pop %v3603
      %v3605 = vmul.f32 %v3586, 1.442695
      %v3606 = vpow.pop %v3605
      %v3607 = vmul.f32 %v3587, 1.442695
      %v3608 = vpow.pop %v3607
      %v3609 = vmul.f32 %v3588, 1.442695
      %v3610 = vpow.pop %v3609
      %v3611 = vmul.f32 %v3589, 1.442695
      %v3612 = vpow.pop %v3611
      %v3613 = vmul.f32 %v3590, 1.442695
      %v3614 = vpow.pop %v3613
      %v3615 = vsel %vm3542, %v3592, 0.0
      %3616 = vadd.xlane.f32.xlu0 %v3615
      %v3617 = vpop.xlane.xlu0 %3616
      %v3618 = vsel %vm3542, %v3594, 0.0
      %3619 = vadd.xlane.f32.xlu0 %v3618
      %v3620 = vpop.xlane.xlu0 %3619
      %v3621 = vsel %vm3542, %v3596, 0.0
      %3622 = vadd.xlane.f32.xlu0 %v3621
      %v3623 = vpop.xlane.xlu0 %3622
      %v3624 = vsel %vm3542, %v3598, 0.0
      %3625 = vadd.xlane.f32.xlu0 %v3624
      %v3626 = vpop.xlane.xlu0 %3625
      %v3627 = vsel %vm3542, %v3600, 0.0
      %3628 = vadd.xlane.f32.xlu0 %v3627
      %v3629 = vpop.xlane.xlu0 %3628
      %v3630 = vsel %vm3542, %v3602, 0.0
      %3631 = vadd.xlane.f32.xlu0 %v3630
      %v3632 = vpop.xlane.xlu0 %3631
      %v3633 = vsel %vm3542, %v3604, 0.0
      %3634 = vadd.xlane.f32.xlu0 %v3633
      %v3635 = vpop.xlane.xlu0 %3634
      %v3636 = vsel %vm3542, %v3606, 0.0
      %3637 = vadd.xlane.f32.xlu0 %v3636
      %v3638 = vpop.xlane.xlu0 %3637
      %v3639 = vsel %vm3542, %v3608, 0.0
      %3640 = vadd.xlane.f32.xlu0 %v3639
      %v3641 = vpop.xlane.xlu0 %3640
      %v3642 = vsel %vm3542, %v3610, 0.0
      %3643 = vadd.xlane.f32.xlu0 %v3642
      %v3644 = vpop.xlane.xlu0 %3643
      %v3645 = vsel %vm3542, %v3612, 0.0
      %3646 = vadd.xlane.f32.xlu0 %v3645
      %v3647 = vpop.xlane.xlu0 %3646
      %v3648 = vsel %vm3542, %v3614, 0.0
      %3649 = vadd.xlane.f32.xlu0 %v3648
      %v3650 = vpop.xlane.xlu0 %3649
      %v3651 = vrcp.pop %v3617
      %v3652 = vrcp.pop %v3620
      %v3653 = vrcp.pop %v3623
      %v3654 = vrcp.pop %v3626
      %v3655 = vrcp.pop %v3629
      %v3656 = vrcp.pop %v3632
      %v3657 = vrcp.pop %v3635
      %v3658 = vrcp.pop %v3638
      %v3659 = vrcp.pop %v3641
      %v3660 = vrcp.pop %v3644
      %v3661 = vrcp.pop %v3647
      %v3662 = vrcp.pop %v3650
      %v3663 = vmul.f32 %v3592, %v3651
      %v3664 = vmul.f32 %v3594, %v3652
      %v3665 = vmul.f32 %v3596, %v3653
      %v3666 = vmul.f32 %v3598, %v3654
      %v3667 = vmul.f32 %v3600, %v3655
      %v3668 = vmul.f32 %v3602, %v3656
      %v3669 = vmul.f32 %v3604, %v3657
      %v3670 = vmul.f32 %v3606, %v3658
      %v3671 = vmul.f32 %v3608, %v3659
      %v3672 = vmul.f32 %v3610, %v3660
      %v3673 = vmul.f32 %v3612, %v3661
      %v3674 = vmul.f32 %v3614, %v3662
      %v3675 = vpack.c.bf16 %v3663, %v3663
      %v3676 = vpack.c.bf16 %v3664, %v3664
      %v3677 = vpack.c.bf16 %v3665, %v3665
      %v3678 = vpack.c.bf16 %v3666, %v3666
      %v3679 = vpack.c.bf16 %v3667, %v3667
      %v3680 = vpack.c.bf16 %v3668, %v3668
      %v3681 = vpack.c.bf16 %v3669, %v3669
      %v3682 = vpack.c.bf16 %v3670, %v3670
      %v3683 = vpack.c.bf16 %v3671, %v3671
      %v3684 = vpack.c.bf16 %v3672, %v3672
      %v3685 = vpack.c.bf16 %v3673, %v3673
      %v3686 = vpack.c.bf16 %v3674, %v3674
      %v3687 = vpack.c.bf16 %v1079, %v1079
      %v3688 = vpack.c.bf16 %v1097, %v1097
      %v3689 = vpack.c.bf16 %v1083, %v1083
      %v3690 = vpack.c.bf16 %v1099, %v1099
      %v3691 = vpack.c.bf16 %v1091, %v1091
      %v3692 = vpack.c.bf16 %v1101, %v1101
      %v3693 = vpack.c.bf16 %v1095, %v1095
      %v3694 = vpack.c.bf16 %v1103, %v1103
      %v3695 = vpack.c.bf16 %v1135, %v1135
      %v3696 = vpack.c.bf16 %v1153, %v1153
      %v3697 = vpack.c.bf16 %v1139, %v1139
      %v3698 = vpack.c.bf16 %v1155, %v1155
      %v3699 = vpack.c.bf16 %v1147, %v1147
      %v3700 = vpack.c.bf16 %v1157, %v1157
      %v3701 = vpack.c.bf16 %v1151, %v1151
      %v3702 = vpack.c.bf16 %v1159, %v1159
      %v3703 = vpack.c.bf16 %v1191, %v1191
      %v3704 = vpack.c.bf16 %v1209, %v1209
      %v3705 = vpack.c.bf16 %v1195, %v1195
      %v3706 = vpack.c.bf16 %v1211, %v1211
      %v3707 = vpack.c.bf16 %v1203, %v1203
      %v3708 = vpack.c.bf16 %v1213, %v1213
      %v3709 = vpack.c.bf16 %v1207, %v1207
      %v3710 = vpack.c.bf16 %v1215, %v1215
      %3711 = vxpose.xlu0.c.b16.start [1/8] %v3687, 128
      %3712 = vxpose.xlu0.c.b16.cont [2/8] 0, 128
      %3713 = vxpose.xlu0.c.b16.cont [3/8] 0, 128
      %3714 = vxpose.xlu0.c.b16.cont [4/8] 0, 128
      %3715 = vxpose.xlu0.c.b16.cont [5/8] 0, 128
      %3716 = vxpose.xlu0.c.b16.cont [6/8] 0, 128
      %3717 = vxpose.xlu0.c.b16.cont [7/8] 0, 128
      %3718 = vxpose.xlu0.c.b16.end [8/8] 0, 128
      %v3719 = vpop.trf.xlu0
      %v3720 = vpop.trf.xlu0
      %v3721 = vpop.trf.xlu0
      %v3722 = vpop.trf.xlu0
      %v3723 = vpop.trf.xlu0
      %v3724 = vpop.trf.xlu0
      %v3725 = vpop.trf.xlu0
      %v3726 = vpop.trf.xlu0
      %3727 = vxpose.xlu0.c.b16.start [1/8] %v3688, 128
      %3728 = vxpose.xlu0.c.b16.cont [2/8] 0, 128
      %3729 = vxpose.xlu0.c.b16.cont [3/8] 0, 128
      %3730 = vxpose.xlu0.c.b16.cont [4/8] 0, 128
      %3731 = vxpose.xlu0.c.b16.cont [5/8] 0, 128
      %3732 = vxpose.xlu0.c.b16.cont [6/8] 0, 128
      %3733 = vxpose.xlu0.c.b16.cont [7/8] 0, 128
      %3734 = vxpose.xlu0.c.b16.end [8/8] 0, 128
      %v3735 = vpop.trf.xlu0
      %v3736 = vpop.trf.xlu0
      %v3737 = vpop.trf.xlu0
      %v3738 = vpop.trf.xlu0
      %v3739 = vpop.trf.xlu0
      %v3740 = vpop.trf.xlu0
      %v3741 = vpop.trf.xlu0
      %v3742 = vpop.trf.xlu0
      %3743 = vxpose.xlu0.c.b16.start [1/8] %v3689, 128
      %3744 = vxpose.xlu0.c.b16.cont [2/8] 0, 128
      %3745 = vxpose.xlu0.c.b16.cont [3/8] 0, 128
      %3746 = vxpose.xlu0.c.b16.cont [4/8] 0, 128
      %3747 = vxpose.xlu0.c.b16.cont [5/8] 0, 128
      %3748 = vxpose.xlu0.c.b16.cont [6/8] 0, 128
      %3749 = vxpose.xlu0.c.b16.cont [7/8] 0, 128
      %3750 = vxpose.xlu0.c.b16.end [8/8] 0, 128
      %v3751 = vpop.trf.xlu0
      %v3752 = vpop.trf.xlu0
      %v3753 = vpop.trf.xlu0
      %v3754 = vpop.trf.xlu0
      %v3755 = vpop.trf.xlu0
      %v3756 = vpop.trf.xlu0
      %v3757 = vpop.trf.xlu0
      %v3758 = vpop.trf.xlu0
      %3759 = vxpose.xlu0.c.b16.start [1/8] %v3690, 128
      %3760 = vxpose.xlu0.c.b16.cont [2/8] 0, 128
      %3761 = vxpose.xlu0.c.b16.cont [3/8] 0, 128
      %3762 = vxpose.xlu0.c.b16.cont [4/8] 0, 128
      %3763 = vxpose.xlu0.c.b16.cont [5/8] 0, 128
      %3764 = vxpose.xlu0.c.b16.cont [6/8] 0, 128
      %3765 = vxpose.xlu0.c.b16.cont [7/8] 0, 128
      %3766 = vxpose.xlu0.c.b16.end [8/8] 0, 128
      %v3767 = vpop.trf.xlu0
      %v3768 = vpop.trf.xlu0
      %v3769 = vpop.trf.xlu0
      %v3770 = vpop.trf.xlu0
      %v3771 = vpop.trf.xlu0
      %v3772 = vpop.trf.xlu0
      %v3773 = vpop.trf.xlu0
      %v3774 = vpop.trf.xlu0
      %3775 = vxpose.xlu0.c.b16.start [1/8] %v3691, 128
      %3776 = vxpose.xlu0.c.b16.cont [2/8] 0, 128
      %3777 = vxpose.xlu0.c.b16.cont [3/8] 0, 128
      %3778 = vxpose.xlu0.c.b16.cont [4/8] 0, 128
      %3779 = vxpose.xlu0.c.b16.cont [5/8] 0, 128
      %3780 = vxpose.xlu0.c.b16.cont [6/8] 0, 128
      %3781 = vxpose.xlu0.c.b16.cont [7/8] 0, 128
      %3782 = vxpose.xlu0.c.b16.end [8/8] 0, 128
      %v3783 = vpop.trf.xlu0
      %v3784 = vpop.trf.xlu0
      %v3785 = vpop.trf.xlu0
      %v3786 = vpop.trf.xlu0
      %v3787 = vpop.trf.xlu0
      %v3788 = vpop.trf.xlu0
      %v3789 = vpop.trf.xlu0
      %v3790 = vpop.trf.xlu0
      %3791 = vxpose.xlu0.c.b16.start [1/8] %v3692, 128
      %3792 = vxpose.xlu0.c.b16.cont [2/8] 0, 128
      %3793 = vxpose.xlu0.c.b16.cont [3/8] 0, 128
      %3794 = vxpose.xlu0.c.b16.cont [4/8] 0, 128
      %3795 = vxpose.xlu0.c.b16.cont [5/8] 0, 128
      %3796 = vxpose.xlu0.c.b16.cont [6/8] 0, 128
      %3797 = vxpose.xlu0.c.b16.cont [7/8] 0, 128
      %3798 = vxpose.xlu0.c.b16.end [8/8] 0, 128
      %v3799 = vpop.trf.xlu0
      %v3800 = vpop.trf.xlu0
      %v3801 = vpop.trf.xlu0
      %v3802 = vpop.trf.xlu0
      %v3803 = vpop.trf.xlu0
      %v3804 = vpop.trf.xlu0
      %v3805 = vpop.trf.xlu0
      %v3806 = vpop.trf.xlu0
      %3807 = vxpose.xlu0.c.b16.start [1/8] %v3693, 128
      %3808 = vxpose.xlu0.c.b16.cont [2/8] 0, 128
      %3809 = vxpose.xlu0.c.b16.cont [3/8] 0, 128
      %3810 = vxpose.xlu0.c.b16.cont [4/8] 0, 128
      %3811 = vxpose.xlu0.c.b16.cont [5/8] 0, 128
      %3812 = vxpose.xlu0.c.b16.cont [6/8] 0, 128
      %3813 = vxpose.xlu0.c.b16.cont [7/8] 0, 128
      %3814 = vxpose.xlu0.c.b16.end [8/8] 0, 128
      %v3815 = vpop.trf.xlu0
      %v3816 = vpop.trf.xlu0
      %v3817 = vpop.trf.xlu0
      %v3818 = vpop.trf.xlu0
      %v3819 = vpop.trf.xlu0
      %v3820 = vpop.trf.xlu0
      %v3821 = vpop.trf.xlu0
      %v3822 = vpop.trf.xlu0
      %3823 = vxpose.xlu0.c.b16.start [1/8] %v3694, 128
      %3824 = vxpose.xlu0.c.b16.cont [2/8] 0, 128
      %3825 = vxpose.xlu0.c.b16.cont [3/8] 0, 128
      %3826 = vxpose.xlu0.c.b16.cont [4/8] 0, 128
      %3827 = vxpose.xlu0.c.b16.cont [5/8] 0, 128
      %3828 = vxpose.xlu0.c.b16.cont [6/8] 0, 128
      %3829 = vxpose.xlu0.c.b16.cont [7/8] 0, 128
      %3830 = vxpose.xlu0.c.b16.end [8/8] 0, 128
      %v3831 = vpop.trf.xlu0
      %v3832 = vpop.trf.xlu0
      %v3833 = vpop.trf.xlu0
      %v3834 = vpop.trf.xlu0
      %v3835 = vpop.trf.xlu0
      %v3836 = vpop.trf.xlu0
      %v3837 = vpop.trf.xlu0
      %v3838 = vpop.trf.xlu0
      %3839 = vxpose.xlu0.c.b16.start [1/8] %v3695, 128
      %3840 = vxpose.xlu0.c.b16.cont [2/8] 0, 128
      %3841 = vxpose.xlu0.c.b16.cont [3/8] 0, 128
      %3842 = vxpose.xlu0.c.b16.cont [4/8] 0, 128
      %3843 = vxpose.xlu0.c.b16.cont [5/8] 0, 128
      %3844 = vxpose.xlu0.c.b16.cont [6/8] 0, 128
      %3845 = vxpose.xlu0.c.b16.cont [7/8] 0, 128
      %3846 = vxpose.xlu0.c.b16.end [8/8] 0, 128
      %v3847 = vpop.trf.xlu0
      %v3848 = vpop.trf.xlu0
      %v3849 = vpop.trf.xlu0
      %v3850 = vpop.trf.xlu0
      %v3851 = vpop.trf.xlu0
      %v3852 = vpop.trf.xlu0
      %v3853 = vpop.trf.xlu0
      %v3854 = vpop.trf.xlu0
      %3855 = vxpose.xlu0.c.b16.start [1/8] %v3696, 128
      %3856 = vxpose.xlu0.c.b16.cont [2/8] 0, 128
      %3857 = vxpose.xlu0.c.b16.cont [3/8] 0, 128
      %3858 = vxpose.xlu0.c.b16.cont [4/8] 0, 128
      %3859 = vxpose.xlu0.c.b16.cont [5/8] 0, 128
      %3860 = vxpose.xlu0.c.b16.cont [6/8] 0, 128
      %3861 = vxpose.xlu0.c.b16.cont [7/8] 0, 128
      %3862 = vxpose.xlu0.c.b16.end [8/8] 0, 128
      %v3863 = vpop.trf.xlu0
      %v3864 = vpop.trf.xlu0
      %v3865 = vpop.trf.xlu0
      %v3866 = vpop.trf.xlu0
      %v3867 = vpop.trf.xlu0
      %v3868 = vpop.trf.xlu0
      %v3869 = vpop.trf.xlu0
      %v3870 = vpop.trf.xlu0
      %3871 = vxpose.xlu0.c.b16.start [1/8] %v3697, 128
      %3872 = vxpose.xlu0.c.b16.cont [2/8] 0, 128
      %3873 = vxpose.xlu0.c.b16.cont [3/8] 0, 128
      %3874 = vxpose.xlu0.c.b16.cont [4/8] 0, 128
      %3875 = vxpose.xlu0.c.b16.cont [5/8] 0, 128
      %3876 = vxpose.xlu0.c.b16.cont [6/8] 0, 128
      %3877 = vxpose.xlu0.c.b16.cont [7/8] 0, 128
      %3878 = vxpose.xlu0.c.b16.end [8/8] 0, 128
      %v3879 = vpop.trf.xlu0
      %v3880 = vpop.trf.xlu0
      %v3881 = vpop.trf.xlu0
      %v3882 = vpop.trf.xlu0
      %v3883 = vpop.trf.xlu0
      %v3884 = vpop.trf.xlu0
      %v3885 = vpop.trf.xlu0
      %v3886 = vpop.trf.xlu0
      %3887 = vxpose.xlu0.c.b16.start [1/8] %v3698, 128
      %3888 = vxpose.xlu0.c.b16.cont [2/8] 0, 128
      %3889 = vxpose.xlu0.c.b16.cont [3/8] 0, 128
      %3890 = vxpose.xlu0.c.b16.cont [4/8] 0, 128
      %3891 = vxpose.xlu0.c.b16.cont [5/8] 0, 128
      %3892 = vxpose.xlu0.c.b16.cont [6/8] 0, 128
      %3893 = vxpose.xlu0.c.b16.cont [7/8] 0, 128
      %3894 = vxpose.xlu0.c.b16.end [8/8] 0, 128
      %v3895 = vpop.trf.xlu0
      %v3896 = vpop.trf.xlu0
      %v3897 = vpop.trf.xlu0
      %v3898 = vpop.trf.xlu0
      %v3899 = vpop.trf.xlu0
      %v3900 = vpop.trf.xlu0
      %v3901 = vpop.trf.xlu0
      %v3902 = vpop.trf.xlu0
      %3903 = vxpose.xlu0.c.b16.start [1/8] %v3699, 128
      %3904 = vxpose.xlu0.c.b16.cont [2/8] 0, 128
      %3905 = vxpose.xlu0.c.b16.cont [3/8] 0, 128
      %3906 = vxpose.xlu0.c.b16.cont [4/8] 0, 128
      %3907 = vxpose.xlu0.c.b16.cont [5/8] 0, 128
      %3908 = vxpose.xlu0.c.b16.cont [6/8] 0, 128
      %3909 = vxpose.xlu0.c.b16.cont [7/8] 0, 128
      %3910 = vxpose.xlu0.c.b16.end [8/8] 0, 128
      %v3911 = vpop.trf.xlu0
      %v3912 = vpop.trf.xlu0
      %v3913 = vpop.trf.xlu0
      %v3914 = vpop.trf.xlu0
      %v3915 = vpop.trf.xlu0
      %v3916 = vpop.trf.xlu0
      %v3917 = vpop.trf.xlu0
      %v3918 = vpop.trf.xlu0
      %3919 = vxpose.xlu0.c.b16.start [1/8] %v3700, 128
      %3920 = vxpose.xlu0.c.b16.cont [2/8] 0, 128
      %3921 = vxpose.xlu0.c.b16.cont [3/8] 0, 128
      %3922 = vxpose.xlu0.c.b16.cont [4/8] 0, 128
      %3923 = vxpose.xlu0.c.b16.cont [5/8] 0, 128
      %3924 = vxpose.xlu0.c.b16.cont [6/8] 0, 128
      %3925 = vxpose.xlu0.c.b16.cont [7/8] 0, 128
      %3926 = vxpose.xlu0.c.b16.end [8/8] 0, 128
      %v3927 = vpop.trf.xlu0
      %v3928 = vpop.trf.xlu0
      %v3929 = vpop.trf.xlu0
      %v3930 = vpop.trf.xlu0
      %v3931 = vpop.trf.xlu0
      %v3932 = vpop.trf.xlu0
      %v3933 = vpop.trf.xlu0
      %v3934 = vpop.trf.xlu0
      %3935 = vxpose.xlu0.c.b16.start [1/8] %v3701, 128
      %3936 = vxpose.xlu0.c.b16.cont [2/8] 0, 128
      %3937 = vxpose.xlu0.c.b16.cont [3/8] 0, 128
      %3938 = vxpose.xlu0.c.b16.cont [4/8] 0, 128
      %3939 = vxpose.xlu0.c.b16.cont [5/8] 0, 128
      %3940 = vxpose.xlu0.c.b16.cont [6/8] 0, 128
      %3941 = vxpose.xlu0.c.b16.cont [7/8] 0, 128
      %3942 = vxpose.xlu0.c.b16.end [8/8] 0, 128
      %v3943 = vpop.trf.xlu0
      %v3944 = vpop.trf.xlu0
      %v3945 = vpop.trf.xlu0
      %v3946 = vpop.trf.xlu0
      %v3947 = vpop.trf.xlu0
      %v3948 = vpop.trf.xlu0
      %v3949 = vpop.trf.xlu0
      %v3950 = vpop.trf.xlu0
      %3951 = vxpose.xlu0.c.b16.start [1/8] %v3702, 128
      %3952 = vxpose.xlu0.c.b16.cont [2/8] 0, 128
      %3953 = vxpose.xlu0.c.b16.cont [3/8] 0, 128
      %3954 = vxpose.xlu0.c.b16.cont [4/8] 0, 128
      %3955 = vxpose.xlu0.c.b16.cont [5/8] 0, 128
      %3956 = vxpose.xlu0.c.b16.cont [6/8] 0, 128
      %3957 = vxpose.xlu0.c.b16.cont [7/8] 0, 128
      %3958 = vxpose.xlu0.c.b16.end [8/8] 0, 128
      %v3959 = vpop.trf.xlu0
      %v3960 = vpop.trf.xlu0
      %v3961 = vpop.trf.xlu0
      %v3962 = vpop.trf.xlu0
      %v3963 = vpop.trf.xlu0
      %v3964 = vpop.trf.xlu0
      %v3965 = vpop.trf.xlu0
      %v3966 = vpop.trf.xlu0
      %3967 = vxpose.xlu0.c.b16.start [1/8] %v3703, 128
      %3968 = vxpose.xlu0.c.b16.cont [2/8] 0, 128
      %3969 = vxpose.xlu0.c.b16.cont [3/8] 0, 128
      %3970 = vxpose.xlu0.c.b16.cont [4/8] 0, 128
      %3971 = vxpose.xlu0.c.b16.cont [5/8] 0, 128
      %3972 = vxpose.xlu0.c.b16.cont [6/8] 0, 128
      %3973 = vxpose.xlu0.c.b16.cont [7/8] 0, 128
      %3974 = vxpose.xlu0.c.b16.end [8/8] 0, 128
      %v3975 = vpop.trf.xlu0
      %v3976 = vpop.trf.xlu0
      %v3977 = vpop.trf.xlu0
      %v3978 = vpop.trf.xlu0
      %v3979 = vpop.trf.xlu0
      %v3980 = vpop.trf.xlu0
      %v3981 = vpop.trf.xlu0
      %v3982 = vpop.trf.xlu0
      %3983 = vxpose.xlu0.c.b16.start [1/8] %v3704, 128
      %3984 = vxpose.xlu0.c.b16.cont [2/8] 0, 128
      %3985 = vxpose.xlu0.c.b16.cont [3/8] 0, 128
      %3986 = vxpose.xlu0.c.b16.cont [4/8] 0, 128
      %3987 = vxpose.xlu0.c.b16.cont [5/8] 0, 128
      %3988 = vxpose.xlu0.c.b16.cont [6/8] 0, 128
      %3989 = vxpose.xlu0.c.b16.cont [7/8] 0, 128
      %3990 = vxpose.xlu0.c.b16.end [8/8] 0, 128
      %v3991 = vpop.trf.xlu0
      %v3992 = vpop.trf.xlu0
      %v3993 = vpop.trf.xlu0
      %v3994 = vpop.trf.xlu0
      %v3995 = vpop.trf.xlu0
      %v3996 = vpop.trf.xlu0
      %v3997 = vpop.trf.xlu0
      %v3998 = vpop.trf.xlu0
      %3999 = vxpose.xlu0.c.b16.start [1/8] %v3705, 128
      %4000 = vxpose.xlu0.c.b16.cont [2/8] 0, 128
      %4001 = vxpose.xlu0.c.b16.cont [3/8] 0, 128
      %4002 = vxpose.xlu0.c.b16.cont [4/8] 0, 128
      %4003 = vxpose.xlu0.c.b16.cont [5/8] 0, 128
      %4004 = vxpose.xlu0.c.b16.cont [6/8] 0, 128
      %4005 = vxpose.xlu0.c.b16.cont [7/8] 0, 128
      %4006 = vxpose.xlu0.c.b16.end [8/8] 0, 128
      %v4007 = vpop.trf.xlu0
      %v4008 = vpop.trf.xlu0
      %v4009 = vpop.trf.xlu0
      %v4010 = vpop.trf.xlu0
      %v4011 = vpop.trf.xlu0
      %v4012 = vpop.trf.xlu0
      %v4013 = vpop.trf.xlu0
      %v4014 = vpop.trf.xlu0
      %4015 = vxpose.xlu0.c.b16.start [1/8] %v3706, 128
      %4016 = vxpose.xlu0.c.b16.cont [2/8] 0, 128
      %4017 = vxpose.xlu0.c.b16.cont [3/8] 0, 128
      %4018 = vxpose.xlu0.c.b16.cont [4/8] 0, 128
      %4019 = vxpose.xlu0.c.b16.cont [5/8] 0, 128
      %4020 = vxpose.xlu0.c.b16.cont [6/8] 0, 128
      %4021 = vxpose.xlu0.c.b16.cont [7/8] 0, 128
      %4022 = vxpose.xlu0.c.b16.end [8/8] 0, 128
      %v4023 = vpop.trf.xlu0
      %v4024 = vpop.trf.xlu0
      %v4025 = vpop.trf.xlu0
      %v4026 = vpop.trf.xlu0
      %v4027 = vpop.trf.xlu0
      %v4028 = vpop.trf.xlu0
      %v4029 = vpop.trf.xlu0
      %v4030 = vpop.trf.xlu0
      %4031 = vxpose.xlu0.c.b16.start [1/8] %v3707, 128
      %4032 = vxpose.xlu0.c.b16.cont [2/8] 0, 128
      %4033 = vxpose.xlu0.c.b16.cont [3/8] 0, 128
      %4034 = vxpose.xlu0.c.b16.cont [4/8] 0, 128
      %4035 = vxpose.xlu0.c.b16.cont [5/8] 0, 128
      %4036 = vxpose.xlu0.c.b16.cont [6/8] 0, 128
      %4037 = vxpose.xlu0.c.b16.cont [7/8] 0, 128
      %4038 = vxpose.xlu0.c.b16.end [8/8] 0, 128
      %v4039 = vpop.trf.xlu0
      %v4040 = vpop.trf.xlu0
      %v4041 = vpop.trf.xlu0
      %v4042 = vpop.trf.xlu0
      %v4043 = vpop.trf.xlu0
      %v4044 = vpop.trf.xlu0
      %v4045 = vpop.trf.xlu0
      %v4046 = vpop.trf.xlu0
      %4047 = vxpose.xlu0.c.b16.start [1/8] %v3708, 128
      %4048 = vxpose.xlu0.c.b16.cont [2/8] 0, 128
      %4049 = vxpose.xlu0.c.b16.cont [3/8] 0, 128
      %4050 = vxpose.xlu0.c.b16.cont [4/8] 0, 128
      %4051 = vxpose.xlu0.c.b16.cont [5/8] 0, 128
      %4052 = vxpose.xlu0.c.b16.cont [6/8] 0, 128
      %4053 = vxpose.xlu0.c.b16.cont [7/8] 0, 128
      %4054 = vxpose.xlu0.c.b16.end [8/8] 0, 128
      %v4055 = vpop.trf.xlu0
      %v4056 = vpop.trf.xlu0
      %v4057 = vpop.trf.xlu0
      %v4058 = vpop.trf.xlu0
      %v4059 = vpop.trf.xlu0
      %v4060 = vpop.trf.xlu0
      %v4061 = vpop.trf.xlu0
      %v4062 = vpop.trf.xlu0
      %4063 = vxpose.xlu0.c.b16.start [1/8] %v3709, 128
      %4064 = vxpose.xlu0.c.b16.cont [2/8] 0, 128
      %4065 = vxpose.xlu0.c.b16.cont [3/8] 0, 128
      %4066 = vxpose.xlu0.c.b16.cont [4/8] 0, 128
      %4067 = vxpose.xlu0.c.b16.cont [5/8] 0, 128
      %4068 = vxpose.xlu0.c.b16.cont [6/8] 0, 128
      %4069 = vxpose.xlu0.c.b16.cont [7/8] 0, 128
      %4070 = vxpose.xlu0.c.b16.end [8/8] 0, 128
      %v4071 = vpop.trf.xlu0
      %v4072 = vpop.trf.xlu0
      %v4073 = vpop.trf.xlu0
      %v4074 = vpop.trf.xlu0
      %v4075 = vpop.trf.xlu0
      %v4076 = vpop.trf.xlu0
      %v4077 = vpop.trf.xlu0
      %v4078 = vpop.trf.xlu0
      %4079 = vxpose.xlu0.c.b16.start [1/8] %v3710, 128
      %4080 = vxpose.xlu0.c.b16.cont [2/8] 0, 128
      %4081 = vxpose.xlu0.c.b16.cont [3/8] 0, 128
      %4082 = vxpose.xlu0.c.b16.cont [4/8] 0, 128
      %4083 = vxpose.xlu0.c.b16.cont [5/8] 0, 128
      %4084 = vxpose.xlu0.c.b16.cont [6/8] 0, 128
      %4085 = vxpose.xlu0.c.b16.cont [7/8] 0, 128
      %4086 = vxpose.xlu0.c.b16.end [8/8] 0, 128
      %v4087 = vpop.trf.xlu0
      %v4088 = vpop.trf.xlu0
      %v4089 = vpop.trf.xlu0
      %v4090 = vpop.trf.xlu0
      %v4091 = vpop.trf.xlu0
      %v4092 = vpop.trf.xlu0
      %v4093 = vpop.trf.xlu0
      %v4094 = vpop.trf.xlu0
      %v4095 = vrot.slane %v3783, 4
      %v4096 = vsel %vm2443, %v4095, %v3719
      %v4098 = vunpack.c.l.s4 1983009808
      %v4099 = vunpack.c.0.s8 %v4098
      %v4100 = vperm.slane %v4096, %v4099
      %v4101 = vrot.slane %v3815, 4
      %v4102 = vsel %vm2443, %v4101, %v3751
      %v4104 = vunpack.c.l.s4 1983009808
      %v4105 = vunpack.c.0.s8 %v4104
      %v4106 = vperm.slane %v4102, %v4105
      %v4107 = vrot.slane %v3911, 4
      %v4108 = vsel %vm2443, %v4107, %v3847
      %v4110 = vunpack.c.l.s4 1983009808
      %v4111 = vunpack.c.0.s8 %v4110
      %v4112 = vperm.slane %v4108, %v4111
      %v4113 = vrot.slane %v3943, 4
      %v4114 = vsel %vm2443, %v4113, %v3879
      %v4116 = vunpack.c.l.s4 1983009808
      %v4117 = vunpack.c.0.s8 %v4116
      %v4118 = vperm.slane %v4114, %v4117
      %v4119 = vrot.slane %v4106, 4
      %v4120 = vsel %vm2443, %v4119, %v4100
      %v4121 = vrot.slane %v4100, 4
      %v4122 = vsel %vm2443, %v4106, %v4121
      %v4124 = vunpack.c.l.s4 1934713408
      %v4125 = vunpack.c.0.s8 %v4124
      %v4126 = vperm.slane %v4120, %v4125
      %v4128 = vunpack.c.l.s4 1934713408
      %v4129 = vunpack.c.0.s8 %v4128
      %v4130 = vperm.slane %v4122, %v4129
      %v4131 = vrot.slane %v4118, 4
      %v4132 = vsel %vm2443, %v4131, %v4112
      %v4133 = vrot.slane %v4112, 4
      %v4134 = vsel %vm2443, %v4118, %v4133
      %v4136 = vunpack.c.l.s4 1934713408
      %v4137 = vunpack.c.0.s8 %v4136
      %v4138 = vperm.slane %v4132, %v4137
      %v4140 = vunpack.c.l.s4 1934713408
      %v4141 = vunpack.c.0.s8 %v4140
      %v4142 = vperm.slane %v4134, %v4141
      %v4143 = vrot.slane %v4138, 4
      %v4144 = vsel %vm2443, %v4143, %v4126
      %v4145 = vrot.slane %v4126, 4
      %v4146 = vsel %vm2443, %v4138, %v4145
      %v4147 = vrot.slane %v4142, 4
      %v4148 = vsel %vm2443, %v4147, %v4130
      %v4149 = vrot.slane %v4130, 4
      %v4150 = vsel %vm2443, %v4142, %v4149
      %v4151 = vrot.slane %v3799, 4
      %v4152 = vsel %vm2443, %v4151, %v3735
      %v4154 = vunpack.c.l.s4 1983009808
      %v4155 = vunpack.c.0.s8 %v4154
      %v4156 = vperm.slane %v4152, %v4155
      %v4157 = vrot.slane %v3831, 4
      %v4158 = vsel %vm2443, %v4157, %v3767
      %v4160 = vunpack.c.l.s4 1983009808
      %v4161 = vunpack.c.0.s8 %v4160
      %v4162 = vperm.slane %v4158, %v4161
      %v4163 = vrot.slane %v3927, 4
      %v4164 = vsel %vm2443, %v4163, %v3863
      %v4166 = vunpack.c.l.s4 1983009808
      %v4167 = vunpack.c.0.s8 %v4166
      %v4168 = vperm.slane %v4164, %v4167
      %v4169 = vrot.slane %v3959, 4
      %v4170 = vsel %vm2443, %v4169, %v3895
      %v4172 = vunpack.c.l.s4 1983009808
      %v4173 = vunpack.c.0.s8 %v4172
      %v4174 = vperm.slane %v4170, %v4173
      %v4175 = vrot.slane %v4162, 4
      %v4176 = vsel %vm2443, %v4175, %v4156
      %v4177 = vrot.slane %v4156, 4
      %v4178 = vsel %vm2443, %v4162, %v4177
      %v4180 = vunpack.c.l.s4 1934713408
      %v4181 = vunpack.c.0.s8 %v4180
      %v4182 = vperm.slane %v4176, %v4181
      %v4184 = vunpack.c.l.s4 1934713408
      %v4185 = vunpack.c.0.s8 %v4184
      %v4186 = vperm.slane %v4178, %v4185
      %v4187 = vrot.slane %v4174, 4
      %v4188 = vsel %vm2443, %v4187, %v4168
      %v4189 = vrot.slane %v4168, 4
      %v4190 = vsel %vm2443, %v4174, %v4189
      %v4192 = vunpack.c.l.s4 1934713408
      %v4193 = vunpack.c.0.s8 %v4192
      %v4194 = vperm.slane %v4188, %v4193
      %v4196 = vunpack.c.l.s4 1934713408
      %v4197 = vunpack.c.0.s8 %v4196
      %v4198 = vperm.slane %v4190, %v4197
      %v4199 = vrot.slane %v4194, 4
      %v4200 = vsel %vm2443, %v4199, %v4182
      %v4201 = vrot.slane %v4182, 4
      %v4202 = vsel %vm2443, %v4194, %v4201
      %v4203 = vrot.slane %v4198, 4
      %v4204 = vsel %vm2443, %v4203, %v4186
      %v4205 = vrot.slane %v4186, 4
      %v4206 = vsel %vm2443, %v4198, %v4205
      %v4207 = vrot.slane %v4039, 4
      %v4208 = vsel %vm2443, %v4207, %v3975
      %v4210 = vunpack.c.l.s4 1983009808
      %v4211 = vunpack.c.0.s8 %v4210
      %v4212 = vperm.slane %v4208, %v4211
      %v4213 = vrot.slane %v4071, 4
      %v4214 = vsel %vm2443, %v4213, %v4007
      %v4216 = vunpack.c.l.s4 1983009808
      %v4217 = vunpack.c.0.s8 %v4216
      %v4218 = vperm.slane %v4214, %v4217
      %v4219 = vrot.slane %v4218, 4
      %v4220 = vsel %vm2443, %v4219, %v4212
      %v4221 = vrot.slane %v4212, 4
      %v4222 = vsel %vm2443, %v4218, %v4221
      %v4224 = vunpack.c.l.s4 1934713408
      %v4225 = vunpack.c.0.s8 %v4224
      %v4226 = vperm.slane %v4220, %v4225
      %v4228 = vunpack.c.l.s4 1934713408
      %v4229 = vunpack.c.0.s8 %v4228
      %v4230 = vperm.slane %v4222, %v4229
      %v4231 = vrot.slane %v4226, 4
      %v4232 = vsel %vm2443, 0, %v4231
      %v4233 = vrot.slane %v4230, 4
      %v4234 = vsel %vm2443, 0, %v4233
      %v4235 = vrot.slane %v4055, 4
      %v4236 = vsel %vm2443, %v4235, %v3991
      %v4238 = vunpack.c.l.s4 1983009808
      %v4239 = vunpack.c.0.s8 %v4238
      %v4240 = vperm.slane %v4236, %v4239
      %v4241 = vrot.slane %v4087, 4
      %v4242 = vsel %vm2443, %v4241, %v4023
      %v4244 = vunpack.c.l.s4 1983009808
      %v4245 = vunpack.c.0.s8 %v4244
      %v4246 = vperm.slane %v4242, %v4245
      %v4247 = vrot.slane %v4246, 4
      %v4248 = vsel %vm2443, %v4247, %v4240
      %v4249 = vrot.slane %v4240, 4
      %v4250 = vsel %vm2443, %v4246, %v4249
      %v4252 = vunpack.c.l.s4 1934713408
      %v4253 = vunpack.c.0.s8 %v4252
      %v4254 = vperm.slane %v4248, %v4253
      %v4256 = vunpack.c.l.s4 1934713408
      %v4257 = vunpack.c.0.s8 %v4256
      %v4258 = vperm.slane %v4250, %v4257
      %v4259 = vrot.slane %v4254, 4
      %v4260 = vsel %vm2443, 0, %v4259
      %v4261 = vrot.slane %v4258, 4
      %v4262 = vsel %vm2443, 0, %v4261
      %v4265 = vpack.i.b16 %v4200, %v4144
      %v4267 = vshrl.u32 %v4144, 16
      %v4268 = vshrl.u32 %v4200, 16
      %v4269 = vpack.i.b16 %v4268, %v4267
      %v4273 = vpack.i.b16 %v4202, %v4146
      %v4275 = vshrl.u32 %v4146, 16
      %v4276 = vshrl.u32 %v4202, 16
      %v4277 = vpack.i.b16 %v4276, %v4275
      %v4281 = vpack.i.b16 %v4204, %v4148
      %v4283 = vshrl.u32 %v4148, 16
      %v4284 = vshrl.u32 %v4204, 16
      %v4285 = vpack.i.b16 %v4284, %v4283
      %v4289 = vpack.i.b16 %v4206, %v4150
      %v4291 = vshrl.u32 %v4150, 16
      %v4292 = vshrl.u32 %v4206, 16
      %v4293 = vpack.i.b16 %v4292, %v4291
      %v4297 = vpack.i.b16 %v4254, %v4226
      %v4299 = vshrl.u32 %v4226, 16
      %v4300 = vshrl.u32 %v4254, 16
      %v4301 = vpack.i.b16 %v4300, %v4299
      %v4305 = vpack.i.b16 %v4260, %v4232
      %v4307 = vshrl.u32 %v4232, 16
      %v4308 = vshrl.u32 %v4260, 16
      %v4309 = vpack.i.b16 %v4308, %v4307
      %v4313 = vpack.i.b16 %v4258, %v4230
      %v4315 = vshrl.u32 %v4230, 16
      %v4316 = vshrl.u32 %v4258, 16
      %v4317 = vpack.i.b16 %v4316, %v4315
      %v4321 = vpack.i.b16 %v4262, %v4234
      %v4323 = vshrl.u32 %v4234, 16
      %v4324 = vshrl.u32 %v4262, 16
      %v4325 = vpack.i.b16 %v4324, %v4323
      %4327 = vxpose.xlu0.c.b16.start [1/8] %v4265, 128
      %4328 = vxpose.xlu0.c.b16.cont [2/8] %v4297, 128
      %4329 = vxpose.xlu0.c.b16.cont [3/8] 0, 128
      %4330 = vxpose.xlu0.c.b16.cont [4/8] 0, 128
      %4331 = vxpose.xlu0.c.b16.cont [5/8] 0, 128
      %4332 = vxpose.xlu0.c.b16.cont [6/8] 0, 128
      %4333 = vxpose.xlu0.c.b16.cont [7/8] 0, 128
      %4334 = vxpose.xlu0.c.b16.end [8/8] 0, 128
      %v4335 = vpop.trf.xlu0
      %v4336 = vpop.trf.xlu0
      %v4337 = vpop.trf.xlu0
      %v4338 = vpop.trf.xlu0
      %v4339 = vpop.trf.xlu0
      %v4340 = vpop.trf.xlu0
      %v4341 = vpop.trf.xlu0
      %v4342 = vpop.trf.xlu0
      %4343 = vxpose.xlu0.c.b16.start [1/8] %v4269, 128
      %4344 = vxpose.xlu0.c.b16.cont [2/8] %v4301, 128
      %4345 = vxpose.xlu0.c.b16.cont [3/8] 0, 128
      %4346 = vxpose.xlu0.c.b16.cont [4/8] 0, 128
      %4347 = vxpose.xlu0.c.b16.cont [5/8] 0, 128
      %4348 = vxpose.xlu0.c.b16.cont [6/8] 0, 128
      %4349 = vxpose.xlu0.c.b16.cont [7/8] 0, 128
      %4350 = vxpose.xlu0.c.b16.end [8/8] 0, 128
      %v4351 = vpop.trf.xlu0
      %v4352 = vpop.trf.xlu0
      %v4353 = vpop.trf.xlu0
      %v4354 = vpop.trf.xlu0
      %v4355 = vpop.trf.xlu0
      %v4356 = vpop.trf.xlu0
      %v4357 = vpop.trf.xlu0
      %v4358 = vpop.trf.xlu0
      %4359 = vxpose.xlu0.c.b16.start [1/8] %v4273, 128
      %4360 = vxpose.xlu0.c.b16.cont [2/8] %v4305, 128
      %4361 = vxpose.xlu0.c.b16.cont [3/8] 0, 128
      %4362 = vxpose.xlu0.c.b16.cont [4/8] 0, 128
      %4363 = vxpose.xlu0.c.b16.cont [5/8] 0, 128
      %4364 = vxpose.xlu0.c.b16.cont [6/8] 0, 128
      %4365 = vxpose.xlu0.c.b16.cont [7/8] 0, 128
      %4366 = vxpose.xlu0.c.b16.end [8/8] 0, 128
      %v4367 = vpop.trf.xlu0
      %v4368 = vpop.trf.xlu0
      %v4369 = vpop.trf.xlu0
      %v4370 = vpop.trf.xlu0
      %v4371 = vpop.trf.xlu0
      %v4372 = vpop.trf.xlu0
      %v4373 = vpop.trf.xlu0
      %v4374 = vpop.trf.xlu0
      %4375 = vxpose.xlu0.c.b16.start [1/8] %v4277, 128
      %4376 = vxpose.xlu0.c.b16.cont [2/8] %v4309, 128
      %4377 = vxpose.xlu0.c.b16.cont [3/8] 0, 128
      %4378 = vxpose.xlu0.c.b16.cont [4/8] 0, 128
      %4379 = vxpose.xlu0.c.b16.cont [5/8] 0, 128
      %4380 = vxpose.xlu0.c.b16.cont [6/8] 0, 128
      %4381 = vxpose.xlu0.c.b16.cont [7/8] 0, 128
      %4382 = vxpose.xlu0.c.b16.end [8/8] 0, 128
      %v4383 = vpop.trf.xlu0
      %v4384 = vpop.trf.xlu0
      %v4385 = vpop.trf.xlu0
      %v4386 = vpop.trf.xlu0
      %v4387 = vpop.trf.xlu0
      %v4388 = vpop.trf.xlu0
      %v4389 = vpop.trf.xlu0
      %v4390 = vpop.trf.xlu0
      %4391 = vxpose.xlu0.c.b16.start [1/8] %v4281, 128
      %4392 = vxpose.xlu0.c.b16.cont [2/8] %v4313, 128
      %4393 = vxpose.xlu0.c.b16.cont [3/8] 0, 128
      %4394 = vxpose.xlu0.c.b16.cont [4/8] 0, 128
      %4395 = vxpose.xlu0.c.b16.cont [5/8] 0, 128
      %4396 = vxpose.xlu0.c.b16.cont [6/8] 0, 128
      %4397 = vxpose.xlu0.c.b16.cont [7/8] 0, 128
      %4398 = vxpose.xlu0.c.b16.end [8/8] 0, 128
      %v4399 = vpop.trf.xlu0
      %v4400 = vpop.trf.xlu0
      %v4401 = vpop.trf.xlu0
      %v4402 = vpop.trf.xlu0
      %v4403 = vpop.trf.xlu0
      %v4404 = vpop.trf.xlu0
      %v4405 = vpop.trf.xlu0
      %v4406 = vpop.trf.xlu0
      %4407 = vxpose.xlu0.c.b16.start [1/8] %v4285, 128
      %4408 = vxpose.xlu0.c.b16.cont [2/8] %v4317, 128
      %4409 = vxpose.xlu0.c.b16.cont [3/8] 0, 128
      %4410 = vxpose.xlu0.c.b16.cont [4/8] 0, 128
      %4411 = vxpose.xlu0.c.b16.cont [5/8] 0, 128
      %4412 = vxpose.xlu0.c.b16.cont [6/8] 0, 128
      %4413 = vxpose.xlu0.c.b16.cont [7/8] 0, 128
      %4414 = vxpose.xlu0.c.b16.end [8/8] 0, 128
      %v4415 = vpop.trf.xlu0
      %v4416 = vpop.trf.xlu0
      %v4417 = vpop.trf.xlu0
      %v4418 = vpop.trf.xlu0
      %v4419 = vpop.trf.xlu0
      %v4420 = vpop.trf.xlu0
      %v4421 = vpop.trf.xlu0
      %v4422 = vpop.trf.xlu0
      %4423 = vxpose.xlu0.c.b16.start [1/8] %v4289, 128
      %4424 = vxpose.xlu0.c.b16.cont [2/8] %v4321, 128
      %4425 = vxpose.xlu0.c.b16.cont [3/8] 0, 128
      %4426 = vxpose.xlu0.c.b16.cont [4/8] 0, 128
      %4427 = vxpose.xlu0.c.b16.cont [5/8] 0, 128
      %4428 = vxpose.xlu0.c.b16.cont [6/8] 0, 128
      %4429 = vxpose.xlu0.c.b16.cont [7/8] 0, 128
      %4430 = vxpose.xlu0.c.b16.end [8/8] 0, 128
      %v4431 = vpop.trf.xlu0
      %v4432 = vpop.trf.xlu0
      %v4433 = vpop.trf.xlu0
      %v4434 = vpop.trf.xlu0
      %v4435 = vpop.trf.xlu0
      %v4436 = vpop.trf.xlu0
      %v4437 = vpop.trf.xlu0
      %v4438 = vpop.trf.xlu0
      %4439 = vxpose.xlu0.c.b16.start [1/8] %v4293, 128
      %4440 = vxpose.xlu0.c.b16.cont [2/8] %v4325, 128
      %4441 = vxpose.xlu0.c.b16.cont [3/8] 0, 128
      %4442 = vxpose.xlu0.c.b16.cont [4/8] 0, 128
      %4443 = vxpose.xlu0.c.b16.cont [5/8] 0, 128
      %4444 = vxpose.xlu0.c.b16.cont [6/8] 0, 128
      %4445 = vxpose.xlu0.c.b16.cont [7/8] 0, 128
      %4446 = vxpose.xlu0.c.b16.end [8/8] 0, 128
      %v4447 = vpop.trf.xlu0
      %v4448 = vpop.trf.xlu0
      %v4449 = vpop.trf.xlu0
      %v4450 = vpop.trf.xlu0
      %v4451 = vpop.trf.xlu0
      %v4452 = vpop.trf.xlu0
      %v4453 = vpop.trf.xlu0
      %v4454 = vpop.trf.xlu0
      %v4455 = vrot.slane %v4399, 4
      %v4456 = vsel %vm2443, %v4455, %v4335
      %v4458 = vunpack.c.l.s4 1983009808
      %v4459 = vunpack.c.0.s8 %v4458
      %v4460 = vperm.slane %v4456, %v4459
      %v4461 = vrot.slane %v4431, 4
      %v4462 = vsel %vm2443, %v4461, %v4367
      %v4464 = vunpack.c.l.s4 1983009808
      %v4465 = vunpack.c.0.s8 %v4464
      %v4466 = vperm.slane %v4462, %v4465
      %v4467 = vrot.slane %v4466, 4
      %v4468 = vsel %vm2443, %v4467, %v4460
      %v4470 = vunpack.c.l.s4 1934713408
      %v4471 = vunpack.c.0.s8 %v4470
      %v4472 = vperm.slane %v4468, %v4471
      %v4473 = vrot.slane %v4472, 4
      %v4474 = vsel %vm2443, 0, %v4473
      %v4475 = vrot.slane %v4415, 4
      %v4476 = vsel %vm2443, %v4475, %v4351
      %v4478 = vunpack.c.l.s4 1983009808
      %v4479 = vunpack.c.0.s8 %v4478
      %v4480 = vperm.slane %v4476, %v4479
      %v4481 = vrot.slane %v4447, 4
      %v4482 = vsel %vm2443, %v4481, %v4383
      %v4484 = vunpack.c.l.s4 1983009808
      %v4485 = vunpack.c.0.s8 %v4484
      %v4486 = vperm.slane %v4482, %v4485
      %v4487 = vrot.slane %v4486, 4
      %v4488 = vsel %vm2443, %v4487, %v4480
      %v4490 = vunpack.c.l.s4 1934713408
      %v4491 = vunpack.c.0.s8 %v4490
      %v4492 = vperm.slane %v4488, %v4491
      %v4493 = vrot.slane %v4492, 4
      %v4494 = vsel %vm2443, 0, %v4493
      %v4497 = vpack.i.b16 %v4492, %v4472
      %v4498 = vshrl.u32 %v4472, 16
      %v4499 = vshrl.u32 %v4492, 16
      %v4500 = vpack.i.b16 %v4499, %v4498
      %v4503 = vpack.i.b16 %v4494, %v4474
      %v4504 = vshrl.u32 %v4474, 16
      %v4505 = vshrl.u32 %v4494, 16
      %v4506 = vpack.i.b16 %v4505, %v4504
      %v4510 = vunpack.c.l.b16 %v3675
      %v4511 = vunpack.c.l.b16 %v3676
      %v4512 = vunpack.c.l.b16 %v3677
      %v4513 = vpack.c.b16 %v4511, %v4510
      %v4514 = vpack.c.b16 %v4512, %v4512
      %v4516 = vsel %vm3542, %v4497, 0
      %v4519 = vsel %vm3542, %v4513, 0
      %v4522 = vsel %vm3542, %v4514, 0
      %4524 = vmatpush.bf16.xpose.msra.mxu0 0
      %4525 = vmatpush.bf16.xpose.msra.mxu0 0
      %4526 = vmatpush.bf16.xpose.msra.mxu0 0
      %4527 = vmatpush.bf16.xpose.msra.mxu0 0
      %4528 = vmatpush.bf16.xpose.msra.mxu0 0
      %4529 = vmatpush.bf16.xpose.msra.mxu0 0
      %4530 = vmatpush.bf16.xpose.msra.mxu0 %v4522
      %4531 = vmatpush.bf16.xpose.msra.mxu0 %v4519
      %4532 = vmatmul.bf16.gmra.mxu0 %v4516
      %v4533 = vpop.f32.mrf.mxu0
      %v4534 = vadd.f32 0.0, %v4533
      %v4535 = vpop.f32.mrf.mxu0
      %4536 = vdwg.mxu0
      %v4540 = vunpack.c.l.b16 %v3678
      %v4541 = vunpack.c.l.b16 %v3679
      %v4542 = vunpack.c.l.b16 %v3680
      %v4543 = vpack.c.b16 %v4541, %v4540
      %v4544 = vpack.c.b16 %v4542, %v4542
      %v4546 = vsel %vm3542, %v4500, 0
      %v4549 = vsel %vm3542, %v4543, 0
      %v4552 = vsel %vm3542, %v4544, 0
      %4554 = vmatpush.bf16.xpose.msra.mxu0 0
      %4555 = vmatpush.bf16.xpose.msra.mxu0 0
      %4556 = vmatpush.bf16.xpose.msra.mxu0 0
      %4557 = vmatpush.bf16.xpose.msra.mxu0 0
      %4558 = vmatpush.bf16.xpose.msra.mxu0 0
      %4559 = vmatpush.bf16.xpose.msra.mxu0 0
      %4560 = vmatpush.bf16.xpose.msra.mxu0 %v4552
      %4561 = vmatpush.bf16.xpose.msra.mxu0 %v4549
      %4562 = vmatmul.bf16.gmra.mxu0 %v4546
      %v4563 = vpop.f32.mrf.mxu0
      %v4564 = vadd.f32 0.0, %v4563
      %v4565 = vpop.f32.mrf.mxu0
      %4566 = vdwg.mxu0
      %v4570 = vunpack.c.l.b16 %v3681
      %v4571 = vunpack.c.l.b16 %v3682
      %v4572 = vunpack.c.l.b16 %v3683
      %v4573 = vpack.c.b16 %v4571, %v4570
      %v4574 = vpack.c.b16 %v4572, %v4572
      %v4576 = vsel %vm3542, %v4503, 0
      %v4579 = vsel %vm3542, %v4573, 0
      %v4582 = vsel %vm3542, %v4574, 0
      %4584 = vmatpush.bf16.xpose.msra.mxu0 0
      %4585 = vmatpush.bf16.xpose.msra.mxu0 0
      %4586 = vmatpush.bf16.xpose.msra.mxu0 0
      %4587 = vmatpush.bf16.xpose.msra.mxu0 0
      %4588 = vmatpush.bf16.xpose.msra.mxu0 0
      %4589 = vmatpush.bf16.xpose.msra.mxu0 0
      %4590 = vmatpush.bf16.xpose.msra.mxu0 %v4582
      %4591 = vmatpush.bf16.xpose.msra.mxu0 %v4579
      %4592 = vmatmul.bf16.gmra.mxu0 %v4576
      %v4593 = vpop.f32.mrf.mxu0
      %v4594 = vadd.f32 0.0, %v4593
      %v4595 = vpop.f32.mrf.mxu0
      %4596 = vdwg.mxu0
      %v4600 = vunpack.c.l.b16 %v3684
      %v4601 = vunpack.c.l.b16 %v3685
      %v4602 = vunpack.c.l.b16 %v3686
      %v4603 = vpack.c.b16 %v4601, %v4600
      %v4604 = vpack.c.b16 %v4602, %v4602
      %v4606 = vsel %vm3542, %v4506, 0
      %v4609 = vsel %vm3542, %v4603, 0
      %v4612 = vsel %vm3542, %v4604, 0
      %4614 = vmatpush.bf16.xpose.msra.mxu0 0
      %4615 = vmatpush.bf16.xpose.msra.mxu0 0
      %4616 = vmatpush.bf16.xpose.msra.mxu0 0
      %4617 = vmatpush.bf16.xpose.msra.mxu0 0
      %4618 = vmatpush.bf16.xpose.msra.mxu0 0
      %4619 = vmatpush.bf16.xpose.msra.mxu0 0
      %4620 = vmatpush.bf16.xpose.msra.mxu0 %v4612
      %4621 = vmatpush.bf16.xpose.msra.mxu0 %v4609
      %4622 = vmatmul.bf16.gmra.mxu0 %v4606
      %v4623 = vpop.f32.mrf.mxu0
      %v4624 = vadd.f32 0.0, %v4623
      %v4625 = vpop.f32.mrf.mxu0
      %4626 = vdwg.mxu0
      %4627 = vxpose.xlu0.b32.start [1/16] %v4534, 128
      %4628 = vxpose.xlu0.b32.cont [2/16] 0.0, 128
      %4629 = vxpose.xlu0.b32.cont [3/16] 0.0, 128
      %4630 = vxpose.xlu0.b32.cont [4/16] 0.0, 128
      %4631 = vxpose.xlu0.b32.cont [5/16] 0.0, 128
      %4632 = vxpose.xlu0.b32.cont [6/16] 0.0, 128
      %4633 = vxpose.xlu0.b32.cont [7/16] 0.0, 128
      %4634 = vxpose.xlu0.b32.cont [8/16] 0.0, 128
      %4635 = vxpose.xlu0.b32.cont [9/16] 0.0, 128
      %4636 = vxpose.xlu0.b32.cont [10/16] 0.0, 128
      %4637 = vxpose.xlu0.b32.cont [11/16] 0.0, 128
      %4638 = vxpose.xlu0.b32.cont [12/16] 0.0, 128
      %4639 = vxpose.xlu0.b32.cont [13/16] 0.0, 128
      %4640 = vxpose.xlu0.b32.cont [14/16] 0.0, 128
      %4641 = vxpose.xlu0.b32.cont [15/16] 0.0, 128
      %4642 = vxpose.xlu0.b32.end [16/16] 0.0, 128
      %v4643 = vpop.trf.xlu0
      %v4644 = vpop.trf.xlu0
      %v4645 = vpop.trf.xlu0
      %v4646 = vpop.trf.xlu0
      %v4647 = vpop.trf.xlu0
      %v4648 = vpop.trf.xlu0
      %v4649 = vpop.trf.xlu0
      %v4650 = vpop.trf.xlu0
      %v4651 = vpop.trf.xlu0
      %v4652 = vpop.trf.xlu0
      %v4653 = vpop.trf.xlu0
      %v4654 = vpop.trf.xlu0
      %v4655 = vpop.trf.xlu0
      %v4656 = vpop.trf.xlu0
      %v4657 = vpop.trf.xlu0
      %v4658 = vpop.trf.xlu0
      %4659 = vxpose.xlu0.b32.start [1/16] %v4564, 128
      %4660 = vxpose.xlu0.b32.cont [2/16] 0.0, 128
      %4661 = vxpose.xlu0.b32.cont [3/16] 0.0, 128
      %4662 = vxpose.xlu0.b32.cont [4/16] 0.0, 128
      %4663 = vxpose.xlu0.b32.cont [5/16] 0.0, 128
      %4664 = vxpose.xlu0.b32.cont [6/16] 0.0, 128
      %4665 = vxpose.xlu0.b32.cont [7/16] 0.0, 128
      %4666 = vxpose.xlu0.b32.cont [8/16] 0.0, 128
      %4667 = vxpose.xlu0.b32.cont [9/16] 0.0, 128
      %4668 = vxpose.xlu0.b32.cont [10/16] 0.0, 128
      %4669 = vxpose.xlu0.b32.cont [11/16] 0.0, 128
      %4670 = vxpose.xlu0.b32.cont [12/16] 0.0, 128
      %4671 = vxpose.xlu0.b32.cont [13/16] 0.0, 128
      %4672 = vxpose.xlu0.b32.cont [14/16] 0.0, 128
      %4673 = vxpose.xlu0.b32.cont [15/16] 0.0, 128
      %4674 = vxpose.xlu0.b32.end [16/16] 0.0, 128
      %v4675 = vpop.trf.xlu0
      %v4676 = vpop.trf.xlu0
      %v4677 = vpop.trf.xlu0
      %v4678 = vpop.trf.xlu0
      %v4679 = vpop.trf.xlu0
      %v4680 = vpop.trf.xlu0
      %v4681 = vpop.trf.xlu0
      %v4682 = vpop.trf.xlu0
      %v4683 = vpop.trf.xlu0
      %v4684 = vpop.trf.xlu0
      %v4685 = vpop.trf.xlu0
      %v4686 = vpop.trf.xlu0
      %v4687 = vpop.trf.xlu0
      %v4688 = vpop.trf.xlu0
      %v4689 = vpop.trf.xlu0
      %v4690 = vpop.trf.xlu0
      %4691 = vxpose.xlu0.b32.start [1/16] %v4594, 128
      %4692 = vxpose.xlu0.b32.cont [2/16] 0.0, 128
      %4693 = vxpose.xlu0.b32.cont [3/16] 0.0, 128
      %4694 = vxpose.xlu0.b32.cont [4/16] 0.0, 128
      %4695 = vxpose.xlu0.b32.cont [5/16] 0.0, 128
      %4696 = vxpose.xlu0.b32.cont [6/16] 0.0, 128
      %4697 = vxpose.xlu0.b32.cont [7/16] 0.0, 128
      %4698 = vxpose.xlu0.b32.cont [8/16] 0.0, 128
      %4699 = vxpose.xlu0.b32.cont [9/16] 0.0, 128
      %4700 = vxpose.xlu0.b32.cont [10/16] 0.0, 128
      %4701 = vxpose.xlu0.b32.cont [11/16] 0.0, 128
      %4702 = vxpose.xlu0.b32.cont [12/16] 0.0, 128
      %4703 = vxpose.xlu0.b32.cont [13/16] 0.0, 128
      %4704 = vxpose.xlu0.b32.cont [14/16] 0.0, 128
      %4705 = vxpose.xlu0.b32.cont [15/16] 0.0, 128
      %4706 = vxpose.xlu0.b32.end [16/16] 0.0, 128
      %v4707 = vpop.trf.xlu0
      %v4708 = vpop.trf.xlu0
      %v4709 = vpop.trf.xlu0
      %v4710 = vpop.trf.xlu0
      %v4711 = vpop.trf.xlu0
      %v4712 = vpop.trf.xlu0
      %v4713 = vpop.trf.xlu0
      %v4714 = vpop.trf.xlu0
      %v4715 = vpop.trf.xlu0
      %v4716 = vpop.trf.xlu0
      %v4717 = vpop.trf.xlu0
      %v4718 = vpop.trf.xlu0
      %v4719 = vpop.trf.xlu0
      %v4720 = vpop.trf.xlu0
      %v4721 = vpop.trf.xlu0
      %v4722 = vpop.trf.xlu0
      %4723 = vxpose.xlu0.b32.start [1/16] %v4624, 128
      %4724 = vxpose.xlu0.b32.cont [2/16] 0.0, 128
      %4725 = vxpose.xlu0.b32.cont [3/16] 0.0, 128
      %4726 = vxpose.xlu0.b32.cont [4/16] 0.0, 128
      %4727 = vxpose.xlu0.b32.cont [5/16] 0.0, 128
      %4728 = vxpose.xlu0.b32.cont [6/16] 0.0, 128
      %4729 = vxpose.xlu0.b32.cont [7/16] 0.0, 128
      %4730 = vxpose.xlu0.b32.cont [8/16] 0.0, 128
      %4731 = vxpose.xlu0.b32.cont [9/16] 0.0, 128
      %4732 = vxpose.xlu0.b32.cont [10/16] 0.0, 128
      %4733 = vxpose.xlu0.b32.cont [11/16] 0.0, 128
      %4734 = vxpose.xlu0.b32.cont [12/16] 0.0, 128
      %4735 = vxpose.xlu0.b32.cont [13/16] 0.0, 128
      %4736 = vxpose.xlu0.b32.cont [14/16] 0.0, 128
      %4737 = vxpose.xlu0.b32.cont [15/16] 0.0, 128
      %4738 = vxpose.xlu0.b32.end [16/16] 0.0, 128
      %v4739 = vpop.trf.xlu0
      %v4740 = vpop.trf.xlu0
      %v4741 = vpop.trf.xlu0
      %v4742 = vpop.trf.xlu0
      %v4743 = vpop.trf.xlu0
      %v4744 = vpop.trf.xlu0
      %v4745 = vpop.trf.xlu0
      %v4746 = vpop.trf.xlu0
      %v4747 = vpop.trf.xlu0
      %v4748 = vpop.trf.xlu0
      %v4749 = vpop.trf.xlu0
      %v4750 = vpop.trf.xlu0
      %v4751 = vpop.trf.xlu0
      %v4752 = vpop.trf.xlu0
      %v4753 = vpop.trf.xlu0
      %v4754 = vpop.trf.xlu0
      %v4755 = vrot.slane %v4707, 4
      %v4756 = vsel %vm640, %v4755, %v4643
      %v4757 = vrot.slane %v4643, 4
      %v4758 = vsel %vm640, %v4707, %v4757
      %v4760 = vunpack.c.l.s4 1983009808
      %v4761 = vunpack.c.0.s8 %v4760
      %v4762 = vperm.slane %v4756, %v4761
      %v4764 = vunpack.c.l.s4 1983009808
      %v4765 = vunpack.c.0.s8 %v4764
      %v4766 = vperm.slane %v4758, %v4765
      %v4767 = vrot.slane %v4739, 4
      %v4768 = vsel %vm640, %v4767, %v4675
      %v4769 = vrot.slane %v4675, 4
      %v4770 = vsel %vm640, %v4739, %v4769
      %v4772 = vunpack.c.l.s4 1983009808
      %v4773 = vunpack.c.0.s8 %v4772
      %v4774 = vperm.slane %v4768, %v4773
      %v4776 = vunpack.c.l.s4 1983009808
      %v4777 = vunpack.c.0.s8 %v4776
      %v4778 = vperm.slane %v4770, %v4777
      %v4779 = vrot.slane %v4774, 4
      %v4780 = vsel %vm640, %v4779, %v4762
      %v4781 = vrot.slane %v4762, 4
      %v4782 = vsel %vm640, %v4774, %v4781
      %v4784 = vunpack.c.l.s4 1934713408
      %v4785 = vunpack.c.0.s8 %v4784
      %v4786 = vperm.slane %v4780, %v4785
      %v4788 = vunpack.c.l.s4 1934713408
      %v4789 = vunpack.c.0.s8 %v4788
      %v4790 = vperm.slane %v4782, %v4789
      %v4791 = vrot.slane %v4778, 4
      %v4792 = vsel %vm640, %v4791, %v4766
      %v4793 = vrot.slane %v4766, 4
      %v4794 = vsel %vm640, %v4778, %v4793
      %v4796 = vunpack.c.l.s4 1934713408
      %v4797 = vunpack.c.0.s8 %v4796
      %v4798 = vperm.slane %v4792, %v4797
      %v4800 = vunpack.c.l.s4 1934713408
      %v4801 = vunpack.c.0.s8 %v4800
      %v4802 = vperm.slane %v4794, %v4801
      %v4803 = vrot.slane %v4786, 4
      %v4804 = vsel %vm640, 0.0, %v4803
      %v4805 = vrot.slane %v4790, 4
      %v4806 = vsel %vm640, 0.0, %v4805
      %v4807 = vrot.slane %v4798, 4
      %v4808 = vsel %vm640, 0.0, %v4807
      %v4809 = vrot.slane %v4802, 4
      %v4810 = vsel %vm640, 0.0, %v4809
      %v4811 = vrot.slane %v4708, 4
      %v4812 = vsel %vm640, %v4811, %v4644
      %v4813 = vrot.slane %v4644, 4
      %v4814 = vsel %vm640, %v4708, %v4813
      %v4816 = vunpack.c.l.s4 1983009808
      %v4817 = vunpack.c.0.s8 %v4816
      %v4818 = vperm.slane %v4812, %v4817
      %v4820 = vunpack.c.l.s4 1983009808
      %v4821 = vunpack.c.0.s8 %v4820
      %v4822 = vperm.slane %v4814, %v4821
      %v4823 = vrot.slane %v4740, 4
      %v4824 = vsel %vm640, %v4823, %v4676
      %v4825 = vrot.slane %v4676, 4
      %v4826 = vsel %vm640, %v4740, %v4825
      %v4828 = vunpack.c.l.s4 1983009808
      %v4829 = vunpack.c.0.s8 %v4828
      %v4830 = vperm.slane %v4824, %v4829
      %v4832 = vunpack.c.l.s4 1983009808
      %v4833 = vunpack.c.0.s8 %v4832
      %v4834 = vperm.slane %v4826, %v4833
      %v4835 = vrot.slane %v4830, 4
      %v4836 = vsel %vm640, %v4835, %v4818
      %v4837 = vrot.slane %v4818, 4
      %v4838 = vsel %vm640, %v4830, %v4837
      %v4840 = vunpack.c.l.s4 1934713408
      %v4841 = vunpack.c.0.s8 %v4840
      %v4842 = vperm.slane %v4836, %v4841
      %v4844 = vunpack.c.l.s4 1934713408
      %v4845 = vunpack.c.0.s8 %v4844
      %v4846 = vperm.slane %v4838, %v4845
      %v4847 = vrot.slane %v4834, 4
      %v4848 = vsel %vm640, %v4847, %v4822
      %v4849 = vrot.slane %v4822, 4
      %v4850 = vsel %vm640, %v4834, %v4849
      %v4852 = vunpack.c.l.s4 1934713408
      %v4853 = vunpack.c.0.s8 %v4852
      %v4854 = vperm.slane %v4848, %v4853
      %v4856 = vunpack.c.l.s4 1934713408
      %v4857 = vunpack.c.0.s8 %v4856
      %v4858 = vperm.slane %v4850, %v4857
      %v4859 = vrot.slane %v4842, 4
      %v4860 = vsel %vm640, 0.0, %v4859
      %v4861 = vrot.slane %v4846, 4
      %v4862 = vsel %vm640, 0.0, %v4861
      %v4863 = vrot.slane %v4854, 4
      %v4864 = vsel %vm640, 0.0, %v4863
      %v4865 = vrot.slane %v4858, 4
      %v4866 = vsel %vm640, 0.0, %v4865
      %v4867 = vrot.slane %v4709, 4
      %v4868 = vsel %vm640, %v4867, %v4645
      %v4869 = vrot.slane %v4645, 4
      %v4870 = vsel %vm640, %v4709, %v4869
      %v4872 = vunpack.c.l.s4 1983009808
      %v4873 = vunpack.c.0.s8 %v4872
      %v4874 = vperm.slane %v4868, %v4873
      %v4876 = vunpack.c.l.s4 1983009808
      %v4877 = vunpack.c.0.s8 %v4876
      %v4878 = vperm.slane %v4870, %v4877
      %v4879 = vrot.slane %v4741, 4
      %v4880 = vsel %vm640, %v4879, %v4677
      %v4881 = vrot.slane %v4677, 4
      %v4882 = vsel %vm640, %v4741, %v4881
      %v4884 = vunpack.c.l.s4 1983009808
      %v4885 = vunpack.c.0.s8 %v4884
      %v4886 = vperm.slane %v4880, %v4885
      %v4888 = vunpack.c.l.s4 1983009808
      %v4889 = vunpack.c.0.s8 %v4888
      %v4890 = vperm.slane %v4882, %v4889
      %v4891 = vrot.slane %v4886, 4
      %v4892 = vsel %vm640, %v4891, %v4874
      %v4893 = vrot.slane %v4874, 4
      %v4894 = vsel %vm640, %v4886, %v4893
      %v4896 = vunpack.c.l.s4 1934713408
      %v4897 = vunpack.c.0.s8 %v4896
      %v4898 = vperm.slane %v4892, %v4897
      %v4900 = vunpack.c.l.s4 1934713408
      %v4901 = vunpack.c.0.s8 %v4900
      %v4902 = vperm.slane %v4894, %v4901
      %v4903 = vrot.slane %v4890, 4
      %v4904 = vsel %vm640, %v4903, %v4878
      %v4905 = vrot.slane %v4878, 4
      %v4906 = vsel %vm640, %v4890, %v4905
      %v4908 = vunpack.c.l.s4 1934713408
      %v4909 = vunpack.c.0.s8 %v4908
      %v4910 = vperm.slane %v4904, %v4909
      %v4912 = vunpack.c.l.s4 1934713408
      %v4913 = vunpack.c.0.s8 %v4912
      %v4914 = vperm.slane %v4906, %v4913
      %v4915 = vrot.slane %v4898, 4
      %v4916 = vsel %vm640, 0.0, %v4915
      %v4917 = vrot.slane %v4902, 4
      %v4918 = vsel %vm640, 0.0, %v4917
      %v4919 = vrot.slane %v4910, 4
      %v4920 = vsel %vm640, 0.0, %v4919
      %v4921 = vrot.slane %v4914, 4
      %v4922 = vsel %vm640, 0.0, %v4921
      %v4923 = vsel %vm640, %v4805, %v4786
      %v4925 = vunpack.c.l.s4 1983009808
      %v4926 = vunpack.c.0.s8 %v4925
      %v4927 = vperm.slane %v4923, %v4926
      %v4928 = vrot.slane %v4806, 4
      %v4929 = vsel %vm640, %v4928, %v4804
      %v4931 = vunpack.c.l.s4 1983009808
      %v4932 = vunpack.c.0.s8 %v4931
      %v4933 = vperm.slane %v4929, %v4932
      %v4934 = vsel %vm640, %v4809, %v4798
      %v4936 = vunpack.c.l.s4 1983009808
      %v4937 = vunpack.c.0.s8 %v4936
      %v4938 = vperm.slane %v4934, %v4937
      %v4939 = vrot.slane %v4810, 4
      %v4940 = vsel %vm640, %v4939, %v4808
      %v4942 = vunpack.c.l.s4 1983009808
      %v4943 = vunpack.c.0.s8 %v4942
      %v4944 = vperm.slane %v4940, %v4943
      %v4945 = vrot.slane %v4933, 4
      %v4946 = vsel %vm640, %v4945, %v4927
      %v4947 = vrot.slane %v4927, 4
      %v4948 = vsel %vm640, %v4933, %v4947
      %v4950 = vunpack.c.l.s4 1934713408
      %v4951 = vunpack.c.0.s8 %v4950
      %v4952 = vperm.slane %v4946, %v4951
      %v4954 = vunpack.c.l.s4 1934713408
      %v4955 = vunpack.c.0.s8 %v4954
      %v4956 = vperm.slane %v4948, %v4955
      %v4957 = vrot.slane %v4944, 4
      %v4958 = vsel %vm640, %v4957, %v4938
      %v4959 = vrot.slane %v4938, 4
      %v4960 = vsel %vm640, %v4944, %v4959
      %v4962 = vunpack.c.l.s4 1934713408
      %v4963 = vunpack.c.0.s8 %v4962
      %v4964 = vperm.slane %v4958, %v4963
      %v4966 = vunpack.c.l.s4 1934713408
      %v4967 = vunpack.c.0.s8 %v4966
      %v4968 = vperm.slane %v4960, %v4967
      %v4969 = vrot.slane %v4964, 4
      %v4970 = vsel %vm640, %v4969, %v4952
      %v4971 = vrot.slane %v4952, 4
      %v4972 = vsel %vm640, %v4964, %v4971
      %v4973 = vrot.slane %v4968, 4
      %v4974 = vsel %vm640, %v4973, %v4956
      %v4975 = vrot.slane %v4956, 4
      %v4976 = vsel %vm640, %v4968, %v4975
      %v4977 = vsel %vm640, %v4861, %v4842
      %v4979 = vunpack.c.l.s4 1983009808
      %v4980 = vunpack.c.0.s8 %v4979
      %v4981 = vperm.slane %v4977, %v4980
      %v4982 = vrot.slane %v4862, 4
      %v4983 = vsel %vm640, %v4982, %v4860
      %v4985 = vunpack.c.l.s4 1983009808
      %v4986 = vunpack.c.0.s8 %v4985
      %v4987 = vperm.slane %v4983, %v4986
      %v4988 = vsel %vm640, %v4865, %v4854
      %v4990 = vunpack.c.l.s4 1983009808
      %v4991 = vunpack.c.0.s8 %v4990
      %v4992 = vperm.slane %v4988, %v4991
      %v4993 = vrot.slane %v4866, 4
      %v4994 = vsel %vm640, %v4993, %v4864
      %v4996 = vunpack.c.l.s4 1983009808
      %v4997 = vunpack.c.0.s8 %v4996
      %v4998 = vperm.slane %v4994, %v4997
      %v4999 = vrot.slane %v4987, 4
      %v5000 = vsel %vm640, %v4999, %v4981
      %v5001 = vrot.slane %v4981, 4
      %v5002 = vsel %vm640, %v4987, %v5001
      %v5004 = vunpack.c.l.s4 1934713408
      %v5005 = vunpack.c.0.s8 %v5004
      %v5006 = vperm.slane %v5000, %v5005
      %v5008 = vunpack.c.l.s4 1934713408
      %v5009 = vunpack.c.0.s8 %v5008
      %v5010 = vperm.slane %v5002, %v5009
      %v5011 = vrot.slane %v4998, 4
      %v5012 = vsel %vm640, %v5011, %v4992
      %v5013 = vrot.slane %v4992, 4
      %v5014 = vsel %vm640, %v4998, %v5013
      %v5016 = vunpack.c.l.s4 1934713408
      %v5017 = vunpack.c.0.s8 %v5016
      %v5018 = vperm.slane %v5012, %v5017
      %v5020 = vunpack.c.l.s4 1934713408
      %v5021 = vunpack.c.0.s8 %v5020
      %v5022 = vperm.slane %v5014, %v5021
      %v5023 = vrot.slane %v5018, 4
      %v5024 = vsel %vm640, %v5023, %v5006
      %v5025 = vrot.slane %v5006, 4
      %v5026 = vsel %vm640, %v5018, %v5025
      %v5027 = vrot.slane %v5022, 4
      %v5028 = vsel %vm640, %v5027, %v5010
      %v5029 = vrot.slane %v5010, 4
      %v5030 = vsel %vm640, %v5022, %v5029
      %v5031 = vsel %vm640, %v4917, %v4898
      %v5033 = vunpack.c.l.s4 1983009808
      %v5034 = vunpack.c.0.s8 %v5033
      %v5035 = vperm.slane %v5031, %v5034
      %v5036 = vrot.slane %v4918, 4
      %v5037 = vsel %vm640, %v5036, %v4916
      %v5039 = vunpack.c.l.s4 1983009808
      %v5040 = vunpack.c.0.s8 %v5039
      %v5041 = vperm.slane %v5037, %v5040
      %v5042 = vsel %vm640, %v4921, %v4910
      %v5044 = vunpack.c.l.s4 1983009808
      %v5045 = vunpack.c.0.s8 %v5044
      %v5046 = vperm.slane %v5042, %v5045
      %v5047 = vrot.slane %v4922, 4
      %v5048 = vsel %vm640, %v5047, %v4920
      %v5050 = vunpack.c.l.s4 1983009808
      %v5051 = vunpack.c.0.s8 %v5050
      %v5052 = vperm.slane %v5048, %v5051
      %v5053 = vrot.slane %v5041, 4
      %v5054 = vsel %vm640, %v5053, %v5035
      %v5055 = vrot.slane %v5035, 4
      %v5056 = vsel %vm640, %v5041, %v5055
      %v5058 = vunpack.c.l.s4 1934713408
      %v5059 = vunpack.c.0.s8 %v5058
      %v5060 = vperm.slane %v5054, %v5059
      %v5062 = vunpack.c.l.s4 1934713408
      %v5063 = vunpack.c.0.s8 %v5062
      %v5064 = vperm.slane %v5056, %v5063
      %v5065 = vrot.slane %v5052, 4
      %v5066 = vsel %vm640, %v5065, %v5046
      %v5067 = vrot.slane %v5046, 4
      %v5068 = vsel %vm640, %v5052, %v5067
      %v5070 = vunpack.c.l.s4 1934713408
      %v5071 = vunpack.c.0.s8 %v5070
      %v5072 = vperm.slane %v5066, %v5071
      %v5074 = vunpack.c.l.s4 1934713408
      %v5075 = vunpack.c.0.s8 %v5074
      %v5076 = vperm.slane %v5068, %v5075
      %v5077 = vrot.slane %v5072, 4
      %v5078 = vsel %vm640, %v5077, %v5060
      %v5079 = vrot.slane %v5060, 4
      %v5080 = vsel %vm640, %v5072, %v5079
      %v5081 = vrot.slane %v5076, 4
      %v5082 = vsel %vm640, %v5081, %v5064
      %v5083 = vrot.slane %v5064, 4
      %v5084 = vsel %vm640, %v5076, %v5083
      %5088 = vrot.lane.b32.xlu0 %v4972, 8
      %v5089 = vpop.permute.xlu0 %5088
      %5090 = vrot.lane.b32.xlu0 %v5026, 8
      %v5091 = vpop.permute.xlu0 %5090
      %5092 = vrot.lane.b32.xlu0 %v5080, 8
      %v5093 = vpop.permute.xlu0 %5092
      %5100 = vrot.lane.b32.xlu0 %v4974, 16
      %v5101 = vpop.permute.xlu0 %5100
      %5102 = vrot.lane.b32.xlu0 %v5028, 16
      %v5103 = vpop.permute.xlu0 %5102
      %5104 = vrot.lane.b32.xlu0 %v5082, 16
      %v5105 = vpop.permute.xlu0 %5104
      %5112 = vrot.lane.b32.xlu0 %v4976, 24
      %v5113 = vpop.permute.xlu0 %5112
      %5114 = vrot.lane.b32.xlu0 %v5030, 24
      %v5115 = vpop.permute.xlu0 %5114
      %5116 = vrot.lane.b32.xlu0 %v5084, 24
      %v5117 = vpop.permute.xlu0 %5116
      %v5121 = vsel %vm3400, %v4970, %v5089
      %v5122 = vsel %vm3400, %v5024, %v5091
      %v5123 = vsel %vm3400, %v5078, %v5093
      %vm5124 = vcmask 130048
      %v5125 = vsel %vm5124, %v5121, %v5101
      %v5126 = vsel %vm5124, %v5122, %v5103
      %v5127 = vsel %vm5124, %v5123, %v5105
      %v5128 = vsel %vm3542, %v5125, %v5113
      %v5129 = vsel %vm3542, %v5126, %v5115
      %v5130 = vsel %vm3542, %v5127, %v5117
      %v5131 = vpack.c.bf16 %v5129, %v5128
      %v5132 = vpack.c.bf16 %v5130, %v5130
      %v5133 = vld [vmem:[%s7] sm:$0xf]
      %v5134 = vld [vmem:[%s7 + $0x4] sm:$0xf]
      %v5135 = vld [vmem:[%s7 + $0x8] sm:$0xf]
      %v5136 = vld [vmem:[%s7 + $0xc] sm:$0xf]
      %v5137 = vld [vmem:[%s8] sm:$0x1]
      %v5139 = vperm.slane %v5137, 0
      %v5145 = vunpack.c.l.b16 %v5133
      %v5146 = vunpack.c.l.b16 %v5134
      %v5147 = vunpack.c.l.b16 %v5135
      %v5148 = vunpack.c.l.b16 %v5136
      %v5149 = vpack.c.b16 %v5146, %v5145
      %v5150 = vpack.c.b16 %v5148, %v5147
      %v5154 = vsel %vm584, %v5131, 0
      %v5157 = vsel %vm584, %v5132, 0
      %5159 = vmatpush.bf16.msra.mxu0 0
      %5160 = vmatpush.bf16.msra.mxu0 0
      %5161 = vmatpush.bf16.msra.mxu0 0
      %5162 = vmatpush.bf16.msra.mxu0 0
      %5163 = vmatpush.bf16.msra.mxu0 0
      %5164 = vmatpush.bf16.msra.mxu0 0
      %5165 = vmatpush.bf16.msra.mxu0 %v5150
      %5166 = vmatpush.bf16.msra.mxu0 %v5149
      %5167 = vmatmul.bf16.gmra.mxu0 %v5154
      %v5168 = vpop.f32.mrf.mxu0
      %v5169 = vadd.f32 %v5139, %v5168
      %v5170 = vpop.f32.mrf.mxu0
      %v5171 = vadd.f32 %v5139, %v5170
      %5172 = vmatmul.bf16.gmra.mxu0 %v5157
      %v5173 = vpop.f32.mrf.mxu0
      %v5174 = vadd.f32 %v5139, %v5173
      %v5175 = vpop.f32.mrf.mxu0
      %5176 = vdwg.mxu0
      %v5177 = vld [vmem:[%s9] sm:$0x1]
      %v5178 = vld [vmem:[%s10] sm:$0x1]
      %v5179 = vsel %vm584, %v5169, 0.0
      %5180 = vadd.xlane.f32.xlu0 %v5179
      %v5181 = vpop.xlane.xlu0 %5180
      %v5182 = vsel %vm584, %v5171, 0.0
      %5183 = vadd.xlane.f32.xlu0 %v5182
      %v5184 = vpop.xlane.xlu0 %5183
      %v5185 = vsel %vm584, %v5174, 0.0
      %5186 = vadd.xlane.f32.xlu0 %v5185
      %v5187 = vpop.xlane.xlu0 %5186
      %v5188 = vrcp.pop 32.0
      %v5189 = vmul.f32 32.0, %v5188
      %v5190 = vsub.f32 1.0, %v5189
      %v5191 = vmul.f32 %v5188, %v5190
      %v5192 = vadd.f32 %v5188, %v5191
      %vm5193 = vweird.f32 %v5188
      %v5194 = vsel %vm5193, %v5188, %v5192
      %v5195 = vmul.f32 %v5181, %v5194
      %v5196 = vmul.f32 %v5184, %v5194
      %v5197 = vmul.f32 %v5187, %v5194
      %v5198 = vsub.f32 %v5169, %v5195
      %v5199 = vsub.f32 %v5171, %v5196
      %v5200 = vsub.f32 %v5174, %v5197
      %v5201 = vmul.f32 %v5198, %v5198
      %v5202 = vmul.f32 %v5199, %v5199
      %v5203 = vmul.f32 %v5200, %v5200
      %v5204 = vsel %vm584, %v5201, 0.0
      %5205 = vadd.xlane.f32.xlu0 %v5204
      %v5206 = vpop.xlane.xlu0 %5205
      %v5207 = vsel %vm584, %v5202, 0.0
      %5208 = vadd.xlane.f32.xlu0 %v5207
      %v5209 = vpop.xlane.xlu0 %5208
      %v5210 = vsel %vm584, %v5203, 0.0
      %5211 = vadd.xlane.f32.xlu0 %v5210
      %v5212 = vpop.xlane.xlu0 %5211
      %v5213 = vmul.f32 %v5206, %v5194
      %v5214 = vmul.f32 %v5209, %v5194
      %v5215 = vmul.f32 %v5212, %v5194
      %v5216 = vadd.f32 %v5213, 1e-05
      %v5217 = vadd.f32 %v5214, 1e-05
      %v5218 = vadd.f32 %v5215, 1e-05
      %v5219 = vrsqrt.pop %v5216
      %v5220 = vmul.f32 %v5219, %v5216
      %v5221 = vmul.f32 %v5220, %v5219
      %v5222 = vmul.f32 0.5, %v5221
      %v5223 = vsub.f32 1.5, %v5222
      %v5224 = vmul.f32 %v5219, %v5223
      %vm5225 = vweird.f32 %v5216
      %vm5226 = vweird.f32 %v5219
      %vm5227 = vmor %vm5225, %vm5226
      %v5228 = vsel %vm5227, %v5219, %v5224
      %v5229 = vrsqrt.pop %v5217
      %v5230 = vmul.f32 %v5229, %v5217
      %v5231 = vmul.f32 %v5230, %v5229
      %v5232 = vmul.f32 0.5, %v5231
      %v5233 = vsub.f32 1.5, %v5232
      %v5234 = vmul.f32 %v5229, %v5233
      %vm5235 = vweird.f32 %v5217
      %vm5236 = vweird.f32 %v5229
      %vm5237 = vmor %vm5235, %vm5236
      %v5238 = vsel %vm5237, %v5229, %v5234
      %v5239 = vrsqrt.pop %v5218
      %v5240 = vmul.f32 %v5239, %v5218
      %v5241 = vmul.f32 %v5240, %v5239
      %v5242 = vmul.f32 0.5, %v5241
      %v5243 = vsub.f32 1.5, %v5242
      %v5244 = vmul.f32 %v5239, %v5243
      %vm5245 = vweird.f32 %v5218
      %vm5246 = vweird.f32 %v5239
      %vm5247 = vmor %vm5245, %vm5246
      %v5248 = vsel %vm5247, %v5239, %v5244
      %v5249 = vmul.f32 %v5198, %v5228
      %v5250 = vmul.f32 %v5199, %v5238
      %v5251 = vmul.f32 %v5200, %v5248
      %v5253 = vperm.slane %v5177, 0
      %v5255 = vmul.f32 %v5249, %v5253
      %v5256 = vmul.f32 %v5250, %v5253
      %v5257 = vmul.f32 %v5251, %v5253
      %v5259 = vperm.slane %v5178, 0
      %v5261 = vadd.f32 %v5255, %v5259
      %v5262 = vadd.f32 %v5256, %v5259
      %v5263 = vadd.f32 %v5257, %v5259
      %v5264 = vadd.f32 %v5261, %v553
      %v5265 = vadd.f32 %v5262, %v554
      %v5266 = vadd.f32 %v5263, %v555
      %v5267 = vpack.c.bf16 %v5265, %v5264
      %v5268 = vpack.c.bf16 %v5266, %v5266
      %v5269 = vld [vmem:[%s11] sm:$0xf]
      %v5270 = vld [vmem:[%s11 + $0x4] sm:$0xf]
      %v5271 = vld [vmem:[%s11 + $0x8] sm:$0xf]
      %v5272 = vld [vmem:[%s11 + $0xc] sm:$0xf]
      %v5273 = vld [vmem:[%s12] sm:$0x1]
      %v5275 = vperm.slane %v5273, 0
      %v5281 = vunpack.c.l.b16 %v5269
      %v5282 = vunpack.c.l.b16 %v5270
      %v5283 = vunpack.c.l.b16 %v5271
      %v5284 = vunpack.c.l.b16 %v5272
      %v5285 = vpack.c.b16 %v5282, %v5281
      %v5286 = vpack.c.b16 %v5284, %v5283
      %v5290 = vsel %vm584, %v5267, 0
      %v5293 = vsel %vm584, %v5268, 0
      %5295 = vmatpush.bf16.msra.mxu0 0
      %5296 = vmatpush.bf16.msra.mxu0 0
      %5297 = vmatpush.bf16.msra.mxu0 0
      %5298 = vmatpush.bf16.msra.mxu0 0
      %5299 = vmatpush.bf16.msra.mxu0 0
      %5300 = vmatpush.bf16.msra.mxu0 0
      %5301 = vmatpush.bf16.msra.mxu0 %v5286
      %5302 = vmatpush.bf16.msra.mxu0 %v5285
      %5303 = vmatmul.bf16.gmra.mxu0 %v5290
      %v5304 = vpop.f32.mrf.mxu0
      %v5305 = vadd.f32 %v5275, %v5304
      %v5306 = vpop.f32.mrf.mxu0
      %v5307 = vadd.f32 %v5275, %v5306
      %5308 = vmatmul.bf16.gmra.mxu0 %v5293
      %v5309 = vpop.f32.mrf.mxu0
      %v5310 = vadd.f32 %v5275, %v5309
      %v5311 = vpop.f32.mrf.mxu0
      %5312 = vdwg.mxu0
      %v5313 = vmul.f32 %v5305, %v5305
      %v5314 = vmul.f32 %v5307, %v5307
      %v5315 = vmul.f32 %v5310, %v5310
      %v5316 = vmul.f32 %v5305, %v5313
      %v5317 = vmul.f32 %v5307, %v5314
      %v5318 = vmul.f32 %v5310, %v5315
      %v5319 = vmul.f32 %v5316, 0.044715
      %v5320 = vmul.f32 %v5317, 0.044715
      %v5321 = vmul.f32 %v5318, 0.044715
      %v5322 = vadd.f32 %v5305, %v5319
      %v5323 = vadd.f32 %v5307, %v5320
      %v5324 = vadd.f32 %v5310, %v5321
      %v5325 = vmul.f32 %v5322, 0.7978846
      %v5326 = vmul.f32 %v5323, 0.7978846
      %v5327 = vmul.f32 %v5324, 0.7978846
      %v5328 = vtanh.pop %v5325
      %v5329 = vtanh.pop %v5326
      %v5330 = vtanh.pop %v5327
      %v5331 = vadd.f32 %v5328, 1.0
      %v5332 = vadd.f32 %v5329, 1.0
      %v5333 = vadd.f32 %v5330, 1.0
      %v5334 = vmul.f32 %v5331, 0.5
      %v5335 = vmul.f32 %v5332, 0.5
      %v5336 = vmul.f32 %v5333, 0.5
      %v5337 = vmul.f32 %v5305, %v5334
      %v5338 = vmul.f32 %v5307, %v5335
      %v5339 = vmul.f32 %v5310, %v5336
      %v5340 = vpack.c.bf16 %v5338, %v5337
      %v5341 = vpack.c.bf16 %v5339, %v5339
      %v5342 = vld [vmem:[%s13] sm:$0xf]
      %v5343 = vld [vmem:[%s13 + $0x4] sm:$0xf]
      %v5344 = vld [vmem:[%s13 + $0x8] sm:$0xf]
      %v5345 = vld [vmem:[%s13 + $0xc] sm:$0xf]
      %v5346 = vld [vmem:[%s13 + $0x10] sm:$0xf]
      %v5347 = vld [vmem:[%s13 + $0x14] sm:$0xf]
      %v5348 = vld [vmem:[%s13 + $0x18] sm:$0xf]
      %v5349 = vld [vmem:[%s13 + $0x1c] sm:$0xf]
      %v5350 = vld [vmem:[%s14] sm:$0x1]
      %v5352 = vperm.slane %v5350, 0
      %v5362 = vunpack.c.l.b16 %v5342
      %v5363 = vunpack.c.l.b16 %v5343
      %v5364 = vunpack.c.l.b16 %v5344
      %v5365 = vunpack.c.l.b16 %v5345
      %v5366 = vunpack.c.l.b16 %v5346
      %v5367 = vunpack.c.l.b16 %v5347
      %v5368 = vunpack.c.l.b16 %v5348
      %v5369 = vunpack.c.l.b16 %v5349
      %v5370 = vpack.c.b16 %v5363, %v5362
      %v5371 = vpack.c.b16 %v5365, %v5364
      %v5372 = vpack.c.b16 %v5367, %v5366
      %v5373 = vpack.c.b16 %v5369, %v5368
      %vm5378 = vcmask 523264
      %v5380 = vsel %vm5378, %v5340, 0
      %v5383 = vsel %vm5378, %v5341, 0
      %5385 = vmatpush.bf16.msra.mxu0 0
      %5386 = vmatpush.bf16.msra.mxu0 0
      %5387 = vmatpush.bf16.msra.mxu0 0
      %5388 = vmatpush.bf16.msra.mxu0 0
      %5389 = vmatpush.bf16.msra.mxu0 %v5373
      %5390 = vmatpush.bf16.msra.mxu0 %v5372
      %5391 = vmatpush.bf16.msra.mxu0 %v5371
      %5392 = vmatpush.bf16.msra.mxu0 %v5370
      %5393 = vmatmul.bf16.gmra.mxu0 %v5380
      %v5394 = vpop.f32.mrf.mxu0
      %v5395 = vadd.f32 %v5352, %v5394
      %v5396 = vpop.f32.mrf.mxu0
      %v5397 = vadd.f32 %v5352, %v5396
      %5398 = vmatmul.bf16.gmra.mxu0 %v5383
      %v5399 = vpop.f32.mrf.mxu0
      %v5400 = vadd.f32 %v5352, %v5399
      %v5401 = vpop.f32.mrf.mxu0
      %5402 = vdwg.mxu0
      %v5403 = vld [vmem:[%s15] sm:$0x1]
      %v5404 = vld [vmem:[%s16] sm:$0x1]
      %v5405 = vsel %vm584, %v5395, 0.0
      %5406 = vadd.xlane.f32.xlu0 %v5405
      %v5407 = vpop.xlane.xlu0 %5406
      %v5408 = vsel %vm584, %v5397, 0.0
      %5409 = vadd.xlane.f32.xlu0 %v5408
      %v5410 = vpop.xlane.xlu0 %5409
      %v5411 = vsel %vm584, %v5400, 0.0
      %5412 = vadd.xlane.f32.xlu0 %v5411
      %v5413 = vpop.xlane.xlu0 %5412
      %v5414 = vmul.f32 %v5407, %v5194
      %v5415 = vmul.f32 %v5410, %v5194
      %v5416 = vmul.f32 %v5413, %v5194
      %v5417 = vsub.f32 %v5395, %v5414
      %v5418 = vsub.f32 %v5397, %v5415
      %v5419 = vsub.f32 %v5400, %v5416
      %v5420 = vmul.f32 %v5417, %v5417
      %v5421 = vmul.f32 %v5418, %v5418
      %v5422 = vmul.f32 %v5419, %v5419
      %v5423 = vsel %vm584, %v5420, 0.0
      %5424 = vadd.xlane.f32.xlu0 %v5423
      %v5425 = vpop.xlane.xlu0 %5424
      %v5426 = vsel %vm584, %v5421, 0.0
      %5427 = vadd.xlane.f32.xlu0 %v5426
      %v5428 = vpop.xlane.xlu0 %5427
      %v5429 = vsel %vm584, %v5422, 0.0
      %5430 = vadd.xlane.f32.xlu0 %v5429
      %v5431 = vpop.xlane.xlu0 %5430
      %v5432 = vmul.f32 %v5425, %v5194
      %v5433 = vmul.f32 %v5428, %v5194
      %v5434 = vmul.f32 %v5431, %v5194
      %v5435 = vadd.f32 %v5432, 1e-05
      %v5436 = vadd.f32 %v5433, 1e-05
      %v5437 = vadd.f32 %v5434, 1e-05
      %v5438 = vrsqrt.pop %v5435
      %v5439 = vmul.f32 %v5438, %v5435
      %v5440 = vmul.f32 %v5439, %v5438
      %v5441 = vmul.f32 0.5, %v5440
      %v5442 = vsub.f32 1.5, %v5441
      %v5443 = vmul.f32 %v5438, %v5442
      %vm5444 = vweird.f32 %v5435
      %vm5445 = vweird.f32 %v5438
      %vm5446 = vmor %vm5444, %vm5445
      %v5447 = vsel %vm5446, %v5438, %v5443
      %v5448 = vrsqrt.pop %v5436
      %v5449 = vmul.f32 %v5448, %v5436
      %v5450 = vmul.f32 %v5449, %v5448
      %v5451 = vmul.f32 0.5, %v5450
      %v5452 = vsub.f32 1.5, %v5451
      %v5453 = vmul.f32 %v5448, %v5452
      %vm5454 = vweird.f32 %v5436
      %vm5455 = vweird.f32 %v5448
      %vm5456 = vmor %vm5454, %vm5455
      %v5457 = vsel %vm5456, %v5448, %v5453
      %v5458 = vrsqrt.pop %v5437
      %v5459 = vmul.f32 %v5458, %v5437
      %v5460 = vmul.f32 %v5459, %v5458
      %v5461 = vmul.f32 0.5, %v5460
      %v5462 = vsub.f32 1.5, %v5461
      %v5463 = vmul.f32 %v5458, %v5462
      %vm5464 = vweird.f32 %v5437
      %vm5465 = vweird.f32 %v5458
      %vm5466 = vmor %vm5464, %vm5465
      %v5467 = vsel %vm5466, %v5458, %v5463
      %v5468 = vmul.f32 %v5417, %v5447
      %v5469 = vmul.f32 %v5418, %v5457
      %v5470 = vmul.f32 %v5419, %v5467
      %v5472 = vperm.slane %v5403, 0
      %v5474 = vmul.f32 %v5468, %v5472
      %v5475 = vmul.f32 %v5469, %v5472
      %v5476 = vmul.f32 %v5470, %v5472
      %v5478 = vperm.slane %v5404, 0
      %v5480 = vadd.f32 %v5474, %v5478
      %v5481 = vadd.f32 %v5475, %v5478
      %v5482 = vadd.f32 %v5476, %v5478
      %v5483 = vadd.f32 %v5480, %v5264
      %v5484 = vadd.f32 %v5481, %v5265
      %v5485 = vadd.f32 %v5482, %v5266
      %v5486 = vlaneseq
      %v5487 = vshrl.u32 %v5486, 7
      %v5488 = vadd.s32 %v5487, 8
      %v5489 = vadd.s32 %v5487, 16
      %vm5490 = vcmp.lt.s32.totalorder %v5487, 17
      %vm5491 = vcmp.lt.s32.totalorder %v5488, 17
      %vm5492 = vcmp.lt.s32.totalorder %v5489, 17
      %v5493 = vsel %vm5490, 1, 0
      %v5494 = vsel %vm5491, 1, 0
      %v5495 = vsel %vm5492, 1, 0
      %vm5496 = vcmp.eq.s32.totalorder %v5493, 1
      %vm5497 = vcmp.eq.s32.totalorder %v5494, 1
      %vm5498 = vcmp.eq.s32.totalorder %v5495, 1
      %v5499 = vsel %vm5496, %v5483, 0.0
      %v5500 = vsel %vm5497, %v5484, 0.0
      %v5501 = vsel %vm5498, %v5485, 0.0
      %v5502 = vpack.c.bf16 %v5499, %v5499
      %v5503 = vpack.c.bf16 %v5500, %v5500
      %v5504 = vpack.c.bf16 %v5501, %v5501
      %vm5505 = vcmask 257024
      %5506 = vst.msk [vmem:[%s548] sm:$0xf] %vm5505, %v5502
      %5507 = vst.msk [vmem:[%s548 + $0x4] sm:$0xf] %vm5505, %v5503
      %5508 = vst.msk [vmem:[%s548 + $0x8] sm:$0xf] %vm5505, %v5504
      %p5509 = scmp.lt.s32.totalorder %s28, 1
      %s5510 = scalar_select %p5509, %s28, 1
      %s5511 = smul.addr %s5510, 3
      %s5512 = smul.addr %s5511, 4
      %s5513 = scalar_lea.vmem %s17, %s5512
      // Predicated region
      $region89: #{vit_backbone_forward.4} parent=87 // pred_check
        %p5514 = pneg %p408
      $region90: #{vit_backbone_forward.4} parent=87 // pred_check_branch
        %5516 = sbr.rel (%p5514) target = $region92
      $region91: #{vit_backbone_forward.4} parent=87 // pred_region
        _
      $region92: #{vit_backbone_forward.4} parent=87 // pred_fallthru
        _
    $region88: #{vit_backbone_forward.4} parent=5 // pred_fallthru
      _
    %p5517 = scmp.le.s32.totalorder 2, %s23
    // Predicated region
    $region93: #{vit_backbone_forward.4} parent=5 // pred_check
      %p5518 = pneg %p5517
    $region94: #{vit_backbone_forward.4} parent=5 // pred_check_branch
      %5520 = sbr.rel (%p5518) target = $region96
    $region95: #{vit_backbone_forward.4} parent=5 // pred_region
      %s5521 = ssub.s32 %s23, 2
      // Predicated region
      $region97: #{vit_backbone_forward.4} parent=95 // pred_check
        %p5522 = pneg %p414
      $region98: #{vit_backbone_forward.4} parent=95 // pred_check_branch
        %5524 = sbr.rel (%p5522) target = $region100
      $region99: #{vit_backbone_forward.4} parent=95 // pred_region
        %p5525 = scmp.lt.s32.totalorder %s29, 1
        %s5526 = scalar_select %p5525, %s29, 1
        %s5527 = smul.addr %s5526, 3
        %s5528 = smul.addr %s5527, 4
        %s5529 = scalar_lea.vmem %s17, %s5528
      $region100: #{vit_backbone_forward.4} parent=95 // pred_fallthru
        _
    $region96: #{vit_backbone_forward.4} parent=5 // pred_fallthru
      _
  $region6: #{vit_backbone_forward.4} parent=0 // loop_footer
    %s27 = sadd.s32 1, %s23
  $region7: #{vit_backbone_forward.4} parent=0 // loop_footer_branch
    %22 = sbr.rel target = $region3
  $region8: #{vit_backbone_forward.4} parent=0 // loop_exit
    _

</llo_original>
